<compile_context>
chip_gen: v5e
topology: v5e:2x2
jax: 0.10.0
libtpu: 0.0.40
codegen_flags: <defaults>
</compile_context>

<pallas_src>
import jax
import jax.numpy as jnp
from jax import lax
from jax.experimental import pallas as pl
from jax.experimental.pallas import tpu as pltpu

# ---- module hyper-parameters (from opt dict) --------------------------------
CS = 16            # multiscale_input_channel
OC = 1             # multiscale_output_channel (must be 1: .squeeze(1) + Linear(256))
EMBED = 128        # embed_dim
C_LF = 192         # fixed by the module
C_HF = 768         # fixed by the module
HW = 16 * 16       # 256 output spatial positions (Linear in_features=256 => H'=W'=16)
K_RAW = C_LF * 9   # 1728 im2col contraction length


# ---- Pallas kernel -----------------------------------------------------------
def vsa_kernel(patch_ref, hf_ref, solo_ref,
               a_ref, b_ref, c_ref, wsolo_ref, bsolo_ref, out_ref):
    # patch_ref: (bt, K_RAW, HW) bf16   hf_ref: (bt, C_HF, HW) bf16
    # a_ref: (2, K_RAW) bf16            b_ref: (2, C_HF) bf16
    # c_ref: (2, 1) f32                 wsolo_ref: (HW, EMBED) f32
    # bsolo_ref: (1, EMBED) f32         solo_ref/out_ref: (bt, EMBED) f32
    bt = patch_ref.shape[0]
    cvals = c_ref[...]                                   # (2, 1) f32
    c_main = cvals[0:1, :]                               # (1, 1)
    c_attn = cvals[1:2, :]                               # (1, 1)

    for b in range(bt):                                  # small static unroll (<= 4)
        # Composed LF/HF linear chain: row 0 = main logits, row 1 = attention logits.
        ma = (jnp.dot(a_ref[...], patch_ref[b], preferred_element_type=jnp.float32)
              + jnp.dot(b_ref[...], hf_ref[b], preferred_element_type=jnp.float32))
        # Lane-dense gating math on (1, 256).
        atted = (ma[0:1, :] + c_main) * jax.nn.sigmoid(ma[1:2, :] + c_attn)
        # solo_attention Linear(256 -> 128) as an MXU dot.
        logit = (jnp.dot(atted, wsolo_ref[...], preferred_element_type=jnp.float32)
                 + bsolo_ref[...])                       # (1, 128)
        out_ref[pl.ds(b, 1), :] = solo_ref[pl.ds(b, 1), :] * jax.nn.sigmoid(logit)


# ---- glue --------------------------------------------------------------------
def im2col_lower_t(x, k=3, stride=4):
    """x: (N, C, H, W) NCHW -> (N, C*k*k, Ho*Wo); K ordered (c, kh, kw), spatial row-major."""
    N, C, H, W = x.shape
    Ho = (H - k) // stride + 1
    Wo = (W - k) // stride + 1
    ih = (jnp.arange(Ho) * stride)[:, None] + jnp.arange(k)[None, :]   # (Ho, k)
    iw = (jnp.arange(Wo) * stride)[:, None] + jnp.arange(k)[None, :]   # (Wo, k)
    p = x[:, :, ih, :]                           # (N, C, Ho, kh, W)
    p = p[:, :, :, :, iw]                        # (N, C, Ho, kh, Wo, kw)
    p = jnp.transpose(p, (0, 1, 3, 5, 2, 4))     # (N, C, kh, kw, Ho, Wo)
    return p.reshape(N, C * k * k, Ho * Wo)


def vsa_forward(lower_feature, higher_feature, solo_feature, p):
    N = lower_feature.shape[0]
    b_tile = max(1, min(4, N))
    grid = (pl.cdiv(N, b_tile),)

    # ---- activations (bf16 streams, f32 accumulation inside the kernel) ----
    patches_t = im2col_lower_t(lower_feature).astype(jnp.bfloat16)      # (N, 1728, 256)
    hf_t = higher_feature.reshape(N, C_HF, HW).astype(jnp.bfloat16)     # (N, 768, 256)
    solo = solo_feature.astype(jnp.float32)                             # (N, 128)

    # ---- pre-compose LF_conv/HF_conv + concat-mean + conv1x1_{1,2} ----
    hp = lax.Precision.HIGHEST
    wlf = p["w_lf"].reshape(CS, K_RAW)            # (CS, K)   order (c, kh, kw)
    whf = p["w_hf"].reshape(CS, C_HF)             # (CS, 768)
    blf = p["b_lf"].reshape(CS)
    bhf = p["b_hf"].reshape(CS)
    w1 = p["w_1"].reshape(2 * CS)                 # OC == 1
    w2 = p["w_2"].reshape(2 * CS)
    W = jnp.stack([w1, w2], axis=0)               # (2, 2CS): row 0 main, row 1 attn
    Wl, Wh = W[:, :CS], W[:, CS:]                 # (2, CS) each
    s = jnp.sum(W, axis=1, keepdims=True)         # (2, 1)   mean-over-channels term
    b12 = jnp.stack([p["b_1"][0], p["b_2"][0]])   # (2,)

    A_T = jnp.dot(Wl, wlf, precision=hp).astype(jnp.bfloat16)            # (2, 1728)
    B_T = jnp.dot(Wh + s / CS, whf, precision=hp).astype(jnp.bfloat16)   # (2, 768)
    c_arr = (jnp.dot(Wl, blf, precision=hp) + jnp.dot(Wh, bhf, precision=hp)
             + (jnp.sum(bhf) / CS) * s[:, 0] + b12).reshape(2, 1).astype(jnp.float32)

    wsoloT = p["w_solo"].T.astype(jnp.float32)                           # (256, 128)
    bsolo = p["b_solo"].reshape(1, EMBED).astype(jnp.float32)

    flops = int(N * (2 * HW * (K_RAW + C_HF) * 2 + 2 * HW * EMBED))
    bytes_acc = int(N * ((K_RAW + C_HF) * HW * 2 + EMBED * 4 * 2)
                    + (K_RAW + C_HF) * 2 * 2 + HW * EMBED * 4 + EMBED * 4 + 8)
    cost = pl.CostEstimate(flops=flops,
                           transcendentals=int(N * (HW + EMBED)),
                           bytes_accessed=bytes_acc)

    out = pl.pallas_call(
        vsa_kernel,
        out_shape=jax.ShapeDtypeStruct((N, EMBED), jnp.float32),
        grid=grid,
        in_specs=[
            pl.BlockSpec((b_tile, K_RAW, HW), lambda g: (g, 0, 0)),   # patches^T
            pl.BlockSpec((b_tile, C_HF, HW), lambda g: (g, 0, 0)),    # hf^T
            pl.BlockSpec((b_tile, EMBED), lambda g: (g, 0)),          # solo
            pl.BlockSpec((2, K_RAW), lambda g: (0, 0)),               # A^T
            pl.BlockSpec((2, C_HF), lambda g: (0, 0)),                # B^T
            pl.BlockSpec((2, 1), lambda g: (0, 0)),                   # c
            pl.BlockSpec((HW, EMBED), lambda g: (0, 0)),              # wsolo^T
            pl.BlockSpec((1, EMBED), lambda g: (0, 0)),               # bsolo
        ],
        out_specs=pl.BlockSpec((b_tile, EMBED), lambda g: (g, 0)),
        compiler_params=pltpu.CompilerParams(
            dimension_semantics=("parallel",),
            vmem_limit_bytes=(32 << 20)),
        cost_estimate=cost,
    )(patches_t, hf_t, solo, A_T, B_T, c_arr, wsoloT, bsolo)

    return out


vsa_forward_jit = jax.jit(vsa_forward)


# ---- pure-JAX reference (mirrors the PyTorch forward) ------------------------
def reference_forward(lower, higher, solo, p):
    dn = ("NCHW", "OIHW", "NCHW")
    hp = lax.Precision.HIGHEST
    lf = lax.conv_general_dilated(lower, p["w_lf"], (4, 4), "VALID",
                                  dimension_numbers=dn, precision=hp)
    lf = lf + p["b_lf"][None, :, None, None]
    hf = lax.conv_general_dilated(higher, p["w_hf"], (1, 1), "VALID",
                                  dimension_numbers=dn, precision=hp)
    hf = hf + p["b_hf"][None, :, None, None]
    concat = jnp.concatenate([lf, hf], axis=1)
    concat = jnp.mean(hf, axis=1, keepdims=True) + concat
    main = lax.conv_general_dilated(concat, p["w_1"], (1, 1), "VALID",
                                    dimension_numbers=dn, precision=hp)
    main = main + p["b_1"][None, :, None, None]
    attn = jax.nn.sigmoid(
        lax.conv_general_dilated(concat, p["w_2"], (1, 1), "VALID",
                                 dimension_numbers=dn, precision=hp)
        + p["b_2"][None, :, None, None])
    atted = (main * attn).reshape(lower.shape[0], -1)               # OC == 1
    solo_att = jax.nn.sigmoid(
        jnp.dot(atted, p["w_solo"].T, precision=hp) + p["b_solo"])
    return solo * solo_att


# ---- main --------------------------------------------------------------------
if __name__ == "__main__":
    key = jax.random.PRNGKey(0)
    ks = jax.random.split(key, 13)

    # deterministic synthetic parameters (PyTorch layouts)
    params = {
        "w_lf": 0.05 * jax.random.normal(ks[0], (CS, C_LF, 3, 3), jnp.float32),
        "b_lf": 0.05 * jax.random.normal(ks[1], (CS,), jnp.float32),
        "w_hf": 0.05 * jax.random.normal(ks[2], (CS, C_HF, 1, 1), jnp.float32),
        "b_hf": 0.05 * jax.random.normal(ks[3], (CS,), jnp.float32),
        "w_1": 0.05 * jax.random.normal(ks[4], (OC, 2 * CS, 1, 1), jnp.float32),
        "b_1": 0.05 * jax.random.normal(ks[5], (OC,), jnp.float32),
        "w_2": 0.05 * jax.random.normal(ks[6], (OC, 2 * CS, 1, 1), jnp.float32),
        "b_2": 0.05 * jax.random.normal(ks[7], (OC,), jnp.float32),
        "w_solo": 0.05 * jax.random.normal(ks[8], (EMBED, HW), jnp.float32),
        "b_solo": 0.05 * jax.random.normal(ks[9], (EMBED,), jnp.float32),
    }

    # inputs: lower (N,192,64,64) -> 3x3/s4 conv -> 16x16; higher (N,768,16,16); solo (N,EMBED)
    N = 2
    lower_feature = jax.random.normal(ks[10], (N, C_LF, 64, 64), jnp.float32)
    higher_feature = jax.random.normal(ks[11], (N, C_HF, 16, 16), jnp.float32)
    solo_feature = jax.random.normal(ks[12], (N, EMBED), jnp.float32)

    out = vsa_forward_jit(lower_feature, higher_feature, solo_feature, params)
    out = jax.block_until_ready(out)

    ref = reference_forward(lower_feature, higher_feature, solo_feature, params)
    ref = jax.block_until_ready(ref)

    assert out.shape == (N, EMBED)
    # bf16 activations / composed weights with f32 accumulation => slightly looser tol
    assert jnp.allclose(out, ref, atol=2e-2, rtol=2e-2), (
        f"max abs diff {jnp.max(jnp.abs(out - ref))}")

    print("KERNEL_OK")
</pallas_src>

<mosaic_0001>
module attributes {stable_mosaic.version = 11 : i64} {
  func.func @vsa_kernel(%arg0: i32, %arg1: memref<2x1728x256xbf16, #tpu.memory_space<vmem>>, %arg2: memref<2x768x256xbf16, #tpu.memory_space<vmem>>, %arg3: memref<2x128xf32, #tpu.memory_space<vmem>>, %arg4: memref<2x1728xbf16, #tpu.memory_space<vmem>>, %arg5: memref<2x768xbf16, #tpu.memory_space<vmem>>, %arg6: memref<2x1xf32, #tpu.memory_space<vmem>>, %arg7: memref<256x128xf32, #tpu.memory_space<vmem>>, %arg8: memref<1x128xf32, #tpu.memory_space<vmem>>, %arg9: memref<2x128xf32, #tpu.memory_space<vmem>>) attributes {dimension_semantics = [#tpu.dimension_semantics<parallel>], iteration_bounds = array<i64: 1>, scalar_prefetch = 0 : i64, scratch_operands = 0 : i64, tpu.core_type = #tpu.core_type<tc>, window_params = [{transform_indices = @transform_0, window_bounds = array<i64: 2, 1728, 256>}, {transform_indices = @transform_1, window_bounds = array<i64: 2, 768, 256>}, {transform_indices = @transform_2, window_bounds = array<i64: 2, 128>}, {pipeline_mode = #tpu.pipeline_mode<synchronous>, transform_indices = @transform_3, window_bounds = array<i64: 2, 1728>}, {pipeline_mode = #tpu.pipeline_mode<synchronous>, transform_indices = @transform_4, window_bounds = array<i64: 2, 768>}, {pipeline_mode = #tpu.pipeline_mode<synchronous>, transform_indices = @transform_5, window_bounds = array<i64: 2, 1>}, {pipeline_mode = #tpu.pipeline_mode<synchronous>, transform_indices = @transform_6, window_bounds = array<i64: 256, 128>}, {pipeline_mode = #tpu.pipeline_mode<synchronous>, transform_indices = @transform_7, window_bounds = array<i64: 1, 128>}, {transform_indices = @transform_8, window_bounds = array<i64: 2, 128>}]} {
    %c0 = arith.constant 0 : index
    %c0_0 = arith.constant 0 : index
    %0 = vector.load %arg6[%c0, %c0_0] : memref<2x1xf32, #tpu.memory_space<vmem>>, vector<2x1xf32>
    %1 = vector.extract_strided_slice %0 {offsets = [0, 0], sizes = [1, 1], strides = [1, 1]} : vector<2x1xf32> to vector<1x1xf32>
    %2 = vector.extract_strided_slice %0 {offsets = [1, 0], sizes = [1, 1], strides = [1, 1]} : vector<2x1xf32> to vector<1x1xf32>
    %c0_1 = arith.constant 0 : index
    %c0_2 = arith.constant 0 : index
    %3 = vector.load %arg4[%c0_1, %c0_2] : memref<2x1728xbf16, #tpu.memory_space<vmem>>, vector<2x1728xbf16>
    %c0_3 = arith.constant 0 : index
    %c0_4 = arith.constant 0 : index
    %c0_5 = arith.constant 0 : index
    %4 = vector.load %arg1[%c0_3, %c0_4, %c0_5] : memref<2x1728x256xbf16, #tpu.memory_space<vmem>>, vector<1x1728x256xbf16>
    %5 = vector.shape_cast %4 : vector<1x1728x256xbf16> to vector<1728x256xbf16>
    %cst = arith.constant dense<0.000000e+00> : vector<2x256xf32>
    %6 = tpu.matmul %3, %5, %cst {dimension_numbers = #tpu.dot_dimension_numbers<[1], [0], [0], [1], [0, 0, 1, 1], [], []>} : vector<2x1728xbf16>, vector<1728x256xbf16>, vector<2x256xf32> -> vector<2x256xf32>
    %c0_6 = arith.constant 0 : index
    %c0_7 = arith.constant 0 : index
    %7 = vector.load %arg5[%c0_6, %c0_7] : memref<2x768xbf16, #tpu.memory_space<vmem>>, vector<2x768xbf16>
    %c0_8 = arith.constant 0 : index
    %c0_9 = arith.constant 0 : index
    %c0_10 = arith.constant 0 : index
    %8 = vector.load %arg2[%c0_8, %c0_9, %c0_10] : memref<2x768x256xbf16, #tpu.memory_space<vmem>>, vector<1x768x256xbf16>
    %9 = vector.shape_cast %8 : vector<1x768x256xbf16> to vector<768x256xbf16>
    %cst_11 = arith.constant dense<0.000000e+00> : vector<2x256xf32>
    %10 = tpu.matmul %7, %9, %cst_11 {dimension_numbers = #tpu.dot_dimension_numbers<[1], [0], [0], [1], [0, 0, 1, 1], [], []>} : vector<2x768xbf16>, vector<768x256xbf16>, vector<2x256xf32> -> vector<2x256xf32>
    %11 = arith.addf %6, %10 : vector<2x256xf32>
    %12 = vector.extract_strided_slice %11 {offsets = [0, 0], sizes = [1, 256], strides = [1, 1]} : vector<2x256xf32> to vector<1x256xf32>
    %13 = vector.broadcast %1 : vector<1x1xf32> to vector<1x256xf32>
    %14 = arith.addf %12, %13 : vector<1x256xf32>
    %15 = vector.extract_strided_slice %11 {offsets = [1, 0], sizes = [1, 256], strides = [1, 1]} : vector<2x256xf32> to vector<1x256xf32>
    %16 = vector.broadcast %2 : vector<1x1xf32> to vector<1x256xf32>
    %17 = arith.addf %15, %16 : vector<1x256xf32>
    %18 = arith.negf %17 : vector<1x256xf32>
    %19 = math.exp %18 : vector<1x256xf32>
    %cst_12 = arith.constant 1.000000e+00 : f32
    %20 = vector.broadcast %cst_12 : f32 to vector<1x256xf32>
    %21 = arith.addf %20, %19 : vector<1x256xf32>
    %22 = arith.divf %20, %21 : vector<1x256xf32>
    %23 = arith.mulf %14, %22 : vector<1x256xf32>
    %c0_13 = arith.constant 0 : index
    %c0_14 = arith.constant 0 : index
    %24 = vector.load %arg7[%c0_13, %c0_14] : memref<256x128xf32, #tpu.memory_space<vmem>>, vector<256x128xf32>
    %cst_15 = arith.constant dense<0.000000e+00> : vector<1x128xf32>
    %25 = tpu.matmul %23, %24, %cst_15 {dimension_numbers = #tpu.dot_dimension_numbers<[1], [0], [0], [1], [0, 0, 1, 1], [], []>} : vector<1x256xf32>, vector<256x128xf32>, vector<1x128xf32> -> vector<1x128xf32>
    %c0_16 = arith.constant 0 : index
    %c0_17 = arith.constant 0 : index
    %26 = vector.load %arg8[%c0_16, %c0_17] : memref<1x128xf32, #tpu.memory_space<vmem>>, vector<1x128xf32>
    %27 = arith.addf %25, %26 : vector<1x128xf32>
    %c0_18 = arith.constant 0 : index
    %c0_19 = arith.constant 0 : index
    %28 = vector.load %arg3[%c0_18, %c0_19] : memref<2x128xf32, #tpu.memory_space<vmem>>, vector<1x128xf32>
    %29 = arith.negf %27 : vector<1x128xf32>
    %30 = math.exp %29 : vector<1x128xf32>
    %cst_20 = arith.constant 1.000000e+00 : f32
    %31 = vector.broadcast %cst_20 : f32 to vector<1x128xf32>
    %32 = arith.addf %31, %30 : vector<1x128xf32>
    %33 = arith.divf %31, %32 : vector<1x128xf32>
    %34 = arith.mulf %28, %33 : vector<1x128xf32>
    %c0_21 = arith.constant 0 : index
    %c0_22 = arith.constant 0 : index
    %35 = vector.load %arg9[%c0_21, %c0_22] : memref<2x128xf32, #tpu.memory_space<vmem>>, vector<1x128xf32>
    tpu.vector_store %arg9[%c0_21, %c0_22], %34 {strides = array<i32>} : memref<2x128xf32, #tpu.memory_space<vmem>>, vector<1x128xf32>,
    %c0_23 = arith.constant 0 : index
    %c0_24 = arith.constant 0 : index
    %36 = vector.load %arg4[%c0_23, %c0_24] : memref<2x1728xbf16, #tpu.memory_space<vmem>>, vector<2x1728xbf16>
    %c1 = arith.constant 1 : index
    %c0_25 = arith.constant 0 : index
    %c0_26 = arith.constant 0 : index
    %37 = vector.load %arg1[%c1, %c0_25, %c0_26] : memref<2x1728x256xbf16, #tpu.memory_space<vmem>>, vector<1x1728x256xbf16>
    %38 = vector.shape_cast %37 : vector<1x1728x256xbf16> to vector<1728x256xbf16>
    %cst_27 = arith.constant dense<0.000000e+00> : vector<2x256xf32>
    %39 = tpu.matmul %36, %38, %cst_27 {dimension_numbers = #tpu.dot_dimension_numbers<[1], [0], [0], [1], [0, 0, 1, 1], [], []>} : vector<2x1728xbf16>, vector<1728x256xbf16>, vector<2x256xf32> -> vector<2x256xf32>
    %c0_28 = arith.constant 0 : index
    %c0_29 = arith.constant 0 : index
    %40 = vector.load %arg5[%c0_28, %c0_29] : memref<2x768xbf16, #tpu.memory_space<vmem>>, vector<2x768xbf16>
    %c1_30 = arith.constant 1 : index
    %c0_31 = arith.constant 0 : index
    %c0_32 = arith.constant 0 : index
    %41 = vector.load %arg2[%c1_30, %c0_31, %c0_32] : memref<2x768x256xbf16, #tpu.memory_space<vmem>>, vector<1x768x256xbf16>
    %42 = vector.shape_cast %41 : vector<1x768x256xbf16> to vector<768x256xbf16>
    %cst_33 = arith.constant dense<0.000000e+00> : vector<2x256xf32>
    %43 = tpu.matmul %40, %42, %cst_33 {dimension_numbers = #tpu.dot_dimension_numbers<[1], [0], [0], [1], [0, 0, 1, 1], [], []>} : vector<2x768xbf16>, vector<768x256xbf16>, vector<2x256xf32> -> vector<2x256xf32>
    %44 = arith.addf %39, %43 : vector<2x256xf32>
    %45 = vector.extract_strided_slice %44 {offsets = [0, 0], sizes = [1, 256], strides = [1, 1]} : vector<2x256xf32> to vector<1x256xf32>
    %46 = vector.broadcast %1 : vector<1x1xf32> to vector<1x256xf32>
    %47 = arith.addf %45, %46 : vector<1x256xf32>
    %48 = vector.extract_strided_slice %44 {offsets = [1, 0], sizes = [1, 256], strides = [1, 1]} : vector<2x256xf32> to vector<1x256xf32>
    %49 = vector.broadcast %2 : vector<1x1xf32> to vector<1x256xf32>
    %50 = arith.addf %48, %49 : vector<1x256xf32>
    %51 = arith.negf %50 : vector<1x256xf32>
    %52 = math.exp %51 : vector<1x256xf32>
    %cst_34 = arith.constant 1.000000e+00 : f32
    %53 = vector.broadcast %cst_34 : f32 to vector<1x256xf32>
    %54 = arith.addf %53, %52 : vector<1x256xf32>
    %55 = arith.divf %53, %54 : vector<1x256xf32>
    %56 = arith.mulf %47, %55 : vector<1x256xf32>
    %c0_35 = arith.constant 0 : index
    %c0_36 = arith.constant 0 : index
    %57 = vector.load %arg7[%c0_35, %c0_36] : memref<256x128xf32, #tpu.memory_space<vmem>>, vector<256x128xf32>
    %cst_37 = arith.constant dense<0.000000e+00> : vector<1x128xf32>
    %58 = tpu.matmul %56, %57, %cst_37 {dimension_numbers = #tpu.dot_dimension_numbers<[1], [0], [0], [1], [0, 0, 1, 1], [], []>} : vector<1x256xf32>, vector<256x128xf32>, vector<1x128xf32> -> vector<1x128xf32>
    %c0_38 = arith.constant 0 : index
    %c0_39 = arith.constant 0 : index
    %59 = vector.load %arg8[%c0_38, %c0_39] : memref<1x128xf32, #tpu.memory_space<vmem>>, vector<1x128xf32>
    %60 = arith.addf %58, %59 : vector<1x128xf32>
    %c1_40 = arith.constant 1 : index
    %c0_41 = arith.constant 0 : index
    %61 = vector.load %arg3[%c1_40, %c0_41] : memref<2x128xf32, #tpu.memory_space<vmem>>, vector<1x128xf32>
    %62 = arith.negf %60 : vector<1x128xf32>
    %63 = math.exp %62 : vector<1x128xf32>
    %cst_42 = arith.constant 1.000000e+00 : f32
    %64 = vector.broadcast %cst_42 : f32 to vector<1x128xf32>
    %65 = arith.addf %64, %63 : vector<1x128xf32>
    %66 = arith.divf %64, %65 : vector<1x128xf32>
    %67 = arith.mulf %61, %66 : vector<1x128xf32>
    %c1_43 = arith.constant 1 : index
    %c0_44 = arith.constant 0 : index
    %68 = vector.load %arg9[%c1_43, %c0_44] : memref<2x128xf32, #tpu.memory_space<vmem>>, vector<1x128xf32>
    tpu.vector_store %arg9[%c1_43, %c0_44], %67 {strides = array<i32>} : memref<2x128xf32, #tpu.memory_space<vmem>>, vector<1x128xf32>,
    return
  }
  func.func @transform_0(%arg0: i32) -> (i32, i32, i32) {
    %c0_i32 = arith.constant 0 : i32
    %c0_i32_0 = arith.constant 0 : i32
    %c0_i32_1 = arith.constant 0 : i32
    return %arg0, %c0_i32, %c0_i32_0 : i32, i32, i32
  }
  func.func @transform_1(%arg0: i32) -> (i32, i32, i32) {
    %c0_i32 = arith.constant 0 : i32
    %c0_i32_0 = arith.constant 0 : i32
    %c0_i32_1 = arith.constant 0 : i32
    return %arg0, %c0_i32, %c0_i32_0 : i32, i32, i32
  }
  func.func @transform_2(%arg0: i32) -> (i32, i32) {
    %c0_i32 = arith.constant 0 : i32
    %c0_i32_0 = arith.constant 0 : i32
    return %arg0, %c0_i32 : i32, i32
  }
  func.func @transform_3(%arg0: i32) -> (i32, i32) {
    %c0_i32 = arith.constant 0 : i32
    %c0_i32_0 = arith.constant 0 : i32
    %c0_i32_1 = arith.constant 0 : i32
    return %c0_i32, %c0_i32_0 : i32, i32
  }
  func.func @transform_4(%arg0: i32) -> (i32, i32) {
    %c0_i32 = arith.constant 0 : i32
    %c0_i32_0 = arith.constant 0 : i32
    %c0_i32_1 = arith.constant 0 : i32
    return %c0_i32, %c0_i32_0 : i32, i32
  }
  func.func @transform_5(%arg0: i32) -> (i32, i32) {
    %c0_i32 = arith.constant 0 : i32
    %c0_i32_0 = arith.constant 0 : i32
    %c0_i32_1 = arith.constant 0 : i32
    return %c0_i32, %c0_i32_0 : i32, i32
  }
  func.func @transform_6(%arg0: i32) -> (i32, i32) {
    %c0_i32 = arith.constant 0 : i32
    %c0_i32_0 = arith.constant 0 : i32
    %c0_i32_1 = arith.constant 0 : i32
    return %c0_i32, %c0_i32_0 : i32, i32
  }
  func.func @transform_7(%arg0: i32) -> (i32, i32) {
    %c0_i32 = arith.constant 0 : i32
    %c0_i32_0 = arith.constant 0 : i32
    %c0_i32_1 = arith.constant 0 : i32
    return %c0_i32, %c0_i32_0 : i32, i32
  }
  func.func @transform_8(%arg0: i32) -> (i32, i32) {
    %c0_i32 = arith.constant 0 : i32
    %c0_i32_0 = arith.constant 0 : i32
    return %arg0, %c0_i32 : i32, i32
  }
}

</mosaic_0001>

<llo_original>
// kernel: vsa_forward.1
$region0: #{vsa_forward.1}
  #allocation0 [shape = 'u32[]', space=smem, size = 0x4, offset = 0x4, fixed_abs, tag = 'smem constant byte address 0x4 - core index']
  #allocation1 [shape = 'u32[72,128]{1,0:T(1,128)}', space=vmem, size = 0x9000, scoped, tag = 'internal scratch']
  %s0 = inlined_call_operand.vmem [shape: bf16[2,1728,256], index: 0, kind: input, shape index: {}]
  %s1 = inlined_call_operand.vmem [shape: bf16[2,768,256], index: 1, kind: input, shape index: {}]
  %s2 = inlined_call_operand.vmem [shape: f32[2,128], index: 2, kind: input, shape index: {}]
  %s3 = inlined_call_operand.vmem [shape: bf16[2,1728], index: 3, kind: input, shape index: {}]
  %s4 = inlined_call_operand.vmem [shape: bf16[2,768], index: 4, kind: input, shape index: {}]
  %s5 = inlined_call_operand.vmem [shape: f32[2,1], index: 5, kind: input, shape index: {}]
  %s6 = inlined_call_operand.vmem [shape: f32[256,128], index: 6, kind: input, shape index: {}]
  %s7 = inlined_call_operand.vmem [shape: f32[1,128], index: 7, kind: input, shape index: {}]
  %s8 = inlined_call_operand.hbm [shape: f32[2,128], index: 8, kind: output, shape index: {}]
  %s9 = sld [smem:[#allocation0]]
  $region42: #{vsa_forward.1} parent=0
    _
  %s11 = ssub.s32 1, %s9
  %s12 = scalar_select 0, %s11, %s9
  $region1: #{vsa_forward.1} parent=0
    #allocation2 [shape = 'u8[1024]{0}', space=vmem, size = 0x400, scoped, tag = 'output window, operand 0, single buffered']
    #allocation3 [shape = 's32[1]{0}', space=sflag, size = 0x4, scoped, tag = 'scoped memory for vsa_forward.1']
    %13 = vsyncpa [#allocation3], 0
    // Predicated region
    $region2: #{vsa_forward.1} parent=1 // pred_check
      _
    $region3: #{vsa_forward.1} parent=1 // pred_check_branch
      %15 = sbr.rel (0) target = $region5
    $region4: #{vsa_forward.1} parent=1 // pred_region
      _
    $region5: #{vsa_forward.1} parent=1 // pred_fallthru
      _
    // Predicated region
    $region6: #{vsa_forward.1} parent=1 // pred_check
      _
    $region7: #{vsa_forward.1} parent=1 // pred_check_branch
      %17 = sbr.rel (0) target = $region9
    $region8: #{vsa_forward.1} parent=1 // pred_region
      _
    $region9: #{vsa_forward.1} parent=1 // pred_fallthru
      _
    // Predicated region
    $region10: #{vsa_forward.1} parent=1 // pred_check
      _
    $region11: #{vsa_forward.1} parent=1 // pred_check_branch
      %19 = sbr.rel (0) target = $region13
    $region12: #{vsa_forward.1} parent=1 // pred_region
      _
    $region13: #{vsa_forward.1} parent=1 // pred_fallthru
      _
    // Predicated region
    $region14: #{vsa_forward.1} parent=1 // pred_check
      _
    $region15: #{vsa_forward.1} parent=1 // pred_check_branch
      %21 = sbr.rel (0) target = $region17
    $region16: #{vsa_forward.1} parent=1 // pred_region
      _
    $region17: #{vsa_forward.1} parent=1 // pred_fallthru
      _
    // Predicated region
    $region18: #{vsa_forward.1} parent=1 // pred_check
      _
    $region19: #{vsa_forward.1} parent=1 // pred_check_branch
      %23 = sbr.rel (0) target = $region21
    $region20: #{vsa_forward.1} parent=1 // pred_region
      _
    $region21: #{vsa_forward.1} parent=1 // pred_fallthru
      _
    // Predicated region
    $region22: #{vsa_forward.1} parent=1 // pred_check
      _
    $region23: #{vsa_forward.1} parent=1 // pred_check_branch
      %25 = sbr.rel (0) target = $region25
    $region24: #{vsa_forward.1} parent=1 // pred_region
      _
    $region25: #{vsa_forward.1} parent=1 // pred_fallthru
      _
    // Predicated region
    $region26: #{vsa_forward.1} parent=1 // pred_check
      _
    $region27: #{vsa_forward.1} parent=1 // pred_check_branch
      %27 = sbr.rel (0) target = $region29
    $region28: #{vsa_forward.1} parent=1 // pred_region
      _
    $region29: #{vsa_forward.1} parent=1 // pred_fallthru
      _
    // Predicated region
    $region30: #{vsa_forward.1} parent=1 // pred_check
      _
    $region31: #{vsa_forward.1} parent=1 // pred_check_branch
      %29 = sbr.rel (0) target = $region33
    $region32: #{vsa_forward.1} parent=1 // pred_region
      _
    $region33: #{vsa_forward.1} parent=1 // pred_fallthru
      _
    %v31 = vld [vmem:[%s5] sm:$0x3]
    %v32 = vld [vmem:[%s3] sm:$0xff]
    %v33 = vld [vmem:[%s3 + $0x8] sm:$0x3f]
    %v34 = vld [vmem:[%s0] sm:$0xff]
    %v35 = vld [vmem:[%s0 + $0x8] sm:$0xff]
    %v36 = vld [vmem:[%s0 + $0x10] sm:$0xff]
    %v37 = vld [vmem:[%s0 + $0x18] sm:$0xff]
    %v38 = vld [vmem:[%s0 + $0x20] sm:$0xff]
    %v39 = vld [vmem:[%s0 + $0x28] sm:$0xff]
    %v40 = vld [vmem:[%s0 + $0x30] sm:$0xff]
    %v41 = vld [vmem:[%s0 + $0x38] sm:$0xff]
    %v42 = vld [vmem:[%s0 + $0x40] sm:$0xff]
    %v43 = vld [vmem:[%s0 + $0x48] sm:$0xff]
    %v44 = vld [vmem:[%s0 + $0x50] sm:$0xff]
    %v45 = vld [vmem:[%s0 + $0x58] sm:$0xff]
    %v46 = vld [vmem:[%s0 + $0x60] sm:$0xff]
    %v47 = vld [vmem:[%s0 + $0x68] sm:$0xff]
    %v48 = vld [vmem:[%s0 + $0x70] sm:$0xff]
    %v49 = vld [vmem:[%s0 + $0x78] sm:$0xff]
    %v50 = vld [vmem:[%s0 + $0x80] sm:$0xff]
    %v51 = vld [vmem:[%s0 + $0x88] sm:$0xff]
    %v52 = vld [vmem:[%s0 + $0x90] sm:$0xff]
    %v53 = vld [vmem:[%s0 + $0x98] sm:$0xff]
    %v54 = vld [vmem:[%s0 + $0xa0] sm:$0xff]
    %v55 = vld [vmem:[%s0 + $0xa8] sm:$0xff]
    %v56 = vld [vmem:[%s0 + $0xb0] sm:$0xff]
    %v57 = vld [vmem:[%s0 + $0xb8] sm:$0xff]
    %v58 = vld [vmem:[%s0 + $0xc0] sm:$0xff]
    %v59 = vld [vmem:[%s0 + $0xc8] sm:$0xff]
    %v60 = vld [vmem:[%s0 + $0xd0] sm:$0xff]
    %v61 = vld [vmem:[%s0 + $0xd8] sm:$0xff]
    %v62 = vld [vmem:[%s0 + $0xe0] sm:$0xff]
    %v63 = vld [vmem:[%s0 + $0xe8] sm:$0xff]
    %v64 = vld [vmem:[%s0 + $0xf0] sm:$0xff]
    %v65 = vld [vmem:[%s0 + $0xf8] sm:$0xff]
    %v66 = vld [vmem:[%s0 + $0x100] sm:$0xff]
    %v67 = vld [vmem:[%s0 + $0x108] sm:$0xff]
    %v68 = vld [vmem:[%s0 + $0x110] sm:$0xff]
    %v69 = vld [vmem:[%s0 + $0x118] sm:$0xff]
    %v70 = vld [vmem:[%s0 + $0x120] sm:$0xff]
    %v71 = vld [vmem:[%s0 + $0x128] sm:$0xff]
    %v72 = vld [vmem:[%s0 + $0x130] sm:$0xff]
    %v73 = vld [vmem:[%s0 + $0x138] sm:$0xff]
    %v74 = vld [vmem:[%s0 + $0x140] sm:$0xff]
    %v75 = vld [vmem:[%s0 + $0x148] sm:$0xff]
    %v76 = vld [vmem:[%s0 + $0x150] sm:$0xff]
    %v77 = vld [vmem:[%s0 + $0x158] sm:$0xff]
    %v78 = vld [vmem:[%s0 + $0x160] sm:$0xff]
    %v79 = vld [vmem:[%s0 + $0x168] sm:$0xff]
    %v80 = vld [vmem:[%s0 + $0x170] sm:$0xff]
    %v81 = vld [vmem:[%s0 + $0x178] sm:$0xff]
    %v82 = vld [vmem:[%s0 + $0x180] sm:$0xff]
    %v83 = vld [vmem:[%s0 + $0x188] sm:$0xff]
    %v84 = vld [vmem:[%s0 + $0x190] sm:$0xff]
    %v85 = vld [vmem:[%s0 + $0x198] sm:$0xff]
    %v86 = vld [vmem:[%s0 + $0x1a0] sm:$0xff]
    %v87 = vld [vmem:[%s0 + $0x1a8] sm:$0xff]
    %v88 = vld [vmem:[%s0 + $0x1b0] sm:$0xff]
    %v89 = vld [vmem:[%s0 + $0x1b8] sm:$0xff]
    %v90 = vld [vmem:[%s0 + $0x1c0] sm:$0xff]
    %v91 = vld [vmem:[%s0 + $0x1c8] sm:$0xff]
    %v92 = vld [vmem:[%s0 + $0x1d0] sm:$0xff]
    %v93 = vld [vmem:[%s0 + $0x1d8] sm:$0xff]
    %v94 = vld [vmem:[%s0 + $0x1e0] sm:$0xff]
    %v95 = vld [vmem:[%s0 + $0x1e8] sm:$0xff]
    %v96 = vld [vmem:[%s0 + $0x1f0] sm:$0xff]
    %v97 = vld [vmem:[%s0 + $0x1f8] sm:$0xff]
    %v98 = vld [vmem:[%s0 + $0x200] sm:$0xff]
    %v99 = vld [vmem:[%s0 + $0x208] sm:$0xff]
    %v100 = vld [vmem:[%s0 + $0x210] sm:$0xff]
    %v101 = vld [vmem:[%s0 + $0x218] sm:$0xff]
    %v102 = vld [vmem:[%s0 + $0x220] sm:$0xff]
    %v103 = vld [vmem:[%s0 + $0x228] sm:$0xff]
    %v104 = vld [vmem:[%s0 + $0x230] sm:$0xff]
    %v105 = vld [vmem:[%s0 + $0x238] sm:$0xff]
    %v106 = vld [vmem:[%s0 + $0x240] sm:$0xff]
    %v107 = vld [vmem:[%s0 + $0x248] sm:$0xff]
    %v108 = vld [vmem:[%s0 + $0x250] sm:$0xff]
    %v109 = vld [vmem:[%s0 + $0x258] sm:$0xff]
    %v110 = vld [vmem:[%s0 + $0x260] sm:$0xff]
    %v111 = vld [vmem:[%s0 + $0x268] sm:$0xff]
    %v112 = vld [vmem:[%s0 + $0x270] sm:$0xff]
    %v113 = vld [vmem:[%s0 + $0x278] sm:$0xff]
    %v114 = vld [vmem:[%s0 + $0x280] sm:$0xff]
    %v115 = vld [vmem:[%s0 + $0x288] sm:$0xff]
    %v116 = vld [vmem:[%s0 + $0x290] sm:$0xff]
    %v117 = vld [vmem:[%s0 + $0x298] sm:$0xff]
    %v118 = vld [vmem:[%s0 + $0x2a0] sm:$0xff]
    %v119 = vld [vmem:[%s0 + $0x2a8] sm:$0xff]
    %v120 = vld [vmem:[%s0 + $0x2b0] sm:$0xff]
    %v121 = vld [vmem:[%s0 + $0x2b8] sm:$0xff]
    %v122 = vld [vmem:[%s0 + $0x2c0] sm:$0xff]
    %v123 = vld [vmem:[%s0 + $0x2c8] sm:$0xff]
    %v124 = vld [vmem:[%s0 + $0x2d0] sm:$0xff]
    %v125 = vld [vmem:[%s0 + $0x2d8] sm:$0xff]
    %v126 = vld [vmem:[%s0 + $0x2e0] sm:$0xff]
    %v127 = vld [vmem:[%s0 + $0x2e8] sm:$0xff]
    %v128 = vld [vmem:[%s0 + $0x2f0] sm:$0xff]
    %v129 = vld [vmem:[%s0 + $0x2f8] sm:$0xff]
    %v130 = vld [vmem:[%s0 + $0x300] sm:$0xff]
    %v131 = vld [vmem:[%s0 + $0x308] sm:$0xff]
    %v132 = vld [vmem:[%s0 + $0x310] sm:$0xff]
    %v133 = vld [vmem:[%s0 + $0x318] sm:$0xff]
    %v134 = vld [vmem:[%s0 + $0x320] sm:$0xff]
    %v135 = vld [vmem:[%s0 + $0x328] sm:$0xff]
    %v136 = vld [vmem:[%s0 + $0x330] sm:$0xff]
    %v137 = vld [vmem:[%s0 + $0x338] sm:$0xff]
    %v138 = vld [vmem:[%s0 + $0x340] sm:$0xff]
    %v139 = vld [vmem:[%s0 + $0x348] sm:$0xff]
    %v140 = vld [vmem:[%s0 + $0x350] sm:$0xff]
    %v141 = vld [vmem:[%s0 + $0x358] sm:$0xff]
    %v142 = vld [vmem:[%s0 + $0x360] sm:$0xff]
    %v143 = vld [vmem:[%s0 + $0x368] sm:$0xff]
    %v144 = vld [vmem:[%s0 + $0x370] sm:$0xff]
    %v145 = vld [vmem:[%s0 + $0x378] sm:$0xff]
    %v146 = vld [vmem:[%s0 + $0x380] sm:$0xff]
    %v147 = vld [vmem:[%s0 + $0x388] sm:$0xff]
    %v148 = vld [vmem:[%s0 + $0x390] sm:$0xff]
    %v149 = vld [vmem:[%s0 + $0x398] sm:$0xff]
    %v150 = vld [vmem:[%s0 + $0x3a0] sm:$0xff]
    %v151 = vld [vmem:[%s0 + $0x3a8] sm:$0xff]
    %v152 = vld [vmem:[%s0 + $0x3b0] sm:$0xff]
    %v153 = vld [vmem:[%s0 + $0x3b8] sm:$0xff]
    %v154 = vld [vmem:[%s0 + $0x3c0] sm:$0xff]
    %v155 = vld [vmem:[%s0 + $0x3c8] sm:$0xff]
    %v156 = vld [vmem:[%s0 + $0x3d0] sm:$0xff]
    %v157 = vld [vmem:[%s0 + $0x3d8] sm:$0xff]
    %v158 = vld [vmem:[%s0 + $0x3e0] sm:$0xff]
    %v159 = vld [vmem:[%s0 + $0x3e8] sm:$0xff]
    %v160 = vld [vmem:[%s0 + $0x3f0] sm:$0xff]
    %v161 = vld [vmem:[%s0 + $0x3f8] sm:$0xff]
    %v162 = vld [vmem:[%s0 + $0x400] sm:$0xff]
    %v163 = vld [vmem:[%s0 + $0x408] sm:$0xff]
    %v164 = vld [vmem:[%s0 + $0x410] sm:$0xff]
    %v165 = vld [vmem:[%s0 + $0x418] sm:$0xff]
    %v166 = vld [vmem:[%s0 + $0x420] sm:$0xff]
    %v167 = vld [vmem:[%s0 + $0x428] sm:$0xff]
    %v168 = vld [vmem:[%s0 + $0x430] sm:$0xff]
    %v169 = vld [vmem:[%s0 + $0x438] sm:$0xff]
    %v170 = vld [vmem:[%s0 + $0x440] sm:$0xff]
    %v171 = vld [vmem:[%s0 + $0x448] sm:$0xff]
    %v172 = vld [vmem:[%s0 + $0x450] sm:$0xff]
    %v173 = vld [vmem:[%s0 + $0x458] sm:$0xff]
    %v174 = vld [vmem:[%s0 + $0x460] sm:$0xff]
    %v175 = vld [vmem:[%s0 + $0x468] sm:$0xff]
    %v176 = vld [vmem:[%s0 + $0x470] sm:$0xff]
    %v177 = vld [vmem:[%s0 + $0x478] sm:$0xff]
    %v178 = vld [vmem:[%s0 + $0x480] sm:$0xff]
    %v179 = vld [vmem:[%s0 + $0x488] sm:$0xff]
    %v180 = vld [vmem:[%s0 + $0x490] sm:$0xff]
    %v181 = vld [vmem:[%s0 + $0x498] sm:$0xff]
    %v182 = vld [vmem:[%s0 + $0x4a0] sm:$0xff]
    %v183 = vld [vmem:[%s0 + $0x4a8] sm:$0xff]
    %v184 = vld [vmem:[%s0 + $0x4b0] sm:$0xff]
    %v185 = vld [vmem:[%s0 + $0x4b8] sm:$0xff]
    %v186 = vld [vmem:[%s0 + $0x4c0] sm:$0xff]
    %v187 = vld [vmem:[%s0 + $0x4c8] sm:$0xff]
    %v188 = vld [vmem:[%s0 + $0x4d0] sm:$0xff]
    %v189 = vld [vmem:[%s0 + $0x4d8] sm:$0xff]
    %v190 = vld [vmem:[%s0 + $0x4e0] sm:$0xff]
    %v191 = vld [vmem:[%s0 + $0x4e8] sm:$0xff]
    %v192 = vld [vmem:[%s0 + $0x4f0] sm:$0xff]
    %v193 = vld [vmem:[%s0 + $0x4f8] sm:$0xff]
    %v194 = vld [vmem:[%s0 + $0x500] sm:$0xff]
    %v195 = vld [vmem:[%s0 + $0x508] sm:$0xff]
    %v196 = vld [vmem:[%s0 + $0x510] sm:$0xff]
    %v197 = vld [vmem:[%s0 + $0x518] sm:$0xff]
    %v198 = vld [vmem:[%s0 + $0x520] sm:$0xff]
    %v199 = vld [vmem:[%s0 + $0x528] sm:$0xff]
    %v200 = vld [vmem:[%s0 + $0x530] sm:$0xff]
    %v201 = vld [vmem:[%s0 + $0x538] sm:$0xff]
    %v202 = vld [vmem:[%s0 + $0x540] sm:$0xff]
    %v203 = vld [vmem:[%s0 + $0x548] sm:$0xff]
    %v204 = vld [vmem:[%s0 + $0x550] sm:$0xff]
    %v205 = vld [vmem:[%s0 + $0x558] sm:$0xff]
    %v206 = vld [vmem:[%s0 + $0x560] sm:$0xff]
    %v207 = vld [vmem:[%s0 + $0x568] sm:$0xff]
    %v208 = vld [vmem:[%s0 + $0x570] sm:$0xff]
    %v209 = vld [vmem:[%s0 + $0x578] sm:$0xff]
    %v210 = vld [vmem:[%s0 + $0x580] sm:$0xff]
    %v211 = vld [vmem:[%s0 + $0x588] sm:$0xff]
    %v212 = vld [vmem:[%s0 + $0x590] sm:$0xff]
    %v213 = vld [vmem:[%s0 + $0x598] sm:$0xff]
    %v214 = vld [vmem:[%s0 + $0x5a0] sm:$0xff]
    %v215 = vld [vmem:[%s0 + $0x5a8] sm:$0xff]
    %v216 = vld [vmem:[%s0 + $0x5b0] sm:$0xff]
    %v217 = vld [vmem:[%s0 + $0x5b8] sm:$0xff]
    %v218 = vld [vmem:[%s0 + $0x5c0] sm:$0xff]
    %v219 = vld [vmem:[%s0 + $0x5c8] sm:$0xff]
    %v220 = vld [vmem:[%s0 + $0x5d0] sm:$0xff]
    %v221 = vld [vmem:[%s0 + $0x5d8] sm:$0xff]
    %v222 = vld [vmem:[%s0 + $0x5e0] sm:$0xff]
    %v223 = vld [vmem:[%s0 + $0x5e8] sm:$0xff]
    %v224 = vld [vmem:[%s0 + $0x5f0] sm:$0xff]
    %v225 = vld [vmem:[%s0 + $0x5f8] sm:$0xff]
    %v226 = vld [vmem:[%s0 + $0x600] sm:$0xff]
    %v227 = vld [vmem:[%s0 + $0x608] sm:$0xff]
    %v228 = vld [vmem:[%s0 + $0x610] sm:$0xff]
    %v229 = vld [vmem:[%s0 + $0x618] sm:$0xff]
    %v230 = vld [vmem:[%s0 + $0x620] sm:$0xff]
    %v231 = vld [vmem:[%s0 + $0x628] sm:$0xff]
    %v232 = vld [vmem:[%s0 + $0x630] sm:$0xff]
    %v233 = vld [vmem:[%s0 + $0x638] sm:$0xff]
    %v234 = vld [vmem:[%s0 + $0x640] sm:$0xff]
    %v235 = vld [vmem:[%s0 + $0x648] sm:$0xff]
    %v236 = vld [vmem:[%s0 + $0x650] sm:$0xff]
    %v237 = vld [vmem:[%s0 + $0x658] sm:$0xff]
    %v238 = vld [vmem:[%s0 + $0x660] sm:$0xff]
    %v239 = vld [vmem:[%s0 + $0x668] sm:$0xff]
    %v240 = vld [vmem:[%s0 + $0x670] sm:$0xff]
    %v241 = vld [vmem:[%s0 + $0x678] sm:$0xff]
    %v242 = vld [vmem:[%s0 + $0x680] sm:$0xff]
    %v243 = vld [vmem:[%s0 + $0x688] sm:$0xff]
    %v244 = vld [vmem:[%s0 + $0x690] sm:$0xff]
    %v245 = vld [vmem:[%s0 + $0x698] sm:$0xff]
    %v246 = vld [vmem:[%s0 + $0x6a0] sm:$0xff]
    %v247 = vld [vmem:[%s0 + $0x6a8] sm:$0xff]
    %v248 = vld [vmem:[%s0 + $0x6b0] sm:$0xff]
    %v249 = vld [vmem:[%s0 + $0x6b8] sm:$0xff]
    %v250 = vld [vmem:[%s4] sm:$0x3f]
    %v251 = vld [vmem:[%s1] sm:$0xff]
    %v252 = vld [vmem:[%s1 + $0x8] sm:$0xff]
    %v253 = vld [vmem:[%s1 + $0x10] sm:$0xff]
    %v254 = vld [vmem:[%s1 + $0x18] sm:$0xff]
    %v255 = vld [vmem:[%s1 + $0x20] sm:$0xff]
    %v256 = vld [vmem:[%s1 + $0x28] sm:$0xff]
    %v257 = vld [vmem:[%s1 + $0x30] sm:$0xff]
    %v258 = vld [vmem:[%s1 + $0x38] sm:$0xff]
    %v259 = vld [vmem:[%s1 + $0x40] sm:$0xff]
    %v260 = vld [vmem:[%s1 + $0x48] sm:$0xff]
    %v261 = vld [vmem:[%s1 + $0x50] sm:$0xff]
    %v262 = vld [vmem:[%s1 + $0x58] sm:$0xff]
    %v263 = vld [vmem:[%s1 + $0x60] sm:$0xff]
    %v264 = vld [vmem:[%s1 + $0x68] sm:$0xff]
    %v265 = vld [vmem:[%s1 + $0x70] sm:$0xff]
    %v266 = vld [vmem:[%s1 + $0x78] sm:$0xff]
    %v267 = vld [vmem:[%s1 + $0x80] sm:$0xff]
    %v268 = vld [vmem:[%s1 + $0x88] sm:$0xff]
    %v269 = vld [vmem:[%s1 + $0x90] sm:$0xff]
    %v270 = vld [vmem:[%s1 + $0x98] sm:$0xff]
    %v271 = vld [vmem:[%s1 + $0xa0] sm:$0xff]
    %v272 = vld [vmem:[%s1 + $0xa8] sm:$0xff]
    %v273 = vld [vmem:[%s1 + $0xb0] sm:$0xff]
    %v274 = vld [vmem:[%s1 + $0xb8] sm:$0xff]
    %v275 = vld [vmem:[%s1 + $0xc0] sm:$0xff]
    %v276 = vld [vmem:[%s1 + $0xc8] sm:$0xff]
    %v277 = vld [vmem:[%s1 + $0xd0] sm:$0xff]
    %v278 = vld [vmem:[%s1 + $0xd8] sm:$0xff]
    %v279 = vld [vmem:[%s1 + $0xe0] sm:$0xff]
    %v280 = vld [vmem:[%s1 + $0xe8] sm:$0xff]
    %v281 = vld [vmem:[%s1 + $0xf0] sm:$0xff]
    %v282 = vld [vmem:[%s1 + $0xf8] sm:$0xff]
    %v283 = vld [vmem:[%s1 + $0x100] sm:$0xff]
    %v284 = vld [vmem:[%s1 + $0x108] sm:$0xff]
    %v285 = vld [vmem:[%s1 + $0x110] sm:$0xff]
    %v286 = vld [vmem:[%s1 + $0x118] sm:$0xff]
    %v287 = vld [vmem:[%s1 + $0x120] sm:$0xff]
    %v288 = vld [vmem:[%s1 + $0x128] sm:$0xff]
    %v289 = vld [vmem:[%s1 + $0x130] sm:$0xff]
    %v290 = vld [vmem:[%s1 + $0x138] sm:$0xff]
    %v291 = vld [vmem:[%s1 + $0x140] sm:$0xff]
    %v292 = vld [vmem:[%s1 + $0x148] sm:$0xff]
    %v293 = vld [vmem:[%s1 + $0x150] sm:$0xff]
    %v294 = vld [vmem:[%s1 + $0x158] sm:$0xff]
    %v295 = vld [vmem:[%s1 + $0x160] sm:$0xff]
    %v296 = vld [vmem:[%s1 + $0x168] sm:$0xff]
    %v297 = vld [vmem:[%s1 + $0x170] sm:$0xff]
    %v298 = vld [vmem:[%s1 + $0x178] sm:$0xff]
    %v299 = vld [vmem:[%s1 + $0x180] sm:$0xff]
    %v300 = vld [vmem:[%s1 + $0x188] sm:$0xff]
    %v301 = vld [vmem:[%s1 + $0x190] sm:$0xff]
    %v302 = vld [vmem:[%s1 + $0x198] sm:$0xff]
    %v303 = vld [vmem:[%s1 + $0x1a0] sm:$0xff]
    %v304 = vld [vmem:[%s1 + $0x1a8] sm:$0xff]
    %v305 = vld [vmem:[%s1 + $0x1b0] sm:$0xff]
    %v306 = vld [vmem:[%s1 + $0x1b8] sm:$0xff]
    %v307 = vld [vmem:[%s1 + $0x1c0] sm:$0xff]
    %v308 = vld [vmem:[%s1 + $0x1c8] sm:$0xff]
    %v309 = vld [vmem:[%s1 + $0x1d0] sm:$0xff]
    %v310 = vld [vmem:[%s1 + $0x1d8] sm:$0xff]
    %v311 = vld [vmem:[%s1 + $0x1e0] sm:$0xff]
    %v312 = vld [vmem:[%s1 + $0x1e8] sm:$0xff]
    %v313 = vld [vmem:[%s1 + $0x1f0] sm:$0xff]
    %v314 = vld [vmem:[%s1 + $0x1f8] sm:$0xff]
    %v315 = vld [vmem:[%s1 + $0x200] sm:$0xff]
    %v316 = vld [vmem:[%s1 + $0x208] sm:$0xff]
    %v317 = vld [vmem:[%s1 + $0x210] sm:$0xff]
    %v318 = vld [vmem:[%s1 + $0x218] sm:$0xff]
    %v319 = vld [vmem:[%s1 + $0x220] sm:$0xff]
    %v320 = vld [vmem:[%s1 + $0x228] sm:$0xff]
    %v321 = vld [vmem:[%s1 + $0x230] sm:$0xff]
    %v322 = vld [vmem:[%s1 + $0x238] sm:$0xff]
    %v323 = vld [vmem:[%s1 + $0x240] sm:$0xff]
    %v324 = vld [vmem:[%s1 + $0x248] sm:$0xff]
    %v325 = vld [vmem:[%s1 + $0x250] sm:$0xff]
    %v326 = vld [vmem:[%s1 + $0x258] sm:$0xff]
    %v327 = vld [vmem:[%s1 + $0x260] sm:$0xff]
    %v328 = vld [vmem:[%s1 + $0x268] sm:$0xff]
    %v329 = vld [vmem:[%s1 + $0x270] sm:$0xff]
    %v330 = vld [vmem:[%s1 + $0x278] sm:$0xff]
    %v331 = vld [vmem:[%s1 + $0x280] sm:$0xff]
    %v332 = vld [vmem:[%s1 + $0x288] sm:$0xff]
    %v333 = vld [vmem:[%s1 + $0x290] sm:$0xff]
    %v334 = vld [vmem:[%s1 + $0x298] sm:$0xff]
    %v335 = vld [vmem:[%s1 + $0x2a0] sm:$0xff]
    %v336 = vld [vmem:[%s1 + $0x2a8] sm:$0xff]
    %v337 = vld [vmem:[%s1 + $0x2b0] sm:$0xff]
    %v338 = vld [vmem:[%s1 + $0x2b8] sm:$0xff]
    %v339 = vld [vmem:[%s1 + $0x2c0] sm:$0xff]
    %v340 = vld [vmem:[%s1 + $0x2c8] sm:$0xff]
    %v341 = vld [vmem:[%s1 + $0x2d0] sm:$0xff]
    %v342 = vld [vmem:[%s1 + $0x2d8] sm:$0xff]
    %v343 = vld [vmem:[%s1 + $0x2e0] sm:$0xff]
    %v344 = vld [vmem:[%s1 + $0x2e8] sm:$0xff]
    %v345 = vld [vmem:[%s1 + $0x2f0] sm:$0xff]
    %v346 = vld [vmem:[%s1 + $0x2f8] sm:$0xff]
    %348 = vst [vmem:[#allocation1] ss:$9 sm:$0xff] %v250
    %v349 = vld [vmem:[#allocation1] sm:$0xff]
    %v350 = vld [vmem:[#allocation1 + $0x9] sm:$0xff]
    %v351 = vld [vmem:[#allocation1 + $0x12] sm:$0xff]
    %v352 = vld [vmem:[#allocation1 + $0x1b] sm:$0xff]
    %v353 = vld [vmem:[#allocation1 + $0x24] sm:$0xff]
    %v354 = vld [vmem:[#allocation1 + $0x2d] sm:$0xff]
    %v457 = vunpack.c.l.b16 %v251
    %v458 = vunpack.c.h.b16 %v251
    %v459 = vunpack.c.l.b16 %v252
    %v460 = vunpack.c.h.b16 %v252
    %v461 = vunpack.c.l.b16 %v253
    %v462 = vunpack.c.h.b16 %v253
    %v463 = vunpack.c.l.b16 %v254
    %v464 = vunpack.c.h.b16 %v254
    %v465 = vunpack.c.l.b16 %v255
    %v466 = vunpack.c.h.b16 %v255
    %v467 = vunpack.c.l.b16 %v256
    %v468 = vunpack.c.h.b16 %v256
    %v469 = vunpack.c.l.b16 %v257
    %v470 = vunpack.c.h.b16 %v257
    %v471 = vunpack.c.l.b16 %v258
    %v472 = vunpack.c.h.b16 %v258
    %v473 = vunpack.c.l.b16 %v259
    %v474 = vunpack.c.h.b16 %v259
    %v475 = vunpack.c.l.b16 %v260
    %v476 = vunpack.c.h.b16 %v260
    %v477 = vunpack.c.l.b16 %v261
    %v478 = vunpack.c.h.b16 %v261
    %v479 = vunpack.c.l.b16 %v262
    %v480 = vunpack.c.h.b16 %v262
    %v481 = vunpack.c.l.b16 %v263
    %v482 = vunpack.c.h.b16 %v263
    %v483 = vunpack.c.l.b16 %v264
    %v484 = vunpack.c.h.b16 %v264
    %v485 = vunpack.c.l.b16 %v265
    %v486 = vunpack.c.h.b16 %v265
    %v487 = vunpack.c.l.b16 %v266
    %v488 = vunpack.c.h.b16 %v266
    %v489 = vunpack.c.l.b16 %v267
    %v490 = vunpack.c.h.b16 %v267
    %v491 = vunpack.c.l.b16 %v268
    %v492 = vunpack.c.h.b16 %v268
    %v493 = vunpack.c.l.b16 %v269
    %v494 = vunpack.c.h.b16 %v269
    %v495 = vunpack.c.l.b16 %v270
    %v496 = vunpack.c.h.b16 %v270
    %v497 = vunpack.c.l.b16 %v271
    %v498 = vunpack.c.h.b16 %v271
    %v499 = vunpack.c.l.b16 %v272
    %v500 = vunpack.c.h.b16 %v272
    %v501 = vunpack.c.l.b16 %v273
    %v502 = vunpack.c.h.b16 %v273
    %v503 = vunpack.c.l.b16 %v274
    %v504 = vunpack.c.h.b16 %v274
    %v505 = vunpack.c.l.b16 %v275
    %v506 = vunpack.c.h.b16 %v275
    %v507 = vunpack.c.l.b16 %v276
    %v508 = vunpack.c.h.b16 %v276
    %v509 = vunpack.c.l.b16 %v277
    %v510 = vunpack.c.h.b16 %v277
    %v511 = vunpack.c.l.b16 %v278
    %v512 = vunpack.c.h.b16 %v278
    %v513 = vunpack.c.l.b16 %v279
    %v514 = vunpack.c.h.b16 %v279
    %v515 = vunpack.c.l.b16 %v280
    %v516 = vunpack.c.h.b16 %v280
    %v517 = vunpack.c.l.b16 %v281
    %v518 = vunpack.c.h.b16 %v281
    %v519 = vunpack.c.l.b16 %v282
    %v520 = vunpack.c.h.b16 %v282
    %v521 = vunpack.c.l.b16 %v283
    %v522 = vunpack.c.h.b16 %v283
    %v523 = vunpack.c.l.b16 %v284
    %v524 = vunpack.c.h.b16 %v284
    %v525 = vunpack.c.l.b16 %v285
    %v526 = vunpack.c.h.b16 %v285
    %v527 = vunpack.c.l.b16 %v286
    %v528 = vunpack.c.h.b16 %v286
    %v529 = vunpack.c.l.b16 %v287
    %v530 = vunpack.c.h.b16 %v287
    %v531 = vunpack.c.l.b16 %v288
    %v532 = vunpack.c.h.b16 %v288
    %v533 = vunpack.c.l.b16 %v289
    %v534 = vunpack.c.h.b16 %v289
    %v535 = vunpack.c.l.b16 %v290
    %v536 = vunpack.c.h.b16 %v290
    %v537 = vunpack.c.l.b16 %v291
    %v538 = vunpack.c.h.b16 %v291
    %v539 = vunpack.c.l.b16 %v292
    %v540 = vunpack.c.h.b16 %v292
    %v541 = vunpack.c.l.b16 %v293
    %v542 = vunpack.c.h.b16 %v293
    %v543 = vunpack.c.l.b16 %v294
    %v544 = vunpack.c.h.b16 %v294
    %v545 = vunpack.c.l.b16 %v295
    %v546 = vunpack.c.h.b16 %v295
    %v547 = vunpack.c.l.b16 %v296
    %v548 = vunpack.c.h.b16 %v296
    %v549 = vunpack.c.l.b16 %v297
    %v550 = vunpack.c.h.b16 %v297
    %v551 = vunpack.c.l.b16 %v298
    %v552 = vunpack.c.h.b16 %v298
    %v553 = vunpack.c.l.b16 %v299
    %v554 = vunpack.c.h.b16 %v299
    %v555 = vunpack.c.l.b16 %v300
    %v556 = vunpack.c.h.b16 %v300
    %v557 = vunpack.c.l.b16 %v301
    %v558 = vunpack.c.h.b16 %v301
    %v559 = vunpack.c.l.b16 %v302
    %v560 = vunpack.c.h.b16 %v302
    %v561 = vunpack.c.l.b16 %v303
    %v562 = vunpack.c.h.b16 %v303
    %v563 = vunpack.c.l.b16 %v304
    %v564 = vunpack.c.h.b16 %v304
    %v565 = vunpack.c.l.b16 %v305
    %v566 = vunpack.c.h.b16 %v305
    %v567 = vunpack.c.l.b16 %v306
    %v568 = vunpack.c.h.b16 %v306
    %v569 = vunpack.c.l.b16 %v307
    %v570 = vunpack.c.h.b16 %v307
    %v571 = vunpack.c.l.b16 %v308
    %v572 = vunpack.c.h.b16 %v308
    %v573 = vunpack.c.l.b16 %v309
    %v574 = vunpack.c.h.b16 %v309
    %v575 = vunpack.c.l.b16 %v310
    %v576 = vunpack.c.h.b16 %v310
    %v577 = vunpack.c.l.b16 %v311
    %v578 = vunpack.c.h.b16 %v311
    %v579 = vunpack.c.l.b16 %v312
    %v580 = vunpack.c.h.b16 %v312
    %v581 = vunpack.c.l.b16 %v313
    %v582 = vunpack.c.h.b16 %v313
    %v583 = vunpack.c.l.b16 %v314
    %v584 = vunpack.c.h.b16 %v314
    %v585 = vunpack.c.l.b16 %v315
    %v586 = vunpack.c.h.b16 %v315
    %v587 = vunpack.c.l.b16 %v316
    %v588 = vunpack.c.h.b16 %v316
    %v589 = vunpack.c.l.b16 %v317
    %v590 = vunpack.c.h.b16 %v317
    %v591 = vunpack.c.l.b16 %v318
    %v592 = vunpack.c.h.b16 %v318
    %v593 = vunpack.c.l.b16 %v319
    %v594 = vunpack.c.h.b16 %v319
    %v595 = vunpack.c.l.b16 %v320
    %v596 = vunpack.c.h.b16 %v320
    %v597 = vunpack.c.l.b16 %v321
    %v598 = vunpack.c.h.b16 %v321
    %v599 = vunpack.c.l.b16 %v322
    %v600 = vunpack.c.h.b16 %v322
    %v601 = vunpack.c.l.b16 %v323
    %v602 = vunpack.c.h.b16 %v323
    %v603 = vunpack.c.l.b16 %v324
    %v604 = vunpack.c.h.b16 %v324
    %v605 = vunpack.c.l.b16 %v325
    %v606 = vunpack.c.h.b16 %v325
    %v607 = vunpack.c.l.b16 %v326
    %v608 = vunpack.c.h.b16 %v326
    %v609 = vunpack.c.l.b16 %v327
    %v610 = vunpack.c.h.b16 %v327
    %v611 = vunpack.c.l.b16 %v328
    %v612 = vunpack.c.h.b16 %v328
    %v613 = vunpack.c.l.b16 %v329
    %v614 = vunpack.c.h.b16 %v329
    %v615 = vunpack.c.l.b16 %v330
    %v616 = vunpack.c.h.b16 %v330
    %v617 = vunpack.c.l.b16 %v331
    %v618 = vunpack.c.h.b16 %v331
    %v619 = vunpack.c.l.b16 %v332
    %v620 = vunpack.c.h.b16 %v332
    %v621 = vunpack.c.l.b16 %v333
    %v622 = vunpack.c.h.b16 %v333
    %v623 = vunpack.c.l.b16 %v334
    %v624 = vunpack.c.h.b16 %v334
    %v625 = vunpack.c.l.b16 %v335
    %v626 = vunpack.c.h.b16 %v335
    %v627 = vunpack.c.l.b16 %v336
    %v628 = vunpack.c.h.b16 %v336
    %v629 = vunpack.c.l.b16 %v337
    %v630 = vunpack.c.h.b16 %v337
    %v631 = vunpack.c.l.b16 %v338
    %v632 = vunpack.c.h.b16 %v338
    %v633 = vunpack.c.l.b16 %v339
    %v634 = vunpack.c.h.b16 %v339
    %v635 = vunpack.c.l.b16 %v340
    %v636 = vunpack.c.h.b16 %v340
    %v637 = vunpack.c.l.b16 %v341
    %v638 = vunpack.c.h.b16 %v341
    %v639 = vunpack.c.l.b16 %v342
    %v640 = vunpack.c.h.b16 %v342
    %v641 = vunpack.c.l.b16 %v343
    %v642 = vunpack.c.h.b16 %v343
    %v643 = vunpack.c.l.b16 %v344
    %v644 = vunpack.c.h.b16 %v344
    %v645 = vunpack.c.l.b16 %v345
    %v646 = vunpack.c.h.b16 %v345
    %v647 = vunpack.c.l.b16 %v346
    %v648 = vunpack.c.h.b16 %v346
    %v649 = vpack.c.b16 %v459, %v457
    %v650 = vpack.c.b16 %v460, %v458
    %v651 = vpack.c.b16 %v463, %v461
    %v652 = vpack.c.b16 %v464, %v462
    %v653 = vpack.c.b16 %v467, %v465
    %v654 = vpack.c.b16 %v468, %v466
    %v655 = vpack.c.b16 %v471, %v469
    %v656 = vpack.c.b16 %v472, %v470
    %v657 = vpack.c.b16 %v475, %v473
    %v658 = vpack.c.b16 %v476, %v474
    %v659 = vpack.c.b16 %v479, %v477
    %v660 = vpack.c.b16 %v480, %v478
    %v661 = vpack.c.b16 %v483, %v481
    %v662 = vpack.c.b16 %v484, %v482
    %v663 = vpack.c.b16 %v487, %v485
    %v664 = vpack.c.b16 %v488, %v486
    %v665 = vpack.c.b16 %v491, %v489
    %v666 = vpack.c.b16 %v492, %v490
    %v667 = vpack.c.b16 %v495, %v493
    %v668 = vpack.c.b16 %v496, %v494
    %v669 = vpack.c.b16 %v499, %v497
    %v670 = vpack.c.b16 %v500, %v498
    %v671 = vpack.c.b16 %v503, %v501
    %v672 = vpack.c.b16 %v504, %v502
    %v673 = vpack.c.b16 %v507, %v505
    %v674 = vpack.c.b16 %v508, %v506
    %v675 = vpack.c.b16 %v511, %v509
    %v676 = vpack.c.b16 %v512, %v510
    %v677 = vpack.c.b16 %v515, %v513
    %v678 = vpack.c.b16 %v516, %v514
    %v679 = vpack.c.b16 %v519, %v517
    %v680 = vpack.c.b16 %v520, %v518
    %v681 = vpack.c.b16 %v523, %v521
    %v682 = vpack.c.b16 %v524, %v522
    %v683 = vpack.c.b16 %v527, %v525
    %v684 = vpack.c.b16 %v528, %v526
    %v685 = vpack.c.b16 %v531, %v529
    %v686 = vpack.c.b16 %v532, %v530
    %v687 = vpack.c.b16 %v535, %v533
    %v688 = vpack.c.b16 %v536, %v534
    %v689 = vpack.c.b16 %v539, %v537
    %v690 = vpack.c.b16 %v540, %v538
    %v691 = vpack.c.b16 %v543, %v541
    %v692 = vpack.c.b16 %v544, %v542
    %v693 = vpack.c.b16 %v547, %v545
    %v694 = vpack.c.b16 %v548, %v546
    %v695 = vpack.c.b16 %v551, %v549
    %v696 = vpack.c.b16 %v552, %v550
    %v697 = vpack.c.b16 %v555, %v553
    %v698 = vpack.c.b16 %v556, %v554
    %v699 = vpack.c.b16 %v559, %v557
    %v700 = vpack.c.b16 %v560, %v558
    %v701 = vpack.c.b16 %v563, %v561
    %v702 = vpack.c.b16 %v564, %v562
    %v703 = vpack.c.b16 %v567, %v565
    %v704 = vpack.c.b16 %v568, %v566
    %v705 = vpack.c.b16 %v571, %v569
    %v706 = vpack.c.b16 %v572, %v570
    %v707 = vpack.c.b16 %v575, %v573
    %v708 = vpack.c.b16 %v576, %v574
    %v709 = vpack.c.b16 %v579, %v577
    %v710 = vpack.c.b16 %v580, %v578
    %v711 = vpack.c.b16 %v583, %v581
    %v712 = vpack.c.b16 %v584, %v582
    %v713 = vpack.c.b16 %v587, %v585
    %v714 = vpack.c.b16 %v588, %v586
    %v715 = vpack.c.b16 %v591, %v589
    %v716 = vpack.c.b16 %v592, %v590
    %v717 = vpack.c.b16 %v595, %v593
    %v718 = vpack.c.b16 %v596, %v594
    %v719 = vpack.c.b16 %v599, %v597
    %v720 = vpack.c.b16 %v600, %v598
    %v721 = vpack.c.b16 %v603, %v601
    %v722 = vpack.c.b16 %v604, %v602
    %v723 = vpack.c.b16 %v607, %v605
    %v724 = vpack.c.b16 %v608, %v606
    %v725 = vpack.c.b16 %v611, %v609
    %v726 = vpack.c.b16 %v612, %v610
    %v727 = vpack.c.b16 %v615, %v613
    %v728 = vpack.c.b16 %v616, %v614
    %v729 = vpack.c.b16 %v619, %v617
    %v730 = vpack.c.b16 %v620, %v618
    %v731 = vpack.c.b16 %v623, %v621
    %v732 = vpack.c.b16 %v624, %v622
    %v733 = vpack.c.b16 %v627, %v625
    %v734 = vpack.c.b16 %v628, %v626
    %v735 = vpack.c.b16 %v631, %v629
    %v736 = vpack.c.b16 %v632, %v630
    %v737 = vpack.c.b16 %v635, %v633
    %v738 = vpack.c.b16 %v636, %v634
    %v739 = vpack.c.b16 %v639, %v637
    %v740 = vpack.c.b16 %v640, %v638
    %v741 = vpack.c.b16 %v643, %v641
    %v742 = vpack.c.b16 %v644, %v642
    %v743 = vpack.c.b16 %v647, %v645
    %v744 = vpack.c.b16 %v648, %v646
    %841 = vmatpush.bf16.msra.mxu0 %v663
    %842 = vmatpush.bf16.msra.mxu0 %v661
    %843 = vmatpush.bf16.msra.mxu0 %v659
    %844 = vmatpush.bf16.msra.mxu0 %v657
    %845 = vmatpush.bf16.msra.mxu0 %v655
    %846 = vmatpush.bf16.msra.mxu0 %v653
    %847 = vmatpush.bf16.msra.mxu0 %v651
    %848 = vmatpush.bf16.msra.mxu0 %v649
    %849 = vmatmul.bf16.gmra.mxu0 %v349
    %v850 = vpop.f32.mrf.mxu0
    %v851 = vadd.f32 0.0, %v850
    %v852 = vpop.f32.mrf.mxu0
    %853 = vdwg.mxu0
    %854 = vmatpush.bf16.msra.mxu0 %v679
    %855 = vmatpush.bf16.msra.mxu0 %v677
    %856 = vmatpush.bf16.msra.mxu0 %v675
    %857 = vmatpush.bf16.msra.mxu0 %v673
    %858 = vmatpush.bf16.msra.mxu0 %v671
    %859 = vmatpush.bf16.msra.mxu0 %v669
    %860 = vmatpush.bf16.msra.mxu0 %v667
    %861 = vmatpush.bf16.msra.mxu0 %v665
    %862 = vmatmul.bf16.gmra.mxu0 %v350
    %v863 = vpop.f32.mrf.mxu0
    %v864 = vadd.f32 %v851, %v863
    %v865 = vpop.f32.mrf.mxu0
    %866 = vdwg.mxu0
    %867 = vmatpush.bf16.msra.mxu0 %v695
    %868 = vmatpush.bf16.msra.mxu0 %v693
    %869 = vmatpush.bf16.msra.mxu0 %v691
    %870 = vmatpush.bf16.msra.mxu0 %v689
    %871 = vmatpush.bf16.msra.mxu0 %v687
    %872 = vmatpush.bf16.msra.mxu0 %v685
    %873 = vmatpush.bf16.msra.mxu0 %v683
    %874 = vmatpush.bf16.msra.mxu0 %v681
    %875 = vmatmul.bf16.gmra.mxu0 %v351
    %v876 = vpop.f32.mrf.mxu0
    %v877 = vadd.f32 %v864, %v876
    %v878 = vpop.f32.mrf.mxu0
    %879 = vdwg.mxu0
    %880 = vmatpush.bf16.msra.mxu0 %v711
    %881 = vmatpush.bf16.msra.mxu0 %v709
    %882 = vmatpush.bf16.msra.mxu0 %v707
    %883 = vmatpush.bf16.msra.mxu0 %v705
    %884 = vmatpush.bf16.msra.mxu0 %v703
    %885 = vmatpush.bf16.msra.mxu0 %v701
    %886 = vmatpush.bf16.msra.mxu0 %v699
    %887 = vmatpush.bf16.msra.mxu0 %v697
    %888 = vmatmul.bf16.gmra.mxu0 %v352
    %v889 = vpop.f32.mrf.mxu0
    %v890 = vadd.f32 %v877, %v889
    %v891 = vpop.f32.mrf.mxu0
    %892 = vdwg.mxu0
    %893 = vmatpush.bf16.msra.mxu0 %v727
    %894 = vmatpush.bf16.msra.mxu0 %v725
    %895 = vmatpush.bf16.msra.mxu0 %v723
    %896 = vmatpush.bf16.msra.mxu0 %v721
    %897 = vmatpush.bf16.msra.mxu0 %v719
    %898 = vmatpush.bf16.msra.mxu0 %v717
    %899 = vmatpush.bf16.msra.mxu0 %v715
    %900 = vmatpush.bf16.msra.mxu0 %v713
    %901 = vmatmul.bf16.gmra.mxu0 %v353
    %v902 = vpop.f32.mrf.mxu0
    %v903 = vadd.f32 %v890, %v902
    %v904 = vpop.f32.mrf.mxu0
    %905 = vdwg.mxu0
    %906 = vmatpush.bf16.msra.mxu0 %v743
    %907 = vmatpush.bf16.msra.mxu0 %v741
    %908 = vmatpush.bf16.msra.mxu0 %v739
    %909 = vmatpush.bf16.msra.mxu0 %v737
    %910 = vmatpush.bf16.msra.mxu0 %v735
    %911 = vmatpush.bf16.msra.mxu0 %v733
    %912 = vmatpush.bf16.msra.mxu0 %v731
    %913 = vmatpush.bf16.msra.mxu0 %v729
    %914 = vmatmul.bf16.gmra.mxu0 %v354
    %v915 = vpop.f32.mrf.mxu0
    %v916 = vadd.f32 %v903, %v915
    %v917 = vpop.f32.mrf.mxu0
    %918 = vdwg.mxu0
    %919 = vmatpush.bf16.msra.mxu0 %v664
    %920 = vmatpush.bf16.msra.mxu0 %v662
    %921 = vmatpush.bf16.msra.mxu0 %v660
    %922 = vmatpush.bf16.msra.mxu0 %v658
    %923 = vmatpush.bf16.msra.mxu0 %v656
    %924 = vmatpush.bf16.msra.mxu0 %v654
    %925 = vmatpush.bf16.msra.mxu0 %v652
    %926 = vmatpush.bf16.msra.mxu0 %v650
    %927 = vmatmul.bf16.gmra.mxu0 %v349
    %v928 = vpop.f32.mrf.mxu0
    %v929 = vadd.f32 0.0, %v928
    %v930 = vpop.f32.mrf.mxu0
    %931 = vdwg.mxu0
    %932 = vmatpush.bf16.msra.mxu0 %v680
    %933 = vmatpush.bf16.msra.mxu0 %v678
    %934 = vmatpush.bf16.msra.mxu0 %v676
    %935 = vmatpush.bf16.msra.mxu0 %v674
    %936 = vmatpush.bf16.msra.mxu0 %v672
    %937 = vmatpush.bf16.msra.mxu0 %v670
    %938 = vmatpush.bf16.msra.mxu0 %v668
    %939 = vmatpush.bf16.msra.mxu0 %v666
    %940 = vmatmul.bf16.gmra.mxu0 %v350
    %v941 = vpop.f32.mrf.mxu0
    %v942 = vadd.f32 %v929, %v941
    %v943 = vpop.f32.mrf.mxu0
    %944 = vdwg.mxu0
    %945 = vmatpush.bf16.msra.mxu0 %v696
    %946 = vmatpush.bf16.msra.mxu0 %v694
    %947 = vmatpush.bf16.msra.mxu0 %v692
    %948 = vmatpush.bf16.msra.mxu0 %v690
    %949 = vmatpush.bf16.msra.mxu0 %v688
    %950 = vmatpush.bf16.msra.mxu0 %v686
    %951 = vmatpush.bf16.msra.mxu0 %v684
    %952 = vmatpush.bf16.msra.mxu0 %v682
    %953 = vmatmul.bf16.gmra.mxu0 %v351
    %v954 = vpop.f32.mrf.mxu0
    %v955 = vadd.f32 %v942, %v954
    %v956 = vpop.f32.mrf.mxu0
    %957 = vdwg.mxu0
    %958 = vmatpush.bf16.msra.mxu0 %v712
    %959 = vmatpush.bf16.msra.mxu0 %v710
    %960 = vmatpush.bf16.msra.mxu0 %v708
    %961 = vmatpush.bf16.msra.mxu0 %v706
    %962 = vmatpush.bf16.msra.mxu0 %v704
    %963 = vmatpush.bf16.msra.mxu0 %v702
    %964 = vmatpush.bf16.msra.mxu0 %v700
    %965 = vmatpush.bf16.msra.mxu0 %v698
    %966 = vmatmul.bf16.gmra.mxu0 %v352
    %v967 = vpop.f32.mrf.mxu0
    %v968 = vadd.f32 %v955, %v967
    %v969 = vpop.f32.mrf.mxu0
    %970 = vdwg.mxu0
    %971 = vmatpush.bf16.msra.mxu0 %v728
    %972 = vmatpush.bf16.msra.mxu0 %v726
    %973 = vmatpush.bf16.msra.mxu0 %v724
    %974 = vmatpush.bf16.msra.mxu0 %v722
    %975 = vmatpush.bf16.msra.mxu0 %v720
    %976 = vmatpush.bf16.msra.mxu0 %v718
    %977 = vmatpush.bf16.msra.mxu0 %v716
    %978 = vmatpush.bf16.msra.mxu0 %v714
    %979 = vmatmul.bf16.gmra.mxu0 %v353
    %v980 = vpop.f32.mrf.mxu0
    %v981 = vadd.f32 %v968, %v980
    %v982 = vpop.f32.mrf.mxu0
    %983 = vdwg.mxu0
    %984 = vmatpush.bf16.msra.mxu0 %v744
    %985 = vmatpush.bf16.msra.mxu0 %v742
    %986 = vmatpush.bf16.msra.mxu0 %v740
    %987 = vmatpush.bf16.msra.mxu0 %v738
    %988 = vmatpush.bf16.msra.mxu0 %v736
    %989 = vmatpush.bf16.msra.mxu0 %v734
    %990 = vmatpush.bf16.msra.mxu0 %v732
    %991 = vmatpush.bf16.msra.mxu0 %v730
    %992 = vmatmul.bf16.gmra.mxu0 %v354
    %v993 = vpop.f32.mrf.mxu0
    %v994 = vadd.f32 %v981, %v993
    %v995 = vpop.f32.mrf.mxu0
    %996 = vdwg.mxu0
    %998 = vst [vmem:[#allocation1] ss:$9 sm:$0xff] %v32
    %v999 = vld [vmem:[#allocation1] sm:$0xff]
    %v1000 = vld [vmem:[#allocation1 + $0x9] sm:$0xff]
    %v1001 = vld [vmem:[#allocation1 + $0x12] sm:$0xff]
    %v1002 = vld [vmem:[#allocation1 + $0x1b] sm:$0xff]
    %v1003 = vld [vmem:[#allocation1 + $0x24] sm:$0xff]
    %v1004 = vld [vmem:[#allocation1 + $0x2d] sm:$0xff]
    %v1005 = vld [vmem:[#allocation1 + $0x36] sm:$0xff]
    %v1006 = vld [vmem:[#allocation1 + $0x3f] sm:$0xff]
    %1008 = vst [vmem:[#allocation1] ss:$9 sm:$0xff] %v33
    %v1009 = vld [vmem:[#allocation1] sm:$0xff]
    %v1010 = vld [vmem:[#allocation1 + $0x9] sm:$0xff]
    %v1011 = vld [vmem:[#allocation1 + $0x12] sm:$0xff]
    %v1012 = vld [vmem:[#allocation1 + $0x1b] sm:$0xff]
    %v1013 = vld [vmem:[#allocation1 + $0x24] sm:$0xff]
    %v1014 = vld [vmem:[#allocation1 + $0x2d] sm:$0xff]
    %v1244 = vunpack.c.l.b16 %v34
    %v1245 = vunpack.c.h.b16 %v34
    %v1246 = vunpack.c.l.b16 %v35
    %v1247 = vunpack.c.h.b16 %v35
    %v1248 = vunpack.c.l.b16 %v36
    %v1249 = vunpack.c.h.b16 %v36
    %v1250 = vunpack.c.l.b16 %v37
    %v1251 = vunpack.c.h.b16 %v37
    %v1252 = vunpack.c.l.b16 %v38
    %v1253 = vunpack.c.h.b16 %v38
    %v1254 = vunpack.c.l.b16 %v39
    %v1255 = vunpack.c.h.b16 %v39
    %v1256 = vunpack.c.l.b16 %v40
    %v1257 = vunpack.c.h.b16 %v40
    %v1258 = vunpack.c.l.b16 %v41
    %v1259 = vunpack.c.h.b16 %v41
    %v1260 = vunpack.c.l.b16 %v42
    %v1261 = vunpack.c.h.b16 %v42
    %v1262 = vunpack.c.l.b16 %v43
    %v1263 = vunpack.c.h.b16 %v43
    %v1264 = vunpack.c.l.b16 %v44
    %v1265 = vunpack.c.h.b16 %v44
    %v1266 = vunpack.c.l.b16 %v45
    %v1267 = vunpack.c.h.b16 %v45
    %v1268 = vunpack.c.l.b16 %v46
    %v1269 = vunpack.c.h.b16 %v46
    %v1270 = vunpack.c.l.b16 %v47
    %v1271 = vunpack.c.h.b16 %v47
    %v1272 = vunpack.c.l.b16 %v48
    %v1273 = vunpack.c.h.b16 %v48
    %v1274 = vunpack.c.l.b16 %v49
    %v1275 = vunpack.c.h.b16 %v49
    %v1276 = vunpack.c.l.b16 %v50
    %v1277 = vunpack.c.h.b16 %v50
    %v1278 = vunpack.c.l.b16 %v51
    %v1279 = vunpack.c.h.b16 %v51
    %v1280 = vunpack.c.l.b16 %v52
    %v1281 = vunpack.c.h.b16 %v52
    %v1282 = vunpack.c.l.b16 %v53
    %v1283 = vunpack.c.h.b16 %v53
    %v1284 = vunpack.c.l.b16 %v54
    %v1285 = vunpack.c.h.b16 %v54
    %v1286 = vunpack.c.l.b16 %v55
    %v1287 = vunpack.c.h.b16 %v55
    %v1288 = vunpack.c.l.b16 %v56
    %v1289 = vunpack.c.h.b16 %v56
    %v1290 = vunpack.c.l.b16 %v57
    %v1291 = vunpack.c.h.b16 %v57
    %v1292 = vunpack.c.l.b16 %v58
    %v1293 = vunpack.c.h.b16 %v58
    %v1294 = vunpack.c.l.b16 %v59
    %v1295 = vunpack.c.h.b16 %v59
    %v1296 = vunpack.c.l.b16 %v60
    %v1297 = vunpack.c.h.b16 %v60
    %v1298 = vunpack.c.l.b16 %v61
    %v1299 = vunpack.c.h.b16 %v61
    %v1300 = vunpack.c.l.b16 %v62
    %v1301 = vunpack.c.h.b16 %v62
    %v1302 = vunpack.c.l.b16 %v63
    %v1303 = vunpack.c.h.b16 %v63
    %v1304 = vunpack.c.l.b16 %v64
    %v1305 = vunpack.c.h.b16 %v64
    %v1306 = vunpack.c.l.b16 %v65
    %v1307 = vunpack.c.h.b16 %v65
    %v1308 = vunpack.c.l.b16 %v66
    %v1309 = vunpack.c.h.b16 %v66
    %v1310 = vunpack.c.l.b16 %v67
    %v1311 = vunpack.c.h.b16 %v67
    %v1312 = vunpack.c.l.b16 %v68
    %v1313 = vunpack.c.h.b16 %v68
    %v1314 = vunpack.c.l.b16 %v69
    %v1315 = vunpack.c.h.b16 %v69
    %v1316 = vunpack.c.l.b16 %v70
    %v1317 = vunpack.c.h.b16 %v70
    %v1318 = vunpack.c.l.b16 %v71
    %v1319 = vunpack.c.h.b16 %v71
    %v1320 = vunpack.c.l.b16 %v72
    %v1321 = vunpack.c.h.b16 %v72
    %v1322 = vunpack.c.l.b16 %v73
    %v1323 = vunpack.c.h.b16 %v73
    %v1324 = vunpack.c.l.b16 %v74
    %v1325 = vunpack.c.h.b16 %v74
    %v1326 = vunpack.c.l.b16 %v75
    %v1327 = vunpack.c.h.b16 %v75
    %v1328 = vunpack.c.l.b16 %v76
    %v1329 = vunpack.c.h.b16 %v76
    %v1330 = vunpack.c.l.b16 %v77
    %v1331 = vunpack.c.h.b16 %v77
    %v1332 = vunpack.c.l.b16 %v78
    %v1333 = vunpack.c.h.b16 %v78
    %v1334 = vunpack.c.l.b16 %v79
    %v1335 = vunpack.c.h.b16 %v79
    %v1336 = vunpack.c.l.b16 %v80
    %v1337 = vunpack.c.h.b16 %v80
    %v1338 = vunpack.c.l.b16 %v81
    %v1339 = vunpack.c.h.b16 %v81
    %v1340 = vunpack.c.l.b16 %v82
    %v1341 = vunpack.c.h.b16 %v82
    %v1342 = vunpack.c.l.b16 %v83
    %v1343 = vunpack.c.h.b16 %v83
    %v1344 = vunpack.c.l.b16 %v84
    %v1345 = vunpack.c.h.b16 %v84
    %v1346 = vunpack.c.l.b16 %v85
    %v1347 = vunpack.c.h.b16 %v85
    %v1348 = vunpack.c.l.b16 %v86
    %v1349 = vunpack.c.h.b16 %v86
    %v1350 = vunpack.c.l.b16 %v87
    %v1351 = vunpack.c.h.b16 %v87
    %v1352 = vunpack.c.l.b16 %v88
    %v1353 = vunpack.c.h.b16 %v88
    %v1354 = vunpack.c.l.b16 %v89
    %v1355 = vunpack.c.h.b16 %v89
    %v1356 = vunpack.c.l.b16 %v90
    %v1357 = vunpack.c.h.b16 %v90
    %v1358 = vunpack.c.l.b16 %v91
    %v1359 = vunpack.c.h.b16 %v91
    %v1360 = vunpack.c.l.b16 %v92
    %v1361 = vunpack.c.h.b16 %v92
    %v1362 = vunpack.c.l.b16 %v93
    %v1363 = vunpack.c.h.b16 %v93
    %v1364 = vunpack.c.l.b16 %v94
    %v1365 = vunpack.c.h.b16 %v94
    %v1366 = vunpack.c.l.b16 %v95
    %v1367 = vunpack.c.h.b16 %v95
    %v1368 = vunpack.c.l.b16 %v96
    %v1369 = vunpack.c.h.b16 %v96
    %v1370 = vunpack.c.l.b16 %v97
    %v1371 = vunpack.c.h.b16 %v97
    %v1372 = vunpack.c.l.b16 %v98
    %v1373 = vunpack.c.h.b16 %v98
    %v1374 = vunpack.c.l.b16 %v99
    %v1375 = vunpack.c.h.b16 %v99
    %v1376 = vunpack.c.l.b16 %v100
    %v1377 = vunpack.c.h.b16 %v100
    %v1378 = vunpack.c.l.b16 %v101
    %v1379 = vunpack.c.h.b16 %v101
    %v1380 = vunpack.c.l.b16 %v102
    %v1381 = vunpack.c.h.b16 %v102
    %v1382 = vunpack.c.l.b16 %v103
    %v1383 = vunpack.c.h.b16 %v103
    %v1384 = vunpack.c.l.b16 %v104
    %v1385 = vunpack.c.h.b16 %v104
    %v1386 = vunpack.c.l.b16 %v105
    %v1387 = vunpack.c.h.b16 %v105
    %v1388 = vunpack.c.l.b16 %v106
    %v1389 = vunpack.c.h.b16 %v106
    %v1390 = vunpack.c.l.b16 %v107
    %v1391 = vunpack.c.h.b16 %v107
    %v1392 = vunpack.c.l.b16 %v108
    %v1393 = vunpack.c.h.b16 %v108
    %v1394 = vunpack.c.l.b16 %v109
    %v1395 = vunpack.c.h.b16 %v109
    %v1396 = vunpack.c.l.b16 %v110
    %v1397 = vunpack.c.h.b16 %v110
    %v1398 = vunpack.c.l.b16 %v111
    %v1399 = vunpack.c.h.b16 %v111
    %v1400 = vunpack.c.l.b16 %v112
    %v1401 = vunpack.c.h.b16 %v112
    %v1402 = vunpack.c.l.b16 %v113
    %v1403 = vunpack.c.h.b16 %v113
    %v1404 = vunpack.c.l.b16 %v114
    %v1405 = vunpack.c.h.b16 %v114
    %v1406 = vunpack.c.l.b16 %v115
    %v1407 = vunpack.c.h.b16 %v115
    %v1408 = vunpack.c.l.b16 %v116
    %v1409 = vunpack.c.h.b16 %v116
    %v1410 = vunpack.c.l.b16 %v117
    %v1411 = vunpack.c.h.b16 %v117
    %v1412 = vunpack.c.l.b16 %v118
    %v1413 = vunpack.c.h.b16 %v118
    %v1414 = vunpack.c.l.b16 %v119
    %v1415 = vunpack.c.h.b16 %v119
    %v1416 = vunpack.c.l.b16 %v120
    %v1417 = vunpack.c.h.b16 %v120
    %v1418 = vunpack.c.l.b16 %v121
    %v1419 = vunpack.c.h.b16 %v121
    %v1420 = vunpack.c.l.b16 %v122
    %v1421 = vunpack.c.h.b16 %v122
    %v1422 = vunpack.c.l.b16 %v123
    %v1423 = vunpack.c.h.b16 %v123
    %v1424 = vunpack.c.l.b16 %v124
    %v1425 = vunpack.c.h.b16 %v124
    %v1426 = vunpack.c.l.b16 %v125
    %v1427 = vunpack.c.h.b16 %v125
    %v1428 = vunpack.c.l.b16 %v126
    %v1429 = vunpack.c.h.b16 %v126
    %v1430 = vunpack.c.l.b16 %v127
    %v1431 = vunpack.c.h.b16 %v127
    %v1432 = vunpack.c.l.b16 %v128
    %v1433 = vunpack.c.h.b16 %v128
    %v1434 = vunpack.c.l.b16 %v129
    %v1435 = vunpack.c.h.b16 %v129
    %v1436 = vunpack.c.l.b16 %v130
    %v1437 = vunpack.c.h.b16 %v130
    %v1438 = vunpack.c.l.b16 %v131
    %v1439 = vunpack.c.h.b16 %v131
    %v1440 = vunpack.c.l.b16 %v132
    %v1441 = vunpack.c.h.b16 %v132
    %v1442 = vunpack.c.l.b16 %v133
    %v1443 = vunpack.c.h.b16 %v133
    %v1444 = vunpack.c.l.b16 %v134
    %v1445 = vunpack.c.h.b16 %v134
    %v1446 = vunpack.c.l.b16 %v135
    %v1447 = vunpack.c.h.b16 %v135
    %v1448 = vunpack.c.l.b16 %v136
    %v1449 = vunpack.c.h.b16 %v136
    %v1450 = vunpack.c.l.b16 %v137
    %v1451 = vunpack.c.h.b16 %v137
    %v1452 = vunpack.c.l.b16 %v138
    %v1453 = vunpack.c.h.b16 %v138
    %v1454 = vunpack.c.l.b16 %v139
    %v1455 = vunpack.c.h.b16 %v139
    %v1456 = vunpack.c.l.b16 %v140
    %v1457 = vunpack.c.h.b16 %v140
    %v1458 = vunpack.c.l.b16 %v141
    %v1459 = vunpack.c.h.b16 %v141
    %v1460 = vunpack.c.l.b16 %v142
    %v1461 = vunpack.c.h.b16 %v142
    %v1462 = vunpack.c.l.b16 %v143
    %v1463 = vunpack.c.h.b16 %v143
    %v1464 = vunpack.c.l.b16 %v144
    %v1465 = vunpack.c.h.b16 %v144
    %v1466 = vunpack.c.l.b16 %v145
    %v1467 = vunpack.c.h.b16 %v145
    %v1468 = vunpack.c.l.b16 %v146
    %v1469 = vunpack.c.h.b16 %v146
    %v1470 = vunpack.c.l.b16 %v147
    %v1471 = vunpack.c.h.b16 %v147
    %v1472 = vunpack.c.l.b16 %v148
    %v1473 = vunpack.c.h.b16 %v148
    %v1474 = vunpack.c.l.b16 %v149
    %v1475 = vunpack.c.h.b16 %v149
    %v1476 = vunpack.c.l.b16 %v150
    %v1477 = vunpack.c.h.b16 %v150
    %v1478 = vunpack.c.l.b16 %v151
    %v1479 = vunpack.c.h.b16 %v151
    %v1480 = vunpack.c.l.b16 %v152
    %v1481 = vunpack.c.h.b16 %v152
    %v1482 = vunpack.c.l.b16 %v153
    %v1483 = vunpack.c.h.b16 %v153
    %v1484 = vunpack.c.l.b16 %v154
    %v1485 = vunpack.c.h.b16 %v154
    %v1486 = vunpack.c.l.b16 %v155
    %v1487 = vunpack.c.h.b16 %v155
    %v1488 = vunpack.c.l.b16 %v156
    %v1489 = vunpack.c.h.b16 %v156
    %v1490 = vunpack.c.l.b16 %v157
    %v1491 = vunpack.c.h.b16 %v157
    %v1492 = vunpack.c.l.b16 %v158
    %v1493 = vunpack.c.h.b16 %v158
    %v1494 = vunpack.c.l.b16 %v159
    %v1495 = vunpack.c.h.b16 %v159
    %v1496 = vunpack.c.l.b16 %v160
    %v1497 = vunpack.c.h.b16 %v160
    %v1498 = vunpack.c.l.b16 %v161
    %v1499 = vunpack.c.h.b16 %v161
    %v1500 = vunpack.c.l.b16 %v162
    %v1501 = vunpack.c.h.b16 %v162
    %v1502 = vunpack.c.l.b16 %v163
    %v1503 = vunpack.c.h.b16 %v163
    %v1504 = vunpack.c.l.b16 %v164
    %v1505 = vunpack.c.h.b16 %v164
    %v1506 = vunpack.c.l.b16 %v165
    %v1507 = vunpack.c.h.b16 %v165
    %v1508 = vunpack.c.l.b16 %v166
    %v1509 = vunpack.c.h.b16 %v166
    %v1510 = vunpack.c.l.b16 %v167
    %v1511 = vunpack.c.h.b16 %v167
    %v1512 = vunpack.c.l.b16 %v168
    %v1513 = vunpack.c.h.b16 %v168
    %v1514 = vunpack.c.l.b16 %v169
    %v1515 = vunpack.c.h.b16 %v169
    %v1516 = vunpack.c.l.b16 %v170
    %v1517 = vunpack.c.h.b16 %v170
    %v1518 = vunpack.c.l.b16 %v171
    %v1519 = vunpack.c.h.b16 %v171
    %v1520 = vunpack.c.l.b16 %v172
    %v1521 = vunpack.c.h.b16 %v172
    %v1522 = vunpack.c.l.b16 %v173
    %v1523 = vunpack.c.h.b16 %v173
    %v1524 = vunpack.c.l.b16 %v174
    %v1525 = vunpack.c.h.b16 %v174
    %v1526 = vunpack.c.l.b16 %v175
    %v1527 = vunpack.c.h.b16 %v175
    %v1528 = vunpack.c.l.b16 %v176
    %v1529 = vunpack.c.h.b16 %v176
    %v1530 = vunpack.c.l.b16 %v177
    %v1531 = vunpack.c.h.b16 %v177
    %v1532 = vunpack.c.l.b16 %v178
    %v1533 = vunpack.c.h.b16 %v178
    %v1534 = vunpack.c.l.b16 %v179
    %v1535 = vunpack.c.h.b16 %v179
    %v1536 = vunpack.c.l.b16 %v180
    %v1537 = vunpack.c.h.b16 %v180
    %v1538 = vunpack.c.l.b16 %v181
    %v1539 = vunpack.c.h.b16 %v181
    %v1540 = vunpack.c.l.b16 %v182
    %v1541 = vunpack.c.h.b16 %v182
    %v1542 = vunpack.c.l.b16 %v183
    %v1543 = vunpack.c.h.b16 %v183
    %v1544 = vunpack.c.l.b16 %v184
    %v1545 = vunpack.c.h.b16 %v184
    %v1546 = vunpack.c.l.b16 %v185
    %v1547 = vunpack.c.h.b16 %v185
    %v1548 = vunpack.c.l.b16 %v186
    %v1549 = vunpack.c.h.b16 %v186
    %v1550 = vunpack.c.l.b16 %v187
    %v1551 = vunpack.c.h.b16 %v187
    %v1552 = vunpack.c.l.b16 %v188
    %v1553 = vunpack.c.h.b16 %v188
    %v1554 = vunpack.c.l.b16 %v189
    %v1555 = vunpack.c.h.b16 %v189
    %v1556 = vunpack.c.l.b16 %v190
    %v1557 = vunpack.c.h.b16 %v190
    %v1558 = vunpack.c.l.b16 %v191
    %v1559 = vunpack.c.h.b16 %v191
    %v1560 = vunpack.c.l.b16 %v192
    %v1561 = vunpack.c.h.b16 %v192
    %v1562 = vunpack.c.l.b16 %v193
    %v1563 = vunpack.c.h.b16 %v193
    %v1564 = vunpack.c.l.b16 %v194
    %v1565 = vunpack.c.h.b16 %v194
    %v1566 = vunpack.c.l.b16 %v195
    %v1567 = vunpack.c.h.b16 %v195
    %v1568 = vunpack.c.l.b16 %v196
    %v1569 = vunpack.c.h.b16 %v196
    %v1570 = vunpack.c.l.b16 %v197
    %v1571 = vunpack.c.h.b16 %v197
    %v1572 = vunpack.c.l.b16 %v198
    %v1573 = vunpack.c.h.b16 %v198
    %v1574 = vunpack.c.l.b16 %v199
    %v1575 = vunpack.c.h.b16 %v199
    %v1576 = vunpack.c.l.b16 %v200
    %v1577 = vunpack.c.h.b16 %v200
    %v1578 = vunpack.c.l.b16 %v201
    %v1579 = vunpack.c.h.b16 %v201
    %v1580 = vunpack.c.l.b16 %v202
    %v1581 = vunpack.c.h.b16 %v202
    %v1582 = vunpack.c.l.b16 %v203
    %v1583 = vunpack.c.h.b16 %v203
    %v1584 = vunpack.c.l.b16 %v204
    %v1585 = vunpack.c.h.b16 %v204
    %v1586 = vunpack.c.l.b16 %v205
    %v1587 = vunpack.c.h.b16 %v205
    %v1588 = vunpack.c.l.b16 %v206
    %v1589 = vunpack.c.h.b16 %v206
    %v1590 = vunpack.c.l.b16 %v207
    %v1591 = vunpack.c.h.b16 %v207
    %v1592 = vunpack.c.l.b16 %v208
    %v1593 = vunpack.c.h.b16 %v208
    %v1594 = vunpack.c.l.b16 %v209
    %v1595 = vunpack.c.h.b16 %v209
    %v1596 = vunpack.c.l.b16 %v210
    %v1597 = vunpack.c.h.b16 %v210
    %v1598 = vunpack.c.l.b16 %v211
    %v1599 = vunpack.c.h.b16 %v211
    %v1600 = vunpack.c.l.b16 %v212
    %v1601 = vunpack.c.h.b16 %v212
    %v1602 = vunpack.c.l.b16 %v213
    %v1603 = vunpack.c.h.b16 %v213
    %v1604 = vunpack.c.l.b16 %v214
    %v1605 = vunpack.c.h.b16 %v214
    %v1606 = vunpack.c.l.b16 %v215
    %v1607 = vunpack.c.h.b16 %v215
    %v1608 = vunpack.c.l.b16 %v216
    %v1609 = vunpack.c.h.b16 %v216
    %v1610 = vunpack.c.l.b16 %v217
    %v1611 = vunpack.c.h.b16 %v217
    %v1612 = vunpack.c.l.b16 %v218
    %v1613 = vunpack.c.h.b16 %v218
    %v1614 = vunpack.c.l.b16 %v219
    %v1615 = vunpack.c.h.b16 %v219
    %v1616 = vunpack.c.l.b16 %v220
    %v1617 = vunpack.c.h.b16 %v220
    %v1618 = vunpack.c.l.b16 %v221
    %v1619 = vunpack.c.h.b16 %v221
    %v1620 = vunpack.c.l.b16 %v222
    %v1621 = vunpack.c.h.b16 %v222
    %v1622 = vunpack.c.l.b16 %v223
    %v1623 = vunpack.c.h.b16 %v223
    %v1624 = vunpack.c.l.b16 %v224
    %v1625 = vunpack.c.h.b16 %v224
    %v1626 = vunpack.c.l.b16 %v225
    %v1627 = vunpack.c.h.b16 %v225
    %v1628 = vunpack.c.l.b16 %v226
    %v1629 = vunpack.c.h.b16 %v226
    %v1630 = vunpack.c.l.b16 %v227
    %v1631 = vunpack.c.h.b16 %v227
    %v1632 = vunpack.c.l.b16 %v228
    %v1633 = vunpack.c.h.b16 %v228
    %v1634 = vunpack.c.l.b16 %v229
    %v1635 = vunpack.c.h.b16 %v229
    %v1636 = vunpack.c.l.b16 %v230
    %v1637 = vunpack.c.h.b16 %v230
    %v1638 = vunpack.c.l.b16 %v231
    %v1639 = vunpack.c.h.b16 %v231
    %v1640 = vunpack.c.l.b16 %v232
    %v1641 = vunpack.c.h.b16 %v232
    %v1642 = vunpack.c.l.b16 %v233
    %v1643 = vunpack.c.h.b16 %v233
    %v1644 = vunpack.c.l.b16 %v234
    %v1645 = vunpack.c.h.b16 %v234
    %v1646 = vunpack.c.l.b16 %v235
    %v1647 = vunpack.c.h.b16 %v235
    %v1648 = vunpack.c.l.b16 %v236
    %v1649 = vunpack.c.h.b16 %v236
    %v1650 = vunpack.c.l.b16 %v237
    %v1651 = vunpack.c.h.b16 %v237
    %v1652 = vunpack.c.l.b16 %v238
    %v1653 = vunpack.c.h.b16 %v238
    %v1654 = vunpack.c.l.b16 %v239
    %v1655 = vunpack.c.h.b16 %v239
    %v1656 = vunpack.c.l.b16 %v240
    %v1657 = vunpack.c.h.b16 %v240
    %v1658 = vunpack.c.l.b16 %v241
    %v1659 = vunpack.c.h.b16 %v241
    %v1660 = vunpack.c.l.b16 %v242
    %v1661 = vunpack.c.h.b16 %v242
    %v1662 = vunpack.c.l.b16 %v243
    %v1663 = vunpack.c.h.b16 %v243
    %v1664 = vunpack.c.l.b16 %v244
    %v1665 = vunpack.c.h.b16 %v244
    %v1666 = vunpack.c.l.b16 %v245
    %v1667 = vunpack.c.h.b16 %v245
    %v1668 = vunpack.c.l.b16 %v246
    %v1669 = vunpack.c.h.b16 %v246
    %v1670 = vunpack.c.l.b16 %v247
    %v1671 = vunpack.c.h.b16 %v247
    %v1672 = vunpack.c.l.b16 %v248
    %v1673 = vunpack.c.h.b16 %v248
    %v1674 = vunpack.c.l.b16 %v249
    %v1675 = vunpack.c.h.b16 %v249
    %v1676 = vpack.c.b16 %v1246, %v1244
    %v1677 = vpack.c.b16 %v1247, %v1245
    %v1678 = vpack.c.b16 %v1250, %v1248
    %v1679 = vpack.c.b16 %v1251, %v1249
    %v1680 = vpack.c.b16 %v1254, %v1252
    %v1681 = vpack.c.b16 %v1255, %v1253
    %v1682 = vpack.c.b16 %v1258, %v1256
    %v1683 = vpack.c.b16 %v1259, %v1257
    %v1684 = vpack.c.b16 %v1262, %v1260
    %v1685 = vpack.c.b16 %v1263, %v1261
    %v1686 = vpack.c.b16 %v1266, %v1264
    %v1687 = vpack.c.b16 %v1267, %v1265
    %v1688 = vpack.c.b16 %v1270, %v1268
    %v1689 = vpack.c.b16 %v1271, %v1269
    %v1690 = vpack.c.b16 %v1274, %v1272
    %v1691 = vpack.c.b16 %v1275, %v1273
    %v1692 = vpack.c.b16 %v1278, %v1276
    %v1693 = vpack.c.b16 %v1279, %v1277
    %v1694 = vpack.c.b16 %v1282, %v1280
    %v1695 = vpack.c.b16 %v1283, %v1281
    %v1696 = vpack.c.b16 %v1286, %v1284
    %v1697 = vpack.c.b16 %v1287, %v1285
    %v1698 = vpack.c.b16 %v1290, %v1288
    %v1699 = vpack.c.b16 %v1291, %v1289
    %v1700 = vpack.c.b16 %v1294, %v1292
    %v1701 = vpack.c.b16 %v1295, %v1293
    %v1702 = vpack.c.b16 %v1298, %v1296
    %v1703 = vpack.c.b16 %v1299, %v1297
    %v1704 = vpack.c.b16 %v1302, %v1300
    %v1705 = vpack.c.b16 %v1303, %v1301
    %v1706 = vpack.c.b16 %v1306, %v1304
    %v1707 = vpack.c.b16 %v1307, %v1305
    %v1708 = vpack.c.b16 %v1310, %v1308
    %v1709 = vpack.c.b16 %v1311, %v1309
    %v1710 = vpack.c.b16 %v1314, %v1312
    %v1711 = vpack.c.b16 %v1315, %v1313
    %v1712 = vpack.c.b16 %v1318, %v1316
    %v1713 = vpack.c.b16 %v1319, %v1317
    %v1714 = vpack.c.b16 %v1322, %v1320
    %v1715 = vpack.c.b16 %v1323, %v1321
    %v1716 = vpack.c.b16 %v1326, %v1324
    %v1717 = vpack.c.b16 %v1327, %v1325
    %v1718 = vpack.c.b16 %v1330, %v1328
    %v1719 = vpack.c.b16 %v1331, %v1329
    %v1720 = vpack.c.b16 %v1334, %v1332
    %v1721 = vpack.c.b16 %v1335, %v1333
    %v1722 = vpack.c.b16 %v1338, %v1336
    %v1723 = vpack.c.b16 %v1339, %v1337
    %v1724 = vpack.c.b16 %v1342, %v1340
    %v1725 = vpack.c.b16 %v1343, %v1341
    %v1726 = vpack.c.b16 %v1346, %v1344
    %v1727 = vpack.c.b16 %v1347, %v1345
    %v1728 = vpack.c.b16 %v1350, %v1348
    %v1729 = vpack.c.b16 %v1351, %v1349
    %v1730 = vpack.c.b16 %v1354, %v1352
    %v1731 = vpack.c.b16 %v1355, %v1353
    %v1732 = vpack.c.b16 %v1358, %v1356
    %v1733 = vpack.c.b16 %v1359, %v1357
    %v1734 = vpack.c.b16 %v1362, %v1360
    %v1735 = vpack.c.b16 %v1363, %v1361
    %v1736 = vpack.c.b16 %v1366, %v1364
    %v1737 = vpack.c.b16 %v1367, %v1365
    %v1738 = vpack.c.b16 %v1370, %v1368
    %v1739 = vpack.c.b16 %v1371, %v1369
    %v1740 = vpack.c.b16 %v1374, %v1372
    %v1741 = vpack.c.b16 %v1375, %v1373
    %v1742 = vpack.c.b16 %v1378, %v1376
    %v1743 = vpack.c.b16 %v1379, %v1377
    %v1744 = vpack.c.b16 %v1382, %v1380
    %v1745 = vpack.c.b16 %v1383, %v1381
    %v1746 = vpack.c.b16 %v1386, %v1384
    %v1747 = vpack.c.b16 %v1387, %v1385
    %v1748 = vpack.c.b16 %v1390, %v1388
    %v1749 = vpack.c.b16 %v1391, %v1389
    %v1750 = vpack.c.b16 %v1394, %v1392
    %v1751 = vpack.c.b16 %v1395, %v1393
    %v1752 = vpack.c.b16 %v1398, %v1396
    %v1753 = vpack.c.b16 %v1399, %v1397
    %v1754 = vpack.c.b16 %v1402, %v1400
    %v1755 = vpack.c.b16 %v1403, %v1401
    %v1756 = vpack.c.b16 %v1406, %v1404
    %v1757 = vpack.c.b16 %v1407, %v1405
    %v1758 = vpack.c.b16 %v1410, %v1408
    %v1759 = vpack.c.b16 %v1411, %v1409
    %v1760 = vpack.c.b16 %v1414, %v1412
    %v1761 = vpack.c.b16 %v1415, %v1413
    %v1762 = vpack.c.b16 %v1418, %v1416
    %v1763 = vpack.c.b16 %v1419, %v1417
    %v1764 = vpack.c.b16 %v1422, %v1420
    %v1765 = vpack.c.b16 %v1423, %v1421
    %v1766 = vpack.c.b16 %v1426, %v1424
    %v1767 = vpack.c.b16 %v1427, %v1425
    %v1768 = vpack.c.b16 %v1430, %v1428
    %v1769 = vpack.c.b16 %v1431, %v1429
    %v1770 = vpack.c.b16 %v1434, %v1432
    %v1771 = vpack.c.b16 %v1435, %v1433
    %v1772 = vpack.c.b16 %v1438, %v1436
    %v1773 = vpack.c.b16 %v1439, %v1437
    %v1774 = vpack.c.b16 %v1442, %v1440
    %v1775 = vpack.c.b16 %v1443, %v1441
    %v1776 = vpack.c.b16 %v1446, %v1444
    %v1777 = vpack.c.b16 %v1447, %v1445
    %v1778 = vpack.c.b16 %v1450, %v1448
    %v1779 = vpack.c.b16 %v1451, %v1449
    %v1780 = vpack.c.b16 %v1454, %v1452
    %v1781 = vpack.c.b16 %v1455, %v1453
    %v1782 = vpack.c.b16 %v1458, %v1456
    %v1783 = vpack.c.b16 %v1459, %v1457
    %v1784 = vpack.c.b16 %v1462, %v1460
    %v1785 = vpack.c.b16 %v1463, %v1461
    %v1786 = vpack.c.b16 %v1466, %v1464
    %v1787 = vpack.c.b16 %v1467, %v1465
    %v1788 = vpack.c.b16 %v1470, %v1468
    %v1789 = vpack.c.b16 %v1471, %v1469
    %v1790 = vpack.c.b16 %v1474, %v1472
    %v1791 = vpack.c.b16 %v1475, %v1473
    %v1792 = vpack.c.b16 %v1478, %v1476
    %v1793 = vpack.c.b16 %v1479, %v1477
    %v1794 = vpack.c.b16 %v1482, %v1480
    %v1795 = vpack.c.b16 %v1483, %v1481
    %v1796 = vpack.c.b16 %v1486, %v1484
    %v1797 = vpack.c.b16 %v1487, %v1485
    %v1798 = vpack.c.b16 %v1490, %v1488
    %v1799 = vpack.c.b16 %v1491, %v1489
    %v1800 = vpack.c.b16 %v1494, %v1492
    %v1801 = vpack.c.b16 %v1495, %v1493
    %v1802 = vpack.c.b16 %v1498, %v1496
    %v1803 = vpack.c.b16 %v1499, %v1497
    %v1804 = vpack.c.b16 %v1502, %v1500
    %v1805 = vpack.c.b16 %v1503, %v1501
    %v1806 = vpack.c.b16 %v1506, %v1504
    %v1807 = vpack.c.b16 %v1507, %v1505
    %v1808 = vpack.c.b16 %v1510, %v1508
    %v1809 = vpack.c.b16 %v1511, %v1509
    %v1810 = vpack.c.b16 %v1514, %v1512
    %v1811 = vpack.c.b16 %v1515, %v1513
    %v1812 = vpack.c.b16 %v1518, %v1516
    %v1813 = vpack.c.b16 %v1519, %v1517
    %v1814 = vpack.c.b16 %v1522, %v1520
    %v1815 = vpack.c.b16 %v1523, %v1521
    %v1816 = vpack.c.b16 %v1526, %v1524
    %v1817 = vpack.c.b16 %v1527, %v1525
    %v1818 = vpack.c.b16 %v1530, %v1528
    %v1819 = vpack.c.b16 %v1531, %v1529
    %v1820 = vpack.c.b16 %v1534, %v1532
    %v1821 = vpack.c.b16 %v1535, %v1533
    %v1822 = vpack.c.b16 %v1538, %v1536
    %v1823 = vpack.c.b16 %v1539, %v1537
    %v1824 = vpack.c.b16 %v1542, %v1540
    %v1825 = vpack.c.b16 %v1543, %v1541
    %v1826 = vpack.c.b16 %v1546, %v1544
    %v1827 = vpack.c.b16 %v1547, %v1545
    %v1828 = vpack.c.b16 %v1550, %v1548
    %v1829 = vpack.c.b16 %v1551, %v1549
    %v1830 = vpack.c.b16 %v1554, %v1552
    %v1831 = vpack.c.b16 %v1555, %v1553
    %v1832 = vpack.c.b16 %v1558, %v1556
    %v1833 = vpack.c.b16 %v1559, %v1557
    %v1834 = vpack.c.b16 %v1562, %v1560
    %v1835 = vpack.c.b16 %v1563, %v1561
    %v1836 = vpack.c.b16 %v1566, %v1564
    %v1837 = vpack.c.b16 %v1567, %v1565
    %v1838 = vpack.c.b16 %v1570, %v1568
    %v1839 = vpack.c.b16 %v1571, %v1569
    %v1840 = vpack.c.b16 %v1574, %v1572
    %v1841 = vpack.c.b16 %v1575, %v1573
    %v1842 = vpack.c.b16 %v1578, %v1576
    %v1843 = vpack.c.b16 %v1579, %v1577
    %v1844 = vpack.c.b16 %v1582, %v1580
    %v1845 = vpack.c.b16 %v1583, %v1581
    %v1846 = vpack.c.b16 %v1586, %v1584
    %v1847 = vpack.c.b16 %v1587, %v1585
    %v1848 = vpack.c.b16 %v1590, %v1588
    %v1849 = vpack.c.b16 %v1591, %v1589
    %v1850 = vpack.c.b16 %v1594, %v1592
    %v1851 = vpack.c.b16 %v1595, %v1593
    %v1852 = vpack.c.b16 %v1598, %v1596
    %v1853 = vpack.c.b16 %v1599, %v1597
    %v1854 = vpack.c.b16 %v1602, %v1600
    %v1855 = vpack.c.b16 %v1603, %v1601
    %v1856 = vpack.c.b16 %v1606, %v1604
    %v1857 = vpack.c.b16 %v1607, %v1605
    %v1858 = vpack.c.b16 %v1610, %v1608
    %v1859 = vpack.c.b16 %v1611, %v1609
    %v1860 = vpack.c.b16 %v1614, %v1612
    %v1861 = vpack.c.b16 %v1615, %v1613
    %v1862 = vpack.c.b16 %v1618, %v1616
    %v1863 = vpack.c.b16 %v1619, %v1617
    %v1864 = vpack.c.b16 %v1622, %v1620
    %v1865 = vpack.c.b16 %v1623, %v1621
    %v1866 = vpack.c.b16 %v1626, %v1624
    %v1867 = vpack.c.b16 %v1627, %v1625
    %v1868 = vpack.c.b16 %v1630, %v1628
    %v1869 = vpack.c.b16 %v1631, %v1629
    %v1870 = vpack.c.b16 %v1634, %v1632
    %v1871 = vpack.c.b16 %v1635, %v1633
    %v1872 = vpack.c.b16 %v1638, %v1636
    %v1873 = vpack.c.b16 %v1639, %v1637
    %v1874 = vpack.c.b16 %v1642, %v1640
    %v1875 = vpack.c.b16 %v1643, %v1641
    %v1876 = vpack.c.b16 %v1646, %v1644
    %v1877 = vpack.c.b16 %v1647, %v1645
    %v1878 = vpack.c.b16 %v1650, %v1648
    %v1879 = vpack.c.b16 %v1651, %v1649
    %v1880 = vpack.c.b16 %v1654, %v1652
    %v1881 = vpack.c.b16 %v1655, %v1653
    %v1882 = vpack.c.b16 %v1658, %v1656
    %v1883 = vpack.c.b16 %v1659, %v1657
    %v1884 = vpack.c.b16 %v1662, %v1660
    %v1885 = vpack.c.b16 %v1663, %v1661
    %v1886 = vpack.c.b16 %v1666, %v1664
    %v1887 = vpack.c.b16 %v1667, %v1665
    %v1888 = vpack.c.b16 %v1670, %v1668
    %v1889 = vpack.c.b16 %v1671, %v1669
    %v1890 = vpack.c.b16 %v1674, %v1672
    %v1891 = vpack.c.b16 %v1675, %v1673
    %vm2108 = vcmask 523264
    %v2109 = vsel %vm2108, %v1014, 0
    %2111 = vmatpush.bf16.msra.mxu0 %v1690
    %2112 = vmatpush.bf16.msra.mxu0 %v1688
    %2113 = vmatpush.bf16.msra.mxu0 %v1686
    %2114 = vmatpush.bf16.msra.mxu0 %v1684
    %2115 = vmatpush.bf16.msra.mxu0 %v1682
    %2116 = vmatpush.bf16.msra.mxu0 %v1680
    %2117 = vmatpush.bf16.msra.mxu0 %v1678
    %2118 = vmatpush.bf16.msra.mxu0 %v1676
    %2119 = vmatmul.bf16.gmra.mxu0 %v999
    %v2120 = vpop.f32.mrf.mxu0
    %v2121 = vadd.f32 %v916, %v2120
    %v2122 = vpop.f32.mrf.mxu0
    %2123 = vdwg.mxu0
    %2124 = vmatpush.bf16.msra.mxu0 %v1706
    %2125 = vmatpush.bf16.msra.mxu0 %v1704
    %2126 = vmatpush.bf16.msra.mxu0 %v1702
    %2127 = vmatpush.bf16.msra.mxu0 %v1700
    %2128 = vmatpush.bf16.msra.mxu0 %v1698
    %2129 = vmatpush.bf16.msra.mxu0 %v1696
    %2130 = vmatpush.bf16.msra.mxu0 %v1694
    %2131 = vmatpush.bf16.msra.mxu0 %v1692
    %2132 = vmatmul.bf16.gmra.mxu0 %v1000
    %v2133 = vpop.f32.mrf.mxu0
    %v2134 = vadd.f32 %v2121, %v2133
    %v2135 = vpop.f32.mrf.mxu0
    %2136 = vdwg.mxu0
    %2137 = vmatpush.bf16.msra.mxu0 %v1722
    %2138 = vmatpush.bf16.msra.mxu0 %v1720
    %2139 = vmatpush.bf16.msra.mxu0 %v1718
    %2140 = vmatpush.bf16.msra.mxu0 %v1716
    %2141 = vmatpush.bf16.msra.mxu0 %v1714
    %2142 = vmatpush.bf16.msra.mxu0 %v1712
    %2143 = vmatpush.bf16.msra.mxu0 %v1710
    %2144 = vmatpush.bf16.msra.mxu0 %v1708
    %2145 = vmatmul.bf16.gmra.mxu0 %v1001
    %v2146 = vpop.f32.mrf.mxu0
    %v2147 = vadd.f32 %v2134, %v2146
    %v2148 = vpop.f32.mrf.mxu0
    %2149 = vdwg.mxu0
    %2150 = vmatpush.bf16.msra.mxu0 %v1738
    %2151 = vmatpush.bf16.msra.mxu0 %v1736
    %2152 = vmatpush.bf16.msra.mxu0 %v1734
    %2153 = vmatpush.bf16.msra.mxu0 %v1732
    %2154 = vmatpush.bf16.msra.mxu0 %v1730
    %2155 = vmatpush.bf16.msra.mxu0 %v1728
    %2156 = vmatpush.bf16.msra.mxu0 %v1726
    %2157 = vmatpush.bf16.msra.mxu0 %v1724
    %2158 = vmatmul.bf16.gmra.mxu0 %v1002
    %v2159 = vpop.f32.mrf.mxu0
    %v2160 = vadd.f32 %v2147, %v2159
    %v2161 = vpop.f32.mrf.mxu0
    %2162 = vdwg.mxu0
    %2163 = vmatpush.bf16.msra.mxu0 %v1754
    %2164 = vmatpush.bf16.msra.mxu0 %v1752
    %2165 = vmatpush.bf16.msra.mxu0 %v1750
    %2166 = vmatpush.bf16.msra.mxu0 %v1748
    %2167 = vmatpush.bf16.msra.mxu0 %v1746
    %2168 = vmatpush.bf16.msra.mxu0 %v1744
    %2169 = vmatpush.bf16.msra.mxu0 %v1742
    %2170 = vmatpush.bf16.msra.mxu0 %v1740
    %2171 = vmatmul.bf16.gmra.mxu0 %v1003
    %v2172 = vpop.f32.mrf.mxu0
    %v2173 = vadd.f32 %v2160, %v2172
    %v2174 = vpop.f32.mrf.mxu0
    %2175 = vdwg.mxu0
    %2176 = vmatpush.bf16.msra.mxu0 %v1770
    %2177 = vmatpush.bf16.msra.mxu0 %v1768
    %2178 = vmatpush.bf16.msra.mxu0 %v1766
    %2179 = vmatpush.bf16.msra.mxu0 %v1764
    %2180 = vmatpush.bf16.msra.mxu0 %v1762
    %2181 = vmatpush.bf16.msra.mxu0 %v1760
    %2182 = vmatpush.bf16.msra.mxu0 %v1758
    %2183 = vmatpush.bf16.msra.mxu0 %v1756
    %2184 = vmatmul.bf16.gmra.mxu0 %v1004
    %v2185 = vpop.f32.mrf.mxu0
    %v2186 = vadd.f32 %v2173, %v2185
    %v2187 = vpop.f32.mrf.mxu0
    %2188 = vdwg.mxu0
    %2189 = vmatpush.bf16.msra.mxu0 %v1786
    %2190 = vmatpush.bf16.msra.mxu0 %v1784
    %2191 = vmatpush.bf16.msra.mxu0 %v1782
    %2192 = vmatpush.bf16.msra.mxu0 %v1780
    %2193 = vmatpush.bf16.msra.mxu0 %v1778
    %2194 = vmatpush.bf16.msra.mxu0 %v1776
    %2195 = vmatpush.bf16.msra.mxu0 %v1774
    %2196 = vmatpush.bf16.msra.mxu0 %v1772
    %2197 = vmatmul.bf16.gmra.mxu0 %v1005
    %v2198 = vpop.f32.mrf.mxu0
    %v2199 = vadd.f32 %v2186, %v2198
    %v2200 = vpop.f32.mrf.mxu0
    %2201 = vdwg.mxu0
    %2202 = vmatpush.bf16.msra.mxu0 %v1802
    %2203 = vmatpush.bf16.msra.mxu0 %v1800
    %2204 = vmatpush.bf16.msra.mxu0 %v1798
    %2205 = vmatpush.bf16.msra.mxu0 %v1796
    %2206 = vmatpush.bf16.msra.mxu0 %v1794
    %2207 = vmatpush.bf16.msra.mxu0 %v1792
    %2208 = vmatpush.bf16.msra.mxu0 %v1790
    %2209 = vmatpush.bf16.msra.mxu0 %v1788
    %2210 = vmatmul.bf16.gmra.mxu0 %v1006
    %v2211 = vpop.f32.mrf.mxu0
    %v2212 = vadd.f32 %v2199, %v2211
    %v2213 = vpop.f32.mrf.mxu0
    %2214 = vdwg.mxu0
    %2215 = vmatpush.bf16.msra.mxu0 %v1818
    %2216 = vmatpush.bf16.msra.mxu0 %v1816
    %2217 = vmatpush.bf16.msra.mxu0 %v1814
    %2218 = vmatpush.bf16.msra.mxu0 %v1812
    %2219 = vmatpush.bf16.msra.mxu0 %v1810
    %2220 = vmatpush.bf16.msra.mxu0 %v1808
    %2221 = vmatpush.bf16.msra.mxu0 %v1806
    %2222 = vmatpush.bf16.msra.mxu0 %v1804
    %2223 = vmatmul.bf16.gmra.mxu0 %v1009
    %v2224 = vpop.f32.mrf.mxu0
    %v2225 = vadd.f32 %v2212, %v2224
    %v2226 = vpop.f32.mrf.mxu0
    %2227 = vdwg.mxu0
    %2228 = vmatpush.bf16.msra.mxu0 %v1834
    %2229 = vmatpush.bf16.msra.mxu0 %v1832
    %2230 = vmatpush.bf16.msra.mxu0 %v1830
    %2231 = vmatpush.bf16.msra.mxu0 %v1828
    %2232 = vmatpush.bf16.msra.mxu0 %v1826
    %2233 = vmatpush.bf16.msra.mxu0 %v1824
    %2234 = vmatpush.bf16.msra.mxu0 %v1822
    %2235 = vmatpush.bf16.msra.mxu0 %v1820
    %2236 = vmatmul.bf16.gmra.mxu0 %v1010
    %v2237 = vpop.f32.mrf.mxu0
    %v2238 = vadd.f32 %v2225, %v2237
    %v2239 = vpop.f32.mrf.mxu0
    %2240 = vdwg.mxu0
    %2241 = vmatpush.bf16.msra.mxu0 %v1850
    %2242 = vmatpush.bf16.msra.mxu0 %v1848
    %2243 = vmatpush.bf16.msra.mxu0 %v1846
    %2244 = vmatpush.bf16.msra.mxu0 %v1844
    %2245 = vmatpush.bf16.msra.mxu0 %v1842
    %2246 = vmatpush.bf16.msra.mxu0 %v1840
    %2247 = vmatpush.bf16.msra.mxu0 %v1838
    %2248 = vmatpush.bf16.msra.mxu0 %v1836
    %2249 = vmatmul.bf16.gmra.mxu0 %v1011
    %v2250 = vpop.f32.mrf.mxu0
    %v2251 = vadd.f32 %v2238, %v2250
    %v2252 = vpop.f32.mrf.mxu0
    %2253 = vdwg.mxu0
    %2254 = vmatpush.bf16.msra.mxu0 %v1866
    %2255 = vmatpush.bf16.msra.mxu0 %v1864
    %2256 = vmatpush.bf16.msra.mxu0 %v1862
    %2257 = vmatpush.bf16.msra.mxu0 %v1860
    %2258 = vmatpush.bf16.msra.mxu0 %v1858
    %2259 = vmatpush.bf16.msra.mxu0 %v1856
    %2260 = vmatpush.bf16.msra.mxu0 %v1854
    %2261 = vmatpush.bf16.msra.mxu0 %v1852
    %2262 = vmatmul.bf16.gmra.mxu0 %v1012
    %v2263 = vpop.f32.mrf.mxu0
    %v2264 = vadd.f32 %v2251, %v2263
    %v2265 = vpop.f32.mrf.mxu0
    %2266 = vdwg.mxu0
    %2267 = vmatpush.bf16.msra.mxu0 %v1882
    %2268 = vmatpush.bf16.msra.mxu0 %v1880
    %2269 = vmatpush.bf16.msra.mxu0 %v1878
    %2270 = vmatpush.bf16.msra.mxu0 %v1876
    %2271 = vmatpush.bf16.msra.mxu0 %v1874
    %2272 = vmatpush.bf16.msra.mxu0 %v1872
    %2273 = vmatpush.bf16.msra.mxu0 %v1870
    %2274 = vmatpush.bf16.msra.mxu0 %v1868
    %2275 = vmatmul.bf16.gmra.mxu0 %v1013
    %v2276 = vpop.f32.mrf.mxu0
    %v2277 = vadd.f32 %v2264, %v2276
    %v2278 = vpop.f32.mrf.mxu0
    %2279 = vdwg.mxu0
    %2280 = vmatpush.bf16.msra.mxu0 0
    %2281 = vmatpush.bf16.msra.mxu0 0
    %2282 = vmatpush.bf16.msra.mxu0 0
    %2283 = vmatpush.bf16.msra.mxu0 0
    %2284 = vmatpush.bf16.msra.mxu0 %v1890
    %2285 = vmatpush.bf16.msra.mxu0 %v1888
    %2286 = vmatpush.bf16.msra.mxu0 %v1886
    %2287 = vmatpush.bf16.msra.mxu0 %v1884
    %2288 = vmatmul.bf16.gmra.mxu0 %v2109
    %v2289 = vpop.f32.mrf.mxu0
    %v2290 = vadd.f32 %v2277, %v2289
    %v2291 = vpop.f32.mrf.mxu0
    %2292 = vdwg.mxu0
    %2293 = vmatpush.bf16.msra.mxu0 %v1691
    %2294 = vmatpush.bf16.msra.mxu0 %v1689
    %2295 = vmatpush.bf16.msra.mxu0 %v1687
    %2296 = vmatpush.bf16.msra.mxu0 %v1685
    %2297 = vmatpush.bf16.msra.mxu0 %v1683
    %2298 = vmatpush.bf16.msra.mxu0 %v1681
    %2299 = vmatpush.bf16.msra.mxu0 %v1679
    %2300 = vmatpush.bf16.msra.mxu0 %v1677
    %2301 = vmatmul.bf16.gmra.mxu0 %v999
    %v2302 = vpop.f32.mrf.mxu0
    %v2303 = vadd.f32 %v994, %v2302
    %v2304 = vpop.f32.mrf.mxu0
    %2305 = vdwg.mxu0
    %2306 = vmatpush.bf16.msra.mxu0 %v1707
    %2307 = vmatpush.bf16.msra.mxu0 %v1705
    %2308 = vmatpush.bf16.msra.mxu0 %v1703
    %2309 = vmatpush.bf16.msra.mxu0 %v1701
    %2310 = vmatpush.bf16.msra.mxu0 %v1699
    %2311 = vmatpush.bf16.msra.mxu0 %v1697
    %2312 = vmatpush.bf16.msra.mxu0 %v1695
    %2313 = vmatpush.bf16.msra.mxu0 %v1693
    %2314 = vmatmul.bf16.gmra.mxu0 %v1000
    %v2315 = vpop.f32.mrf.mxu0
    %v2316 = vadd.f32 %v2303, %v2315
    %v2317 = vpop.f32.mrf.mxu0
    %2318 = vdwg.mxu0
    %2319 = vmatpush.bf16.msra.mxu0 %v1723
    %2320 = vmatpush.bf16.msra.mxu0 %v1721
    %2321 = vmatpush.bf16.msra.mxu0 %v1719
    %2322 = vmatpush.bf16.msra.mxu0 %v1717
    %2323 = vmatpush.bf16.msra.mxu0 %v1715
    %2324 = vmatpush.bf16.msra.mxu0 %v1713
    %2325 = vmatpush.bf16.msra.mxu0 %v1711
    %2326 = vmatpush.bf16.msra.mxu0 %v1709
    %2327 = vmatmul.bf16.gmra.mxu0 %v1001
    %v2328 = vpop.f32.mrf.mxu0
    %v2329 = vadd.f32 %v2316, %v2328
    %v2330 = vpop.f32.mrf.mxu0
    %2331 = vdwg.mxu0
    %2332 = vmatpush.bf16.msra.mxu0 %v1739
    %2333 = vmatpush.bf16.msra.mxu0 %v1737
    %2334 = vmatpush.bf16.msra.mxu0 %v1735
    %2335 = vmatpush.bf16.msra.mxu0 %v1733
    %2336 = vmatpush.bf16.msra.mxu0 %v1731
    %2337 = vmatpush.bf16.msra.mxu0 %v1729
    %2338 = vmatpush.bf16.msra.mxu0 %v1727
    %2339 = vmatpush.bf16.msra.mxu0 %v1725
    %2340 = vmatmul.bf16.gmra.mxu0 %v1002
    %v2341 = vpop.f32.mrf.mxu0
    %v2342 = vadd.f32 %v2329, %v2341
    %v2343 = vpop.f32.mrf.mxu0
    %2344 = vdwg.mxu0
    %2345 = vmatpush.bf16.msra.mxu0 %v1755
    %2346 = vmatpush.bf16.msra.mxu0 %v1753
    %2347 = vmatpush.bf16.msra.mxu0 %v1751
    %2348 = vmatpush.bf16.msra.mxu0 %v1749
    %2349 = vmatpush.bf16.msra.mxu0 %v1747
    %2350 = vmatpush.bf16.msra.mxu0 %v1745
    %2351 = vmatpush.bf16.msra.mxu0 %v1743
    %2352 = vmatpush.bf16.msra.mxu0 %v1741
    %2353 = vmatmul.bf16.gmra.mxu0 %v1003
    %v2354 = vpop.f32.mrf.mxu0
    %v2355 = vadd.f32 %v2342, %v2354
    %v2356 = vpop.f32.mrf.mxu0
    %2357 = vdwg.mxu0
    %2358 = vmatpush.bf16.msra.mxu0 %v1771
    %2359 = vmatpush.bf16.msra.mxu0 %v1769
    %2360 = vmatpush.bf16.msra.mxu0 %v1767
    %2361 = vmatpush.bf16.msra.mxu0 %v1765
    %2362 = vmatpush.bf16.msra.mxu0 %v1763
    %2363 = vmatpush.bf16.msra.mxu0 %v1761
    %2364 = vmatpush.bf16.msra.mxu0 %v1759
    %2365 = vmatpush.bf16.msra.mxu0 %v1757
    %2366 = vmatmul.bf16.gmra.mxu0 %v1004
    %v2367 = vpop.f32.mrf.mxu0
    %v2368 = vadd.f32 %v2355, %v2367
    %v2369 = vpop.f32.mrf.mxu0
    %2370 = vdwg.mxu0
    %2371 = vmatpush.bf16.msra.mxu0 %v1787
    %2372 = vmatpush.bf16.msra.mxu0 %v1785
    %2373 = vmatpush.bf16.msra.mxu0 %v1783
    %2374 = vmatpush.bf16.msra.mxu0 %v1781
    %2375 = vmatpush.bf16.msra.mxu0 %v1779
    %2376 = vmatpush.bf16.msra.mxu0 %v1777
    %2377 = vmatpush.bf16.msra.mxu0 %v1775
    %2378 = vmatpush.bf16.msra.mxu0 %v1773
    %2379 = vmatmul.bf16.gmra.mxu0 %v1005
    %v2380 = vpop.f32.mrf.mxu0
    %v2381 = vadd.f32 %v2368, %v2380
    %v2382 = vpop.f32.mrf.mxu0
    %2383 = vdwg.mxu0
    %2384 = vmatpush.bf16.msra.mxu0 %v1803
    %2385 = vmatpush.bf16.msra.mxu0 %v1801
    %2386 = vmatpush.bf16.msra.mxu0 %v1799
    %2387 = vmatpush.bf16.msra.mxu0 %v1797
    %2388 = vmatpush.bf16.msra.mxu0 %v1795
    %2389 = vmatpush.bf16.msra.mxu0 %v1793
    %2390 = vmatpush.bf16.msra.mxu0 %v1791
    %2391 = vmatpush.bf16.msra.mxu0 %v1789
    %2392 = vmatmul.bf16.gmra.mxu0 %v1006
    %v2393 = vpop.f32.mrf.mxu0
    %v2394 = vadd.f32 %v2381, %v2393
    %v2395 = vpop.f32.mrf.mxu0
    %2396 = vdwg.mxu0
    %2397 = vmatpush.bf16.msra.mxu0 %v1819
    %2398 = vmatpush.bf16.msra.mxu0 %v1817
    %2399 = vmatpush.bf16.msra.mxu0 %v1815
    %2400 = vmatpush.bf16.msra.mxu0 %v1813
    %2401 = vmatpush.bf16.msra.mxu0 %v1811
    %2402 = vmatpush.bf16.msra.mxu0 %v1809
    %2403 = vmatpush.bf16.msra.mxu0 %v1807
    %2404 = vmatpush.bf16.msra.mxu0 %v1805
    %2405 = vmatmul.bf16.gmra.mxu0 %v1009
    %v2406 = vpop.f32.mrf.mxu0
    %v2407 = vadd.f32 %v2394, %v2406
    %v2408 = vpop.f32.mrf.mxu0
    %2409 = vdwg.mxu0
    %2410 = vmatpush.bf16.msra.mxu0 %v1835
    %2411 = vmatpush.bf16.msra.mxu0 %v1833
    %2412 = vmatpush.bf16.msra.mxu0 %v1831
    %2413 = vmatpush.bf16.msra.mxu0 %v1829
    %2414 = vmatpush.bf16.msra.mxu0 %v1827
    %2415 = vmatpush.bf16.msra.mxu0 %v1825
    %2416 = vmatpush.bf16.msra.mxu0 %v1823
    %2417 = vmatpush.bf16.msra.mxu0 %v1821
    %2418 = vmatmul.bf16.gmra.mxu0 %v1010
    %v2419 = vpop.f32.mrf.mxu0
    %v2420 = vadd.f32 %v2407, %v2419
    %v2421 = vpop.f32.mrf.mxu0
    %2422 = vdwg.mxu0
    %2423 = vmatpush.bf16.msra.mxu0 %v1851
    %2424 = vmatpush.bf16.msra.mxu0 %v1849
    %2425 = vmatpush.bf16.msra.mxu0 %v1847
    %2426 = vmatpush.bf16.msra.mxu0 %v1845
    %2427 = vmatpush.bf16.msra.mxu0 %v1843
    %2428 = vmatpush.bf16.msra.mxu0 %v1841
    %2429 = vmatpush.bf16.msra.mxu0 %v1839
    %2430 = vmatpush.bf16.msra.mxu0 %v1837
    %2431 = vmatmul.bf16.gmra.mxu0 %v1011
    %v2432 = vpop.f32.mrf.mxu0
    %v2433 = vadd.f32 %v2420, %v2432
    %v2434 = vpop.f32.mrf.mxu0
    %2435 = vdwg.mxu0
    %2436 = vmatpush.bf16.msra.mxu0 %v1867
    %2437 = vmatpush.bf16.msra.mxu0 %v1865
    %2438 = vmatpush.bf16.msra.mxu0 %v1863
    %2439 = vmatpush.bf16.msra.mxu0 %v1861
    %2440 = vmatpush.bf16.msra.mxu0 %v1859
    %2441 = vmatpush.bf16.msra.mxu0 %v1857
    %2442 = vmatpush.bf16.msra.mxu0 %v1855
    %2443 = vmatpush.bf16.msra.mxu0 %v1853
    %2444 = vmatmul.bf16.gmra.mxu0 %v1012
    %v2445 = vpop.f32.mrf.mxu0
    %v2446 = vadd.f32 %v2433, %v2445
    %v2447 = vpop.f32.mrf.mxu0
    %2448 = vdwg.mxu0
    %2449 = vmatpush.bf16.msra.mxu0 %v1883
    %2450 = vmatpush.bf16.msra.mxu0 %v1881
    %2451 = vmatpush.bf16.msra.mxu0 %v1879
    %2452 = vmatpush.bf16.msra.mxu0 %v1877
    %2453 = vmatpush.bf16.msra.mxu0 %v1875
    %2454 = vmatpush.bf16.msra.mxu0 %v1873
    %2455 = vmatpush.bf16.msra.mxu0 %v1871
    %2456 = vmatpush.bf16.msra.mxu0 %v1869
    %2457 = vmatmul.bf16.gmra.mxu0 %v1013
    %v2458 = vpop.f32.mrf.mxu0
    %v2459 = vadd.f32 %v2446, %v2458
    %v2460 = vpop.f32.mrf.mxu0
    %2461 = vdwg.mxu0
    %2462 = vmatpush.bf16.msra.mxu0 0
    %2463 = vmatpush.bf16.msra.mxu0 0
    %2464 = vmatpush.bf16.msra.mxu0 0
    %2465 = vmatpush.bf16.msra.mxu0 0
    %2466 = vmatpush.bf16.msra.mxu0 %v1891
    %2467 = vmatpush.bf16.msra.mxu0 %v1889
    %2468 = vmatpush.bf16.msra.mxu0 %v1887
    %2469 = vmatpush.bf16.msra.mxu0 %v1885
    %2470 = vmatmul.bf16.gmra.mxu0 %v2109
    %v2471 = vpop.f32.mrf.mxu0
    %v2472 = vadd.f32 %v2459, %v2471
    %v2473 = vpop.f32.mrf.mxu0
    %2474 = vdwg.mxu0
    %2476 = vset.pattern.permute.xlu0 0
    %2477 = vperm.xlu0 %2476, %v31
    %v2478 = vpop.permute.xlu0 %2477
    %v2480 = vadd.f32 %v2290, %v2478
    %v2481 = vadd.f32 %v2472, %v2478
    %v2482 = vxor.u32 %v2480, 2147483648
    %v2483 = vxor.u32 %v2481, 2147483648
    %v2484 = vmul.f32 %v2482, 1.442695
    %v2485 = vpow.pop %v2484
    %v2486 = vmul.f32 %v2483, 1.442695
    %v2487 = vpow.pop %v2486
    %v2488 = vadd.f32 %v2485, 1.0
    %v2489 = vadd.f32 %v2487, 1.0
    %v2490 = vrcp.pop %v2488
    %v2491 = vmul.f32 %v2488, %v2490
    %v2492 = vsub.f32 1.0, %v2491
    %v2493 = vmul.f32 %v2490, %v2492
    %v2494 = vadd.f32 %v2490, %v2493
    %vm2495 = vweird.f32 %v2488
    %vm2496 = vweird.f32 %v2490
    %vm2497 = vmor %vm2495, %vm2496
    %v2498 = vsel %vm2497, %v2490, %v2494
    %v2499 = vand.u32 2147483647, %v2488
    %vm2500 = vcmp.eq.f32.partialorder %v2499, 8.507059e+37
    %v2501 = vand.u32 %v2488, 2147483648
    %v2502 = vor.u32 1.1754944e-38, %v2501
    %v2503 = vsel %vm2500, %v2502, %v2498
    %v2504 = vmul.f32 1.0, %v2503
    %v2505 = vrcp.pop %v2489
    %v2506 = vmul.f32 %v2489, %v2505
    %v2507 = vsub.f32 1.0, %v2506
    %v2508 = vmul.f32 %v2505, %v2507
    %v2509 = vadd.f32 %v2505, %v2508
    %vm2510 = vweird.f32 %v2489
    %vm2511 = vweird.f32 %v2505
    %vm2512 = vmor %vm2510, %vm2511
    %v2513 = vsel %vm2512, %v2505, %v2509
    %v2514 = vand.u32 2147483647, %v2489
    %vm2515 = vcmp.eq.f32.partialorder %v2514, 8.507059e+37
    %v2516 = vand.u32 %v2489, 2147483648
    %v2517 = vor.u32 1.1754944e-38, %v2516
    %v2518 = vsel %vm2515, %v2517, %v2513
    %v2519 = vmul.f32 1.0, %v2518
    %v2522 = vrot.slane %v2504, 1
    %v2523 = vrot.slane %v2519, 1
    %v2526 = vmul.f32 %v2480, %v2522
    %v2527 = vmul.f32 %v2481, %v2523
    %v2528 = vld [vmem:[%s6] sm:$0xff]
    %v2529 = vld [vmem:[%s6 + $0x8] sm:$0xff]
    %v2530 = vld [vmem:[%s6 + $0x10] sm:$0xff]
    %v2531 = vld [vmem:[%s6 + $0x18] sm:$0xff]
    %v2532 = vld [vmem:[%s6 + $0x20] sm:$0xff]
    %v2533 = vld [vmem:[%s6 + $0x28] sm:$0xff]
    %v2534 = vld [vmem:[%s6 + $0x30] sm:$0xff]
    %v2535 = vld [vmem:[%s6 + $0x38] sm:$0xff]
    %v2536 = vld [vmem:[%s6 + $0x40] sm:$0xff]
    %v2537 = vld [vmem:[%s6 + $0x48] sm:$0xff]
    %v2538 = vld [vmem:[%s6 + $0x50] sm:$0xff]
    %v2539 = vld [vmem:[%s6 + $0x58] sm:$0xff]
    %v2540 = vld [vmem:[%s6 + $0x60] sm:$0xff]
    %v2541 = vld [vmem:[%s6 + $0x68] sm:$0xff]
    %v2542 = vld [vmem:[%s6 + $0x70] sm:$0xff]
    %v2543 = vld [vmem:[%s6 + $0x78] sm:$0xff]
    %v2544 = vld [vmem:[%s6 + $0x80] sm:$0xff]
    %v2545 = vld [vmem:[%s6 + $0x88] sm:$0xff]
    %v2546 = vld [vmem:[%s6 + $0x90] sm:$0xff]
    %v2547 = vld [vmem:[%s6 + $0x98] sm:$0xff]
    %v2548 = vld [vmem:[%s6 + $0xa0] sm:$0xff]
    %v2549 = vld [vmem:[%s6 + $0xa8] sm:$0xff]
    %v2550 = vld [vmem:[%s6 + $0xb0] sm:$0xff]
    %v2551 = vld [vmem:[%s6 + $0xb8] sm:$0xff]
    %v2552 = vld [vmem:[%s6 + $0xc0] sm:$0xff]
    %v2553 = vld [vmem:[%s6 + $0xc8] sm:$0xff]
    %v2554 = vld [vmem:[%s6 + $0xd0] sm:$0xff]
    %v2555 = vld [vmem:[%s6 + $0xd8] sm:$0xff]
    %v2556 = vld [vmem:[%s6 + $0xe0] sm:$0xff]
    %v2557 = vld [vmem:[%s6 + $0xe8] sm:$0xff]
    %v2558 = vld [vmem:[%s6 + $0xf0] sm:$0xff]
    %v2559 = vld [vmem:[%s6 + $0xf8] sm:$0xff]
    %v2560 = vld [vmem:[%s7] sm:$0x1]
    %2561 = vmatpush.msra.mxu0 %v2543
    %2562 = vmatpush.msra.mxu0 %v2542
    %2563 = vmatpush.msra.mxu0 %v2541
    %2564 = vmatpush.msra.mxu0 %v2540
    %2565 = vmatpush.msra.mxu0 %v2539
    %2566 = vmatpush.msra.mxu0 %v2538
    %2567 = vmatpush.msra.mxu0 %v2537
    %2568 = vmatpush.msra.mxu0 %v2536
    %2569 = vmatpush.msra.mxu0 %v2535
    %2570 = vmatpush.msra.mxu0 %v2534
    %2571 = vmatpush.msra.mxu0 %v2533
    %2572 = vmatpush.msra.mxu0 %v2532
    %2573 = vmatpush.msra.mxu0 %v2531
    %2574 = vmatpush.msra.mxu0 %v2530
    %2575 = vmatpush.msra.mxu0 %v2529
    %2576 = vmatpush.msra.mxu0 %v2528
    %2577 = vmatmul.f32.gmra.mxu0 %v2526
    %v2578 = vpop.f32.mrf.mxu0
    %v2579 = vadd.f32 %v2560, %v2578
    %2580 = vdwg.mxu0
    %2581 = vmatpush.msra.mxu0 %v2559
    %2582 = vmatpush.msra.mxu0 %v2558
    %2583 = vmatpush.msra.mxu0 %v2557
    %2584 = vmatpush.msra.mxu0 %v2556
    %2585 = vmatpush.msra.mxu0 %v2555
    %2586 = vmatpush.msra.mxu0 %v2554
    %2587 = vmatpush.msra.mxu0 %v2553
    %2588 = vmatpush.msra.mxu0 %v2552
    %2589 = vmatpush.msra.mxu0 %v2551
    %2590 = vmatpush.msra.mxu0 %v2550
    %2591 = vmatpush.msra.mxu0 %v2549
    %2592 = vmatpush.msra.mxu0 %v2548
    %2593 = vmatpush.msra.mxu0 %v2547
    %2594 = vmatpush.msra.mxu0 %v2546
    %2595 = vmatpush.msra.mxu0 %v2545
    %2596 = vmatpush.msra.mxu0 %v2544
    %2597 = vmatmul.f32.gmra.mxu0 %v2527
    %v2598 = vpop.f32.mrf.mxu0
    %v2599 = vadd.f32 %v2579, %v2598
    %2600 = vdwg.mxu0
    %v2601 = vld [vmem:[%s2] sm:$0x1]
    %v2602 = vxor.u32 %v2599, 2147483648
    %v2603 = vmul.f32 %v2602, 1.442695
    %v2604 = vpow.pop %v2603
    %v2605 = vadd.f32 %v2604, 1.0
    %v2606 = vrcp.pop %v2605
    %v2607 = vmul.f32 %v2605, %v2606
    %v2608 = vsub.f32 1.0, %v2607
    %v2609 = vmul.f32 %v2606, %v2608
    %v2610 = vadd.f32 %v2606, %v2609
    %vm2611 = vweird.f32 %v2605
    %vm2612 = vweird.f32 %v2606
    %vm2613 = vmor %vm2611, %vm2612
    %v2614 = vsel %vm2613, %v2606, %v2610
    %v2615 = vand.u32 2147483647, %v2605
    %vm2616 = vcmp.eq.f32.partialorder %v2615, 8.507059e+37
    %v2617 = vand.u32 %v2605, 2147483648
    %v2618 = vor.u32 1.1754944e-38, %v2617
    %v2619 = vsel %vm2616, %v2618, %v2614
    %v2620 = vmul.f32 1.0, %v2619
    %v2621 = vmul.f32 %v2601, %v2620
    %2622 = vst [vmem:[#allocation2] sm:$0x1] %v2621
    %v2623 = vld [vmem:[%s3] sm:$0xff]
    %v2624 = vld [vmem:[%s3 + $0x8] sm:$0x3f]
    %s2625 = scalar_lea.vmem %s0, 1728
    %v2626 = vld [vmem:[%s2625] sm:$0xff]
    %v2627 = vld [vmem:[%s2625 + $0x8] sm:$0xff]
    %v2628 = vld [vmem:[%s2625 + $0x10] sm:$0xff]
    %v2629 = vld [vmem:[%s2625 + $0x18] sm:$0xff]
    %v2630 = vld [vmem:[%s2625 + $0x20] sm:$0xff]
    %v2631 = vld [vmem:[%s2625 + $0x28] sm:$0xff]
    %v2632 = vld [vmem:[%s2625 + $0x30] sm:$0xff]
    %v2633 = vld [vmem:[%s2625 + $0x38] sm:$0xff]
    %v2634 = vld [vmem:[%s2625 + $0x40] sm:$0xff]
    %v2635 = vld [vmem:[%s2625 + $0x48] sm:$0xff]
    %v2636 = vld [vmem:[%s2625 + $0x50] sm:$0xff]
    %v2637 = vld [vmem:[%s2625 + $0x58] sm:$0xff]
    %v2638 = vld [vmem:[%s2625 + $0x60] sm:$0xff]
    %v2639 = vld [vmem:[%s2625 + $0x68] sm:$0xff]
    %v2640 = vld [vmem:[%s2625 + $0x70] sm:$0xff]
    %v2641 = vld [vmem:[%s2625 + $0x78] sm:$0xff]
    %v2642 = vld [vmem:[%s2625 + $0x80] sm:$0xff]
    %v2643 = vld [vmem:[%s2625 + $0x88] sm:$0xff]
    %v2644 = vld [vmem:[%s2625 + $0x90] sm:$0xff]
    %v2645 = vld [vmem:[%s2625 + $0x98] sm:$0xff]
    %v2646 = vld [vmem:[%s2625 + $0xa0] sm:$0xff]
    %v2647 = vld [vmem:[%s2625 + $0xa8] sm:$0xff]
    %v2648 = vld [vmem:[%s2625 + $0xb0] sm:$0xff]
    %v2649 = vld [vmem:[%s2625 + $0xb8] sm:$0xff]
    %v2650 = vld [vmem:[%s2625 + $0xc0] sm:$0xff]
    %v2651 = vld [vmem:[%s2625 + $0xc8] sm:$0xff]
    %v2652 = vld [vmem:[%s2625 + $0xd0] sm:$0xff]
    %v2653 = vld [vmem:[%s2625 + $0xd8] sm:$0xff]
    %v2654 = vld [vmem:[%s2625 + $0xe0] sm:$0xff]
    %v2655 = vld [vmem:[%s2625 + $0xe8] sm:$0xff]
    %v2656 = vld [vmem:[%s2625 + $0xf0] sm:$0xff]
    %v2657 = vld [vmem:[%s2625 + $0xf8] sm:$0xff]
    %v2658 = vld [vmem:[%s2625 + $0x100] sm:$0xff]
    %v2659 = vld [vmem:[%s2625 + $0x108] sm:$0xff]
    %v2660 = vld [vmem:[%s2625 + $0x110] sm:$0xff]
    %v2661 = vld [vmem:[%s2625 + $0x118] sm:$0xff]
    %v2662 = vld [vmem:[%s2625 + $0x120] sm:$0xff]
    %v2663 = vld [vmem:[%s2625 + $0x128] sm:$0xff]
    %v2664 = vld [vmem:[%s2625 + $0x130] sm:$0xff]
    %v2665 = vld [vmem:[%s2625 + $0x138] sm:$0xff]
    %v2666 = vld [vmem:[%s2625 + $0x140] sm:$0xff]
    %v2667 = vld [vmem:[%s2625 + $0x148] sm:$0xff]
    %v2668 = vld [vmem:[%s2625 + $0x150] sm:$0xff]
    %v2669 = vld [vmem:[%s2625 + $0x158] sm:$0xff]
    %v2670 = vld [vmem:[%s2625 + $0x160] sm:$0xff]
    %v2671 = vld [vmem:[%s2625 + $0x168] sm:$0xff]
    %v2672 = vld [vmem:[%s2625 + $0x170] sm:$0xff]
    %v2673 = vld [vmem:[%s2625 + $0x178] sm:$0xff]
    %v2674 = vld [vmem:[%s2625 + $0x180] sm:$0xff]
    %v2675 = vld [vmem:[%s2625 + $0x188] sm:$0xff]
    %v2676 = vld [vmem:[%s2625 + $0x190] sm:$0xff]
    %v2677 = vld [vmem:[%s2625 + $0x198] sm:$0xff]
    %v2678 = vld [vmem:[%s2625 + $0x1a0] sm:$0xff]
    %v2679 = vld [vmem:[%s2625 + $0x1a8] sm:$0xff]
    %v2680 = vld [vmem:[%s2625 + $0x1b0] sm:$0xff]
    %v2681 = vld [vmem:[%s2625 + $0x1b8] sm:$0xff]
    %v2682 = vld [vmem:[%s2625 + $0x1c0] sm:$0xff]
    %v2683 = vld [vmem:[%s2625 + $0x1c8] sm:$0xff]
    %v2684 = vld [vmem:[%s2625 + $0x1d0] sm:$0xff]
    %v2685 = vld [vmem:[%s2625 + $0x1d8] sm:$0xff]
    %v2686 = vld [vmem:[%s2625 + $0x1e0] sm:$0xff]
    %v2687 = vld [vmem:[%s2625 + $0x1e8] sm:$0xff]
    %v2688 = vld [vmem:[%s2625 + $0x1f0] sm:$0xff]
    %v2689 = vld [vmem:[%s2625 + $0x1f8] sm:$0xff]
    %v2690 = vld [vmem:[%s2625 + $0x200] sm:$0xff]
    %v2691 = vld [vmem:[%s2625 + $0x208] sm:$0xff]
    %v2692 = vld [vmem:[%s2625 + $0x210] sm:$0xff]
    %v2693 = vld [vmem:[%s2625 + $0x218] sm:$0xff]
    %v2694 = vld [vmem:[%s2625 + $0x220] sm:$0xff]
    %v2695 = vld [vmem:[%s2625 + $0x228] sm:$0xff]
    %v2696 = vld [vmem:[%s2625 + $0x230] sm:$0xff]
    %v2697 = vld [vmem:[%s2625 + $0x238] sm:$0xff]
    %v2698 = vld [vmem:[%s2625 + $0x240] sm:$0xff]
    %v2699 = vld [vmem:[%s2625 + $0x248] sm:$0xff]
    %v2700 = vld [vmem:[%s2625 + $0x250] sm:$0xff]
    %v2701 = vld [vmem:[%s2625 + $0x258] sm:$0xff]
    %v2702 = vld [vmem:[%s2625 + $0x260] sm:$0xff]
    %v2703 = vld [vmem:[%s2625 + $0x268] sm:$0xff]
    %v2704 = vld [vmem:[%s2625 + $0x270] sm:$0xff]
    %v2705 = vld [vmem:[%s2625 + $0x278] sm:$0xff]
    %v2706 = vld [vmem:[%s2625 + $0x280] sm:$0xff]
    %v2707 = vld [vmem:[%s2625 + $0x288] sm:$0xff]
    %v2708 = vld [vmem:[%s2625 + $0x290] sm:$0xff]
    %v2709 = vld [vmem:[%s2625 + $0x298] sm:$0xff]
    %v2710 = vld [vmem:[%s2625 + $0x2a0] sm:$0xff]
    %v2711 = vld [vmem:[%s2625 + $0x2a8] sm:$0xff]
    %v2712 = vld [vmem:[%s2625 + $0x2b0] sm:$0xff]
    %v2713 = vld [vmem:[%s2625 + $0x2b8] sm:$0xff]
    %v2714 = vld [vmem:[%s2625 + $0x2c0] sm:$0xff]
    %v2715 = vld [vmem:[%s2625 + $0x2c8] sm:$0xff]
    %v2716 = vld [vmem:[%s2625 + $0x2d0] sm:$0xff]
    %v2717 = vld [vmem:[%s2625 + $0x2d8] sm:$0xff]
    %v2718 = vld [vmem:[%s2625 + $0x2e0] sm:$0xff]
    %v2719 = vld [vmem:[%s2625 + $0x2e8] sm:$0xff]
    %v2720 = vld [vmem:[%s2625 + $0x2f0] sm:$0xff]
    %v2721 = vld [vmem:[%s2625 + $0x2f8] sm:$0xff]
    %v2722 = vld [vmem:[%s2625 + $0x300] sm:$0xff]
    %v2723 = vld [vmem:[%s2625 + $0x308] sm:$0xff]
    %v2724 = vld [vmem:[%s2625 + $0x310] sm:$0xff]
    %v2725 = vld [vmem:[%s2625 + $0x318] sm:$0xff]
    %v2726 = vld [vmem:[%s2625 + $0x320] sm:$0xff]
    %v2727 = vld [vmem:[%s2625 + $0x328] sm:$0xff]
    %v2728 = vld [vmem:[%s2625 + $0x330] sm:$0xff]
    %v2729 = vld [vmem:[%s2625 + $0x338] sm:$0xff]
    %v2730 = vld [vmem:[%s2625 + $0x340] sm:$0xff]
    %v2731 = vld [vmem:[%s2625 + $0x348] sm:$0xff]
    %v2732 = vld [vmem:[%s2625 + $0x350] sm:$0xff]
    %v2733 = vld [vmem:[%s2625 + $0x358] sm:$0xff]
    %v2734 = vld [vmem:[%s2625 + $0x360] sm:$0xff]
    %v2735 = vld [vmem:[%s2625 + $0x368] sm:$0xff]
    %v2736 = vld [vmem:[%s2625 + $0x370] sm:$0xff]
    %v2737 = vld [vmem:[%s2625 + $0x378] sm:$0xff]
    %v2738 = vld [vmem:[%s2625 + $0x380] sm:$0xff]
    %v2739 = vld [vmem:[%s2625 + $0x388] sm:$0xff]
    %v2740 = vld [vmem:[%s2625 + $0x390] sm:$0xff]
    %v2741 = vld [vmem:[%s2625 + $0x398] sm:$0xff]
    %v2742 = vld [vmem:[%s2625 + $0x3a0] sm:$0xff]
    %v2743 = vld [vmem:[%s2625 + $0x3a8] sm:$0xff]
    %v2744 = vld [vmem:[%s2625 + $0x3b0] sm:$0xff]
    %v2745 = vld [vmem:[%s2625 + $0x3b8] sm:$0xff]
    %v2746 = vld [vmem:[%s2625 + $0x3c0] sm:$0xff]
    %v2747 = vld [vmem:[%s2625 + $0x3c8] sm:$0xff]
    %v2748 = vld [vmem:[%s2625 + $0x3d0] sm:$0xff]
    %v2749 = vld [vmem:[%s2625 + $0x3d8] sm:$0xff]
    %v2750 = vld [vmem:[%s2625 + $0x3e0] sm:$0xff]
    %v2751 = vld [vmem:[%s2625 + $0x3e8] sm:$0xff]
    %v2752 = vld [vmem:[%s2625 + $0x3f0] sm:$0xff]
    %v2753 = vld [vmem:[%s2625 + $0x3f8] sm:$0xff]
    %v2754 = vld [vmem:[%s2625 + $0x400] sm:$0xff]
    %v2755 = vld [vmem:[%s2625 + $0x408] sm:$0xff]
    %v2756 = vld [vmem:[%s2625 + $0x410] sm:$0xff]
    %v2757 = vld [vmem:[%s2625 + $0x418] sm:$0xff]
    %v2758 = vld [vmem:[%s2625 + $0x420] sm:$0xff]
    %v2759 = vld [vmem:[%s2625 + $0x428] sm:$0xff]
    %v2760 = vld [vmem:[%s2625 + $0x430] sm:$0xff]
    %v2761 = vld [vmem:[%s2625 + $0x438] sm:$0xff]
    %v2762 = vld [vmem:[%s2625 + $0x440] sm:$0xff]
    %v2763 = vld [vmem:[%s2625 + $0x448] sm:$0xff]
    %v2764 = vld [vmem:[%s2625 + $0x450] sm:$0xff]
    %v2765 = vld [vmem:[%s2625 + $0x458] sm:$0xff]
    %v2766 = vld [vmem:[%s2625 + $0x460] sm:$0xff]
    %v2767 = vld [vmem:[%s2625 + $0x468] sm:$0xff]
    %v2768 = vld [vmem:[%s2625 + $0x470] sm:$0xff]
    %v2769 = vld [vmem:[%s2625 + $0x478] sm:$0xff]
    %v2770 = vld [vmem:[%s2625 + $0x480] sm:$0xff]
    %v2771 = vld [vmem:[%s2625 + $0x488] sm:$0xff]
    %v2772 = vld [vmem:[%s2625 + $0x490] sm:$0xff]
    %v2773 = vld [vmem:[%s2625 + $0x498] sm:$0xff]
    %v2774 = vld [vmem:[%s2625 + $0x4a0] sm:$0xff]
    %v2775 = vld [vmem:[%s2625 + $0x4a8] sm:$0xff]
    %v2776 = vld [vmem:[%s2625 + $0x4b0] sm:$0xff]
    %v2777 = vld [vmem:[%s2625 + $0x4b8] sm:$0xff]
    %v2778 = vld [vmem:[%s2625 + $0x4c0] sm:$0xff]
    %v2779 = vld [vmem:[%s2625 + $0x4c8] sm:$0xff]
    %v2780 = vld [vmem:[%s2625 + $0x4d0] sm:$0xff]
    %v2781 = vld [vmem:[%s2625 + $0x4d8] sm:$0xff]
    %v2782 = vld [vmem:[%s2625 + $0x4e0] sm:$0xff]
    %v2783 = vld [vmem:[%s2625 + $0x4e8] sm:$0xff]
    %v2784 = vld [vmem:[%s2625 + $0x4f0] sm:$0xff]
    %v2785 = vld [vmem:[%s2625 + $0x4f8] sm:$0xff]
    %v2786 = vld [vmem:[%s2625 + $0x500] sm:$0xff]
    %v2787 = vld [vmem:[%s2625 + $0x508] sm:$0xff]
    %v2788 = vld [vmem:[%s2625 + $0x510] sm:$0xff]
    %v2789 = vld [vmem:[%s2625 + $0x518] sm:$0xff]
    %v2790 = vld [vmem:[%s2625 + $0x520] sm:$0xff]
    %v2791 = vld [vmem:[%s2625 + $0x528] sm:$0xff]
    %v2792 = vld [vmem:[%s2625 + $0x530] sm:$0xff]
    %v2793 = vld [vmem:[%s2625 + $0x538] sm:$0xff]
    %v2794 = vld [vmem:[%s2625 + $0x540] sm:$0xff]
    %v2795 = vld [vmem:[%s2625 + $0x548] sm:$0xff]
    %v2796 = vld [vmem:[%s2625 + $0x550] sm:$0xff]
    %v2797 = vld [vmem:[%s2625 + $0x558] sm:$0xff]
    %v2798 = vld [vmem:[%s2625 + $0x560] sm:$0xff]
    %v2799 = vld [vmem:[%s2625 + $0x568] sm:$0xff]
    %v2800 = vld [vmem:[%s2625 + $0x570] sm:$0xff]
    %v2801 = vld [vmem:[%s2625 + $0x578] sm:$0xff]
    %v2802 = vld [vmem:[%s2625 + $0x580] sm:$0xff]
    %v2803 = vld [vmem:[%s2625 + $0x588] sm:$0xff]
    %v2804 = vld [vmem:[%s2625 + $0x590] sm:$0xff]
    %v2805 = vld [vmem:[%s2625 + $0x598] sm:$0xff]
    %v2806 = vld [vmem:[%s2625 + $0x5a0] sm:$0xff]
    %v2807 = vld [vmem:[%s2625 + $0x5a8] sm:$0xff]
    %v2808 = vld [vmem:[%s2625 + $0x5b0] sm:$0xff]
    %v2809 = vld [vmem:[%s2625 + $0x5b8] sm:$0xff]
    %v2810 = vld [vmem:[%s2625 + $0x5c0] sm:$0xff]
    %v2811 = vld [vmem:[%s2625 + $0x5c8] sm:$0xff]
    %v2812 = vld [vmem:[%s2625 + $0x5d0] sm:$0xff]
    %v2813 = vld [vmem:[%s2625 + $0x5d8] sm:$0xff]
    %v2814 = vld [vmem:[%s2625 + $0x5e0] sm:$0xff]
    %v2815 = vld [vmem:[%s2625 + $0x5e8] sm:$0xff]
    %v2816 = vld [vmem:[%s2625 + $0x5f0] sm:$0xff]
    %v2817 = vld [vmem:[%s2625 + $0x5f8] sm:$0xff]
    %v2818 = vld [vmem:[%s2625 + $0x600] sm:$0xff]
    %v2819 = vld [vmem:[%s2625 + $0x608] sm:$0xff]
    %v2820 = vld [vmem:[%s2625 + $0x610] sm:$0xff]
    %v2821 = vld [vmem:[%s2625 + $0x618] sm:$0xff]
    %v2822 = vld [vmem:[%s2625 + $0x620] sm:$0xff]
    %v2823 = vld [vmem:[%s2625 + $0x628] sm:$0xff]
    %v2824 = vld [vmem:[%s2625 + $0x630] sm:$0xff]
    %v2825 = vld [vmem:[%s2625 + $0x638] sm:$0xff]
    %v2826 = vld [vmem:[%s2625 + $0x640] sm:$0xff]
    %v2827 = vld [vmem:[%s2625 + $0x648] sm:$0xff]
    %v2828 = vld [vmem:[%s2625 + $0x650] sm:$0xff]
    %v2829 = vld [vmem:[%s2625 + $0x658] sm:$0xff]
    %v2830 = vld [vmem:[%s2625 + $0x660] sm:$0xff]
    %v2831 = vld [vmem:[%s2625 + $0x668] sm:$0xff]
    %v2832 = vld [vmem:[%s2625 + $0x670] sm:$0xff]
    %v2833 = vld [vmem:[%s2625 + $0x678] sm:$0xff]
    %v2834 = vld [vmem:[%s2625 + $0x680] sm:$0xff]
    %v2835 = vld [vmem:[%s2625 + $0x688] sm:$0xff]
    %v2836 = vld [vmem:[%s2625 + $0x690] sm:$0xff]
    %v2837 = vld [vmem:[%s2625 + $0x698] sm:$0xff]
    %v2838 = vld [vmem:[%s2625 + $0x6a0] sm:$0xff]
    %v2839 = vld [vmem:[%s2625 + $0x6a8] sm:$0xff]
    %v2840 = vld [vmem:[%s2625 + $0x6b0] sm:$0xff]
    %v2841 = vld [vmem:[%s2625 + $0x6b8] sm:$0xff]
    %v2842 = vld [vmem:[%s4] sm:$0x3f]
    %s2843 = scalar_lea.vmem %s1, 768
    %v2844 = vld [vmem:[%s2843] sm:$0xff]
    %v2845 = vld [vmem:[%s2843 + $0x8] sm:$0xff]
    %v2846 = vld [vmem:[%s2843 + $0x10] sm:$0xff]
    %v2847 = vld [vmem:[%s2843 + $0x18] sm:$0xff]
    %v2848 = vld [vmem:[%s2843 + $0x20] sm:$0xff]
    %v2849 = vld [vmem:[%s2843 + $0x28] sm:$0xff]
    %v2850 = vld [vmem:[%s2843 + $0x30] sm:$0xff]
    %v2851 = vld [vmem:[%s2843 + $0x38] sm:$0xff]
    %v2852 = vld [vmem:[%s2843 + $0x40] sm:$0xff]
    %v2853 = vld [vmem:[%s2843 + $0x48] sm:$0xff]
    %v2854 = vld [vmem:[%s2843 + $0x50] sm:$0xff]
    %v2855 = vld [vmem:[%s2843 + $0x58] sm:$0xff]
    %v2856 = vld [vmem:[%s2843 + $0x60] sm:$0xff]
    %v2857 = vld [vmem:[%s2843 + $0x68] sm:$0xff]
    %v2858 = vld [vmem:[%s2843 + $0x70] sm:$0xff]
    %v2859 = vld [vmem:[%s2843 + $0x78] sm:$0xff]
    %v2860 = vld [vmem:[%s2843 + $0x80] sm:$0xff]
    %v2861 = vld [vmem:[%s2843 + $0x88] sm:$0xff]
    %v2862 = vld [vmem:[%s2843 + $0x90] sm:$0xff]
    %v2863 = vld [vmem:[%s2843 + $0x98] sm:$0xff]
    %v2864 = vld [vmem:[%s2843 + $0xa0] sm:$0xff]
    %v2865 = vld [vmem:[%s2843 + $0xa8] sm:$0xff]
    %v2866 = vld [vmem:[%s2843 + $0xb0] sm:$0xff]
    %v2867 = vld [vmem:[%s2843 + $0xb8] sm:$0xff]
    %v2868 = vld [vmem:[%s2843 + $0xc0] sm:$0xff]
    %v2869 = vld [vmem:[%s2843 + $0xc8] sm:$0xff]
    %v2870 = vld [vmem:[%s2843 + $0xd0] sm:$0xff]
    %v2871 = vld [vmem:[%s2843 + $0xd8] sm:$0xff]
    %v2872 = vld [vmem:[%s2843 + $0xe0] sm:$0xff]
    %v2873 = vld [vmem:[%s2843 + $0xe8] sm:$0xff]
    %v2874 = vld [vmem:[%s2843 + $0xf0] sm:$0xff]
    %v2875 = vld [vmem:[%s2843 + $0xf8] sm:$0xff]
    %v2876 = vld [vmem:[%s2843 + $0x100] sm:$0xff]
    %v2877 = vld [vmem:[%s2843 + $0x108] sm:$0xff]
    %v2878 = vld [vmem:[%s2843 + $0x110] sm:$0xff]
    %v2879 = vld [vmem:[%s2843 + $0x118] sm:$0xff]
    %v2880 = vld [vmem:[%s2843 + $0x120] sm:$0xff]
    %v2881 = vld [vmem:[%s2843 + $0x128] sm:$0xff]
    %v2882 = vld [vmem:[%s2843 + $0x130] sm:$0xff]
    %v2883 = vld [vmem:[%s2843 + $0x138] sm:$0xff]
    %v2884 = vld [vmem:[%s2843 + $0x140] sm:$0xff]
    %v2885 = vld [vmem:[%s2843 + $0x148] sm:$0xff]
    %v2886 = vld [vmem:[%s2843 + $0x150] sm:$0xff]
    %v2887 = vld [vmem:[%s2843 + $0x158] sm:$0xff]
    %v2888 = vld [vmem:[%s2843 + $0x160] sm:$0xff]
    %v2889 = vld [vmem:[%s2843 + $0x168] sm:$0xff]
    %v2890 = vld [vmem:[%s2843 + $0x170] sm:$0xff]
    %v2891 = vld [vmem:[%s2843 + $0x178] sm:$0xff]
    %v2892 = vld [vmem:[%s2843 + $0x180] sm:$0xff]
    %v2893 = vld [vmem:[%s2843 + $0x188] sm:$0xff]
    %v2894 = vld [vmem:[%s2843 + $0x190] sm:$0xff]
    %v2895 = vld [vmem:[%s2843 + $0x198] sm:$0xff]
    %v2896 = vld [vmem:[%s2843 + $0x1a0] sm:$0xff]
    %v2897 = vld [vmem:[%s2843 + $0x1a8] sm:$0xff]
    %v2898 = vld [vmem:[%s2843 + $0x1b0] sm:$0xff]
    %v2899 = vld [vmem:[%s2843 + $0x1b8] sm:$0xff]
    %v2900 = vld [vmem:[%s2843 + $0x1c0] sm:$0xff]
    %v2901 = vld [vmem:[%s2843 + $0x1c8] sm:$0xff]
    %v2902 = vld [vmem:[%s2843 + $0x1d0] sm:$0xff]
    %v2903 = vld [vmem:[%s2843 + $0x1d8] sm:$0xff]
    %v2904 = vld [vmem:[%s2843 + $0x1e0] sm:$0xff]
    %v2905 = vld [vmem:[%s2843 + $0x1e8] sm:$0xff]
    %v2906 = vld [vmem:[%s2843 + $0x1f0] sm:$0xff]
    %v2907 = vld [vmem:[%s2843 + $0x1f8] sm:$0xff]
    %v2908 = vld [vmem:[%s2843 + $0x200] sm:$0xff]
    %v2909 = vld [vmem:[%s2843 + $0x208] sm:$0xff]
    %v2910 = vld [vmem:[%s2843 + $0x210] sm:$0xff]
    %v2911 = vld [vmem:[%s2843 + $0x218] sm:$0xff]
    %v2912 = vld [vmem:[%s2843 + $0x220] sm:$0xff]
    %v2913 = vld [vmem:[%s2843 + $0x228] sm:$0xff]
    %v2914 = vld [vmem:[%s2843 + $0x230] sm:$0xff]
    %v2915 = vld [vmem:[%s2843 + $0x238] sm:$0xff]
    %v2916 = vld [vmem:[%s2843 + $0x240] sm:$0xff]
    %v2917 = vld [vmem:[%s2843 + $0x248] sm:$0xff]
    %v2918 = vld [vmem:[%s2843 + $0x250] sm:$0xff]
    %v2919 = vld [vmem:[%s2843 + $0x258] sm:$0xff]
    %v2920 = vld [vmem:[%s2843 + $0x260] sm:$0xff]
    %v2921 = vld [vmem:[%s2843 + $0x268] sm:$0xff]
    %v2922 = vld [vmem:[%s2843 + $0x270] sm:$0xff]
    %v2923 = vld [vmem:[%s2843 + $0x278] sm:$0xff]
    %v2924 = vld [vmem:[%s2843 + $0x280] sm:$0xff]
    %v2925 = vld [vmem:[%s2843 + $0x288] sm:$0xff]
    %v2926 = vld [vmem:[%s2843 + $0x290] sm:$0xff]
    %v2927 = vld [vmem:[%s2843 + $0x298] sm:$0xff]
    %v2928 = vld [vmem:[%s2843 + $0x2a0] sm:$0xff]
    %v2929 = vld [vmem:[%s2843 + $0x2a8] sm:$0xff]
    %v2930 = vld [vmem:[%s2843 + $0x2b0] sm:$0xff]
    %v2931 = vld [vmem:[%s2843 + $0x2b8] sm:$0xff]
    %v2932 = vld [vmem:[%s2843 + $0x2c0] sm:$0xff]
    %v2933 = vld [vmem:[%s2843 + $0x2c8] sm:$0xff]
    %v2934 = vld [vmem:[%s2843 + $0x2d0] sm:$0xff]
    %v2935 = vld [vmem:[%s2843 + $0x2d8] sm:$0xff]
    %v2936 = vld [vmem:[%s2843 + $0x2e0] sm:$0xff]
    %v2937 = vld [vmem:[%s2843 + $0x2e8] sm:$0xff]
    %v2938 = vld [vmem:[%s2843 + $0x2f0] sm:$0xff]
    %v2939 = vld [vmem:[%s2843 + $0x2f8] sm:$0xff]
    %2941 = vst [vmem:[#allocation1] ss:$9 sm:$0xff] %v2842
    %v2942 = vld [vmem:[#allocation1] sm:$0xff]
    %v2943 = vld [vmem:[#allocation1 + $0x9] sm:$0xff]
    %v2944 = vld [vmem:[#allocation1 + $0x12] sm:$0xff]
    %v2945 = vld [vmem:[#allocation1 + $0x1b] sm:$0xff]
    %v2946 = vld [vmem:[#allocation1 + $0x24] sm:$0xff]
    %v2947 = vld [vmem:[#allocation1 + $0x2d] sm:$0xff]
    %v3050 = vunpack.c.l.b16 %v2844
    %v3051 = vunpack.c.h.b16 %v2844
    %v3052 = vunpack.c.l.b16 %v2845
    %v3053 = vunpack.c.h.b16 %v2845
    %v3054 = vunpack.c.l.b16 %v2846
    %v3055 = vunpack.c.h.b16 %v2846
    %v3056 = vunpack.c.l.b16 %v2847
    %v3057 = vunpack.c.h.b16 %v2847
    %v3058 = vunpack.c.l.b16 %v2848
    %v3059 = vunpack.c.h.b16 %v2848
    %v3060 = vunpack.c.l.b16 %v2849
    %v3061 = vunpack.c.h.b16 %v2849
    %v3062 = vunpack.c.l.b16 %v2850
    %v3063 = vunpack.c.h.b16 %v2850
    %v3064 = vunpack.c.l.b16 %v2851
    %v3065 = vunpack.c.h.b16 %v2851
    %v3066 = vunpack.c.l.b16 %v2852
    %v3067 = vunpack.c.h.b16 %v2852
    %v3068 = vunpack.c.l.b16 %v2853
    %v3069 = vunpack.c.h.b16 %v2853
    %v3070 = vunpack.c.l.b16 %v2854
    %v3071 = vunpack.c.h.b16 %v2854
    %v3072 = vunpack.c.l.b16 %v2855
    %v3073 = vunpack.c.h.b16 %v2855
    %v3074 = vunpack.c.l.b16 %v2856
    %v3075 = vunpack.c.h.b16 %v2856
    %v3076 = vunpack.c.l.b16 %v2857
    %v3077 = vunpack.c.h.b16 %v2857
    %v3078 = vunpack.c.l.b16 %v2858
    %v3079 = vunpack.c.h.b16 %v2858
    %v3080 = vunpack.c.l.b16 %v2859
    %v3081 = vunpack.c.h.b16 %v2859
    %v3082 = vunpack.c.l.b16 %v2860
    %v3083 = vunpack.c.h.b16 %v2860
    %v3084 = vunpack.c.l.b16 %v2861
    %v3085 = vunpack.c.h.b16 %v2861
    %v3086 = vunpack.c.l.b16 %v2862
    %v3087 = vunpack.c.h.b16 %v2862
    %v3088 = vunpack.c.l.b16 %v2863
    %v3089 = vunpack.c.h.b16 %v2863
    %v3090 = vunpack.c.l.b16 %v2864
    %v3091 = vunpack.c.h.b16 %v2864
    %v3092 = vunpack.c.l.b16 %v2865
    %v3093 = vunpack.c.h.b16 %v2865
    %v3094 = vunpack.c.l.b16 %v2866
    %v3095 = vunpack.c.h.b16 %v2866
    %v3096 = vunpack.c.l.b16 %v2867
    %v3097 = vunpack.c.h.b16 %v2867
    %v3098 = vunpack.c.l.b16 %v2868
    %v3099 = vunpack.c.h.b16 %v2868
    %v3100 = vunpack.c.l.b16 %v2869
    %v3101 = vunpack.c.h.b16 %v2869
    %v3102 = vunpack.c.l.b16 %v2870
    %v3103 = vunpack.c.h.b16 %v2870
    %v3104 = vunpack.c.l.b16 %v2871
    %v3105 = vunpack.c.h.b16 %v2871
    %v3106 = vunpack.c.l.b16 %v2872
    %v3107 = vunpack.c.h.b16 %v2872
    %v3108 = vunpack.c.l.b16 %v2873
    %v3109 = vunpack.c.h.b16 %v2873
    %v3110 = vunpack.c.l.b16 %v2874
    %v3111 = vunpack.c.h.b16 %v2874
    %v3112 = vunpack.c.l.b16 %v2875
    %v3113 = vunpack.c.h.b16 %v2875
    %v3114 = vunpack.c.l.b16 %v2876
    %v3115 = vunpack.c.h.b16 %v2876
    %v3116 = vunpack.c.l.b16 %v2877
    %v3117 = vunpack.c.h.b16 %v2877
    %v3118 = vunpack.c.l.b16 %v2878
    %v3119 = vunpack.c.h.b16 %v2878
    %v3120 = vunpack.c.l.b16 %v2879
    %v3121 = vunpack.c.h.b16 %v2879
    %v3122 = vunpack.c.l.b16 %v2880
    %v3123 = vunpack.c.h.b16 %v2880
    %v3124 = vunpack.c.l.b16 %v2881
    %v3125 = vunpack.c.h.b16 %v2881
    %v3126 = vunpack.c.l.b16 %v2882
    %v3127 = vunpack.c.h.b16 %v2882
    %v3128 = vunpack.c.l.b16 %v2883
    %v3129 = vunpack.c.h.b16 %v2883
    %v3130 = vunpack.c.l.b16 %v2884
    %v3131 = vunpack.c.h.b16 %v2884
    %v3132 = vunpack.c.l.b16 %v2885
    %v3133 = vunpack.c.h.b16 %v2885
    %v3134 = vunpack.c.l.b16 %v2886
    %v3135 = vunpack.c.h.b16 %v2886
    %v3136 = vunpack.c.l.b16 %v2887
    %v3137 = vunpack.c.h.b16 %v2887
    %v3138 = vunpack.c.l.b16 %v2888
    %v3139 = vunpack.c.h.b16 %v2888
    %v3140 = vunpack.c.l.b16 %v2889
    %v3141 = vunpack.c.h.b16 %v2889
    %v3142 = vunpack.c.l.b16 %v2890
    %v3143 = vunpack.c.h.b16 %v2890
    %v3144 = vunpack.c.l.b16 %v2891
    %v3145 = vunpack.c.h.b16 %v2891
    %v3146 = vunpack.c.l.b16 %v2892
    %v3147 = vunpack.c.h.b16 %v2892
    %v3148 = vunpack.c.l.b16 %v2893
    %v3149 = vunpack.c.h.b16 %v2893
    %v3150 = vunpack.c.l.b16 %v2894
    %v3151 = vunpack.c.h.b16 %v2894
    %v3152 = vunpack.c.l.b16 %v2895
    %v3153 = vunpack.c.h.b16 %v2895
    %v3154 = vunpack.c.l.b16 %v2896
    %v3155 = vunpack.c.h.b16 %v2896
    %v3156 = vunpack.c.l.b16 %v2897
    %v3157 = vunpack.c.h.b16 %v2897
    %v3158 = vunpack.c.l.b16 %v2898
    %v3159 = vunpack.c.h.b16 %v2898
    %v3160 = vunpack.c.l.b16 %v2899
    %v3161 = vunpack.c.h.b16 %v2899
    %v3162 = vunpack.c.l.b16 %v2900
    %v3163 = vunpack.c.h.b16 %v2900
    %v3164 = vunpack.c.l.b16 %v2901
    %v3165 = vunpack.c.h.b16 %v2901
    %v3166 = vunpack.c.l.b16 %v2902
    %v3167 = vunpack.c.h.b16 %v2902
    %v3168 = vunpack.c.l.b16 %v2903
    %v3169 = vunpack.c.h.b16 %v2903
    %v3170 = vunpack.c.l.b16 %v2904
    %v3171 = vunpack.c.h.b16 %v2904
    %v3172 = vunpack.c.l.b16 %v2905
    %v3173 = vunpack.c.h.b16 %v2905
    %v3174 = vunpack.c.l.b16 %v2906
    %v3175 = vunpack.c.h.b16 %v2906
    %v3176 = vunpack.c.l.b16 %v2907
    %v3177 = vunpack.c.h.b16 %v2907
    %v3178 = vunpack.c.l.b16 %v2908
    %v3179 = vunpack.c.h.b16 %v2908
    %v3180 = vunpack.c.l.b16 %v2909
    %v3181 = vunpack.c.h.b16 %v2909
    %v3182 = vunpack.c.l.b16 %v2910
    %v3183 = vunpack.c.h.b16 %v2910
    %v3184 = vunpack.c.l.b16 %v2911
    %v3185 = vunpack.c.h.b16 %v2911
    %v3186 = vunpack.c.l.b16 %v2912
    %v3187 = vunpack.c.h.b16 %v2912
    %v3188 = vunpack.c.l.b16 %v2913
    %v3189 = vunpack.c.h.b16 %v2913
    %v3190 = vunpack.c.l.b16 %v2914
    %v3191 = vunpack.c.h.b16 %v2914
    %v3192 = vunpack.c.l.b16 %v2915
    %v3193 = vunpack.c.h.b16 %v2915
    %v3194 = vunpack.c.l.b16 %v2916
    %v3195 = vunpack.c.h.b16 %v2916
    %v3196 = vunpack.c.l.b16 %v2917
    %v3197 = vunpack.c.h.b16 %v2917
    %v3198 = vunpack.c.l.b16 %v2918
    %v3199 = vunpack.c.h.b16 %v2918
    %v3200 = vunpack.c.l.b16 %v2919
    %v3201 = vunpack.c.h.b16 %v2919
    %v3202 = vunpack.c.l.b16 %v2920
    %v3203 = vunpack.c.h.b16 %v2920
    %v3204 = vunpack.c.l.b16 %v2921
    %v3205 = vunpack.c.h.b16 %v2921
    %v3206 = vunpack.c.l.b16 %v2922
    %v3207 = vunpack.c.h.b16 %v2922
    %v3208 = vunpack.c.l.b16 %v2923
    %v3209 = vunpack.c.h.b16 %v2923
    %v3210 = vunpack.c.l.b16 %v2924
    %v3211 = vunpack.c.h.b16 %v2924
    %v3212 = vunpack.c.l.b16 %v2925
    %v3213 = vunpack.c.h.b16 %v2925
    %v3214 = vunpack.c.l.b16 %v2926
    %v3215 = vunpack.c.h.b16 %v2926
    %v3216 = vunpack.c.l.b16 %v2927
    %v3217 = vunpack.c.h.b16 %v2927
    %v3218 = vunpack.c.l.b16 %v2928
    %v3219 = vunpack.c.h.b16 %v2928
    %v3220 = vunpack.c.l.b16 %v2929
    %v3221 = vunpack.c.h.b16 %v2929
    %v3222 = vunpack.c.l.b16 %v2930
    %v3223 = vunpack.c.h.b16 %v2930
    %v3224 = vunpack.c.l.b16 %v2931
    %v3225 = vunpack.c.h.b16 %v2931
    %v3226 = vunpack.c.l.b16 %v2932
    %v3227 = vunpack.c.h.b16 %v2932
    %v3228 = vunpack.c.l.b16 %v2933
    %v3229 = vunpack.c.h.b16 %v2933
    %v3230 = vunpack.c.l.b16 %v2934
    %v3231 = vunpack.c.h.b16 %v2934
    %v3232 = vunpack.c.l.b16 %v2935
    %v3233 = vunpack.c.h.b16 %v2935
    %v3234 = vunpack.c.l.b16 %v2936
    %v3235 = vunpack.c.h.b16 %v2936
    %v3236 = vunpack.c.l.b16 %v2937
    %v3237 = vunpack.c.h.b16 %v2937
    %v3238 = vunpack.c.l.b16 %v2938
    %v3239 = vunpack.c.h.b16 %v2938
    %v3240 = vunpack.c.l.b16 %v2939
    %v3241 = vunpack.c.h.b16 %v2939
    %v3242 = vpack.c.b16 %v3052, %v3050
    %v3243 = vpack.c.b16 %v3053, %v3051
    %v3244 = vpack.c.b16 %v3056, %v3054
    %v3245 = vpack.c.b16 %v3057, %v3055
    %v3246 = vpack.c.b16 %v3060, %v3058
    %v3247 = vpack.c.b16 %v3061, %v3059
    %v3248 = vpack.c.b16 %v3064, %v3062
    %v3249 = vpack.c.b16 %v3065, %v3063
    %v3250 = vpack.c.b16 %v3068, %v3066
    %v3251 = vpack.c.b16 %v3069, %v3067
    %v3252 = vpack.c.b16 %v3072, %v3070
    %v3253 = vpack.c.b16 %v3073, %v3071
    %v3254 = vpack.c.b16 %v3076, %v3074
    %v3255 = vpack.c.b16 %v3077, %v3075
    %v3256 = vpack.c.b16 %v3080, %v3078
    %v3257 = vpack.c.b16 %v3081, %v3079
    %v3258 = vpack.c.b16 %v3084, %v3082
    %v3259 = vpack.c.b16 %v3085, %v3083
    %v3260 = vpack.c.b16 %v3088, %v3086
    %v3261 = vpack.c.b16 %v3089, %v3087
    %v3262 = vpack.c.b16 %v3092, %v3090
    %v3263 = vpack.c.b16 %v3093, %v3091
    %v3264 = vpack.c.b16 %v3096, %v3094
    %v3265 = vpack.c.b16 %v3097, %v3095
    %v3266 = vpack.c.b16 %v3100, %v3098
    %v3267 = vpack.c.b16 %v3101, %v3099
    %v3268 = vpack.c.b16 %v3104, %v3102
    %v3269 = vpack.c.b16 %v3105, %v3103
    %v3270 = vpack.c.b16 %v3108, %v3106
    %v3271 = vpack.c.b16 %v3109, %v3107
    %v3272 = vpack.c.b16 %v3112, %v3110
    %v3273 = vpack.c.b16 %v3113, %v3111
    %v3274 = vpack.c.b16 %v3116, %v3114
    %v3275 = vpack.c.b16 %v3117, %v3115
    %v3276 = vpack.c.b16 %v3120, %v3118
    %v3277 = vpack.c.b16 %v3121, %v3119
    %v3278 = vpack.c.b16 %v3124, %v3122
    %v3279 = vpack.c.b16 %v3125, %v3123
    %v3280 = vpack.c.b16 %v3128, %v3126
    %v3281 = vpack.c.b16 %v3129, %v3127
    %v3282 = vpack.c.b16 %v3132, %v3130
    %v3283 = vpack.c.b16 %v3133, %v3131
    %v3284 = vpack.c.b16 %v3136, %v3134
    %v3285 = vpack.c.b16 %v3137, %v3135
    %v3286 = vpack.c.b16 %v3140, %v3138
    %v3287 = vpack.c.b16 %v3141, %v3139
    %v3288 = vpack.c.b16 %v3144, %v3142
    %v3289 = vpack.c.b16 %v3145, %v3143
    %v3290 = vpack.c.b16 %v3148, %v3146
    %v3291 = vpack.c.b16 %v3149, %v3147
    %v3292 = vpack.c.b16 %v3152, %v3150
    %v3293 = vpack.c.b16 %v3153, %v3151
    %v3294 = vpack.c.b16 %v3156, %v3154
    %v3295 = vpack.c.b16 %v3157, %v3155
    %v3296 = vpack.c.b16 %v3160, %v3158
    %v3297 = vpack.c.b16 %v3161, %v3159
    %v3298 = vpack.c.b16 %v3164, %v3162
    %v3299 = vpack.c.b16 %v3165, %v3163
    %v3300 = vpack.c.b16 %v3168, %v3166
    %v3301 = vpack.c.b16 %v3169, %v3167
    %v3302 = vpack.c.b16 %v3172, %v3170
    %v3303 = vpack.c.b16 %v3173, %v3171
    %v3304 = vpack.c.b16 %v3176, %v3174
    %v3305 = vpack.c.b16 %v3177, %v3175
    %v3306 = vpack.c.b16 %v3180, %v3178
    %v3307 = vpack.c.b16 %v3181, %v3179
    %v3308 = vpack.c.b16 %v3184, %v3182
    %v3309 = vpack.c.b16 %v3185, %v3183
    %v3310 = vpack.c.b16 %v3188, %v3186
    %v3311 = vpack.c.b16 %v3189, %v3187
    %v3312 = vpack.c.b16 %v3192, %v3190
    %v3313 = vpack.c.b16 %v3193, %v3191
    %v3314 = vpack.c.b16 %v3196, %v3194
    %v3315 = vpack.c.b16 %v3197, %v3195
    %v3316 = vpack.c.b16 %v3200, %v3198
    %v3317 = vpack.c.b16 %v3201, %v3199
    %v3318 = vpack.c.b16 %v3204, %v3202
    %v3319 = vpack.c.b16 %v3205, %v3203
    %v3320 = vpack.c.b16 %v3208, %v3206
    %v3321 = vpack.c.b16 %v3209, %v3207
    %v3322 = vpack.c.b16 %v3212, %v3210
    %v3323 = vpack.c.b16 %v3213, %v3211
    %v3324 = vpack.c.b16 %v3216, %v3214
    %v3325 = vpack.c.b16 %v3217, %v3215
    %v3326 = vpack.c.b16 %v3220, %v3218
    %v3327 = vpack.c.b16 %v3221, %v3219
    %v3328 = vpack.c.b16 %v3224, %v3222
    %v3329 = vpack.c.b16 %v3225, %v3223
    %v3330 = vpack.c.b16 %v3228, %v3226
    %v3331 = vpack.c.b16 %v3229, %v3227
    %v3332 = vpack.c.b16 %v3232, %v3230
    %v3333 = vpack.c.b16 %v3233, %v3231
    %v3334 = vpack.c.b16 %v3236, %v3234
    %v3335 = vpack.c.b16 %v3237, %v3235
    %v3336 = vpack.c.b16 %v3240, %v3238
    %v3337 = vpack.c.b16 %v3241, %v3239
    %3434 = vmatpush.bf16.msra.mxu0 %v3256
    %3435 = vmatpush.bf16.msra.mxu0 %v3254
    %3436 = vmatpush.bf16.msra.mxu0 %v3252
    %3437 = vmatpush.bf16.msra.mxu0 %v3250
    %3438 = vmatpush.bf16.msra.mxu0 %v3248
    %3439 = vmatpush.bf16.msra.mxu0 %v3246
    %3440 = vmatpush.bf16.msra.mxu0 %v3244
    %3441 = vmatpush.bf16.msra.mxu0 %v3242
    %3442 = vmatmul.bf16.gmra.mxu0 %v2942
    %v3443 = vpop.f32.mrf.mxu0
    %v3444 = vadd.f32 0.0, %v3443
    %v3445 = vpop.f32.mrf.mxu0
    %3446 = vdwg.mxu0
    %3447 = vmatpush.bf16.msra.mxu0 %v3272
    %3448 = vmatpush.bf16.msra.mxu0 %v3270
    %3449 = vmatpush.bf16.msra.mxu0 %v3268
    %3450 = vmatpush.bf16.msra.mxu0 %v3266
    %3451 = vmatpush.bf16.msra.mxu0 %v3264
    %3452 = vmatpush.bf16.msra.mxu0 %v3262
    %3453 = vmatpush.bf16.msra.mxu0 %v3260
    %3454 = vmatpush.bf16.msra.mxu0 %v3258
    %3455 = vmatmul.bf16.gmra.mxu0 %v2943
    %v3456 = vpop.f32.mrf.mxu0
    %v3457 = vadd.f32 %v3444, %v3456
    %v3458 = vpop.f32.mrf.mxu0
    %3459 = vdwg.mxu0
    %3460 = vmatpush.bf16.msra.mxu0 %v3288
    %3461 = vmatpush.bf16.msra.mxu0 %v3286
    %3462 = vmatpush.bf16.msra.mxu0 %v3284
    %3463 = vmatpush.bf16.msra.mxu0 %v3282
    %3464 = vmatpush.bf16.msra.mxu0 %v3280
    %3465 = vmatpush.bf16.msra.mxu0 %v3278
    %3466 = vmatpush.bf16.msra.mxu0 %v3276
    %3467 = vmatpush.bf16.msra.mxu0 %v3274
    %3468 = vmatmul.bf16.gmra.mxu0 %v2944
    %v3469 = vpop.f32.mrf.mxu0
    %v3470 = vadd.f32 %v3457, %v3469
    %v3471 = vpop.f32.mrf.mxu0
    %3472 = vdwg.mxu0
    %3473 = vmatpush.bf16.msra.mxu0 %v3304
    %3474 = vmatpush.bf16.msra.mxu0 %v3302
    %3475 = vmatpush.bf16.msra.mxu0 %v3300
    %3476 = vmatpush.bf16.msra.mxu0 %v3298
    %3477 = vmatpush.bf16.msra.mxu0 %v3296
    %3478 = vmatpush.bf16.msra.mxu0 %v3294
    %3479 = vmatpush.bf16.msra.mxu0 %v3292
    %3480 = vmatpush.bf16.msra.mxu0 %v3290
    %3481 = vmatmul.bf16.gmra.mxu0 %v2945
    %v3482 = vpop.f32.mrf.mxu0
    %v3483 = vadd.f32 %v3470, %v3482
    %v3484 = vpop.f32.mrf.mxu0
    %3485 = vdwg.mxu0
    %3486 = vmatpush.bf16.msra.mxu0 %v3320
    %3487 = vmatpush.bf16.msra.mxu0 %v3318
    %3488 = vmatpush.bf16.msra.mxu0 %v3316
    %3489 = vmatpush.bf16.msra.mxu0 %v3314
    %3490 = vmatpush.bf16.msra.mxu0 %v3312
    %3491 = vmatpush.bf16.msra.mxu0 %v3310
    %3492 = vmatpush.bf16.msra.mxu0 %v3308
    %3493 = vmatpush.bf16.msra.mxu0 %v3306
    %3494 = vmatmul.bf16.gmra.mxu0 %v2946
    %v3495 = vpop.f32.mrf.mxu0
    %v3496 = vadd.f32 %v3483, %v3495
    %v3497 = vpop.f32.mrf.mxu0
    %3498 = vdwg.mxu0
    %3499 = vmatpush.bf16.msra.mxu0 %v3336
    %3500 = vmatpush.bf16.msra.mxu0 %v3334
    %3501 = vmatpush.bf16.msra.mxu0 %v3332
    %3502 = vmatpush.bf16.msra.mxu0 %v3330
    %3503 = vmatpush.bf16.msra.mxu0 %v3328
    %3504 = vmatpush.bf16.msra.mxu0 %v3326
    %3505 = vmatpush.bf16.msra.mxu0 %v3324
    %3506 = vmatpush.bf16.msra.mxu0 %v3322
    %3507 = vmatmul.bf16.gmra.mxu0 %v2947
    %v3508 = vpop.f32.mrf.mxu0
    %v3509 = vadd.f32 %v3496, %v3508
    %v3510 = vpop.f32.mrf.mxu0
    %3511 = vdwg.mxu0
    %3512 = vmatpush.bf16.msra.mxu0 %v3257
    %3513 = vmatpush.bf16.msra.mxu0 %v3255
    %3514 = vmatpush.bf16.msra.mxu0 %v3253
    %3515 = vmatpush.bf16.msra.mxu0 %v3251
    %3516 = vmatpush.bf16.msra.mxu0 %v3249
    %3517 = vmatpush.bf16.msra.mxu0 %v3247
    %3518 = vmatpush.bf16.msra.mxu0 %v3245
    %3519 = vmatpush.bf16.msra.mxu0 %v3243
    %3520 = vmatmul.bf16.gmra.mxu0 %v2942
    %v3521 = vpop.f32.mrf.mxu0
    %v3522 = vadd.f32 0.0, %v3521
    %v3523 = vpop.f32.mrf.mxu0
    %3524 = vdwg.mxu0
    %3525 = vmatpush.bf16.msra.mxu0 %v3273
    %3526 = vmatpush.bf16.msra.mxu0 %v3271
    %3527 = vmatpush.bf16.msra.mxu0 %v3269
    %3528 = vmatpush.bf16.msra.mxu0 %v3267
    %3529 = vmatpush.bf16.msra.mxu0 %v3265
    %3530 = vmatpush.bf16.msra.mxu0 %v3263
    %3531 = vmatpush.bf16.msra.mxu0 %v3261
    %3532 = vmatpush.bf16.msra.mxu0 %v3259
    %3533 = vmatmul.bf16.gmra.mxu0 %v2943
    %v3534 = vpop.f32.mrf.mxu0
    %v3535 = vadd.f32 %v3522, %v3534
    %v3536 = vpop.f32.mrf.mxu0
    %3537 = vdwg.mxu0
    %3538 = vmatpush.bf16.msra.mxu0 %v3289
    %3539 = vmatpush.bf16.msra.mxu0 %v3287
    %3540 = vmatpush.bf16.msra.mxu0 %v3285
    %3541 = vmatpush.bf16.msra.mxu0 %v3283
    %3542 = vmatpush.bf16.msra.mxu0 %v3281
    %3543 = vmatpush.bf16.msra.mxu0 %v3279
    %3544 = vmatpush.bf16.msra.mxu0 %v3277
    %3545 = vmatpush.bf16.msra.mxu0 %v3275
    %3546 = vmatmul.bf16.gmra.mxu0 %v2944
    %v3547 = vpop.f32.mrf.mxu0
    %v3548 = vadd.f32 %v3535, %v3547
    %v3549 = vpop.f32.mrf.mxu0
    %3550 = vdwg.mxu0
    %3551 = vmatpush.bf16.msra.mxu0 %v3305
    %3552 = vmatpush.bf16.msra.mxu0 %v3303
    %3553 = vmatpush.bf16.msra.mxu0 %v3301
    %3554 = vmatpush.bf16.msra.mxu0 %v3299
    %3555 = vmatpush.bf16.msra.mxu0 %v3297
    %3556 = vmatpush.bf16.msra.mxu0 %v3295
    %3557 = vmatpush.bf16.msra.mxu0 %v3293
    %3558 = vmatpush.bf16.msra.mxu0 %v3291
    %3559 = vmatmul.bf16.gmra.mxu0 %v2945
    %v3560 = vpop.f32.mrf.mxu0
    %v3561 = vadd.f32 %v3548, %v3560
    %v3562 = vpop.f32.mrf.mxu0
    %3563 = vdwg.mxu0
    %3564 = vmatpush.bf16.msra.mxu0 %v3321
    %3565 = vmatpush.bf16.msra.mxu0 %v3319
    %3566 = vmatpush.bf16.msra.mxu0 %v3317
    %3567 = vmatpush.bf16.msra.mxu0 %v3315
    %3568 = vmatpush.bf16.msra.mxu0 %v3313
    %3569 = vmatpush.bf16.msra.mxu0 %v3311
    %3570 = vmatpush.bf16.msra.mxu0 %v3309
    %3571 = vmatpush.bf16.msra.mxu0 %v3307
    %3572 = vmatmul.bf16.gmra.mxu0 %v2946
    %v3573 = vpop.f32.mrf.mxu0
    %v3574 = vadd.f32 %v3561, %v3573
    %v3575 = vpop.f32.mrf.mxu0
    %3576 = vdwg.mxu0
    %3577 = vmatpush.bf16.msra.mxu0 %v3337
    %3578 = vmatpush.bf16.msra.mxu0 %v3335
    %3579 = vmatpush.bf16.msra.mxu0 %v3333
    %3580 = vmatpush.bf16.msra.mxu0 %v3331
    %3581 = vmatpush.bf16.msra.mxu0 %v3329
    %3582 = vmatpush.bf16.msra.mxu0 %v3327
    %3583 = vmatpush.bf16.msra.mxu0 %v3325
    %3584 = vmatpush.bf16.msra.mxu0 %v3323
    %3585 = vmatmul.bf16.gmra.mxu0 %v2947
    %v3586 = vpop.f32.mrf.mxu0
    %v3587 = vadd.f32 %v3574, %v3586
    %v3588 = vpop.f32.mrf.mxu0
    %3589 = vdwg.mxu0
    %3591 = vst [vmem:[#allocation1] ss:$9 sm:$0xff] %v2623
    %v3592 = vld [vmem:[#allocation1] sm:$0xff]
    %v3593 = vld [vmem:[#allocation1 + $0x9] sm:$0xff]
    %v3594 = vld [vmem:[#allocation1 + $0x12] sm:$0xff]
    %v3595 = vld [vmem:[#allocation1 + $0x1b] sm:$0xff]
    %v3596 = vld [vmem:[#allocation1 + $0x24] sm:$0xff]
    %v3597 = vld [vmem:[#allocation1 + $0x2d] sm:$0xff]
    %v3598 = vld [vmem:[#allocation1 + $0x36] sm:$0xff]
    %v3599 = vld [vmem:[#allocation1 + $0x3f] sm:$0xff]
    %3601 = vst [vmem:[#allocation1] ss:$9 sm:$0xff] %v2624
    %v3602 = vld [vmem:[#allocation1] sm:$0xff]
    %v3603 = vld [vmem:[#allocation1 + $0x9] sm:$0xff]
    %v3604 = vld [vmem:[#allocation1 + $0x12] sm:$0xff]
    %v3605 = vld [vmem:[#allocation1 + $0x1b] sm:$0xff]
    %v3606 = vld [vmem:[#allocation1 + $0x24] sm:$0xff]
    %v3607 = vld [vmem:[#allocation1 + $0x2d] sm:$0xff]
    %v3837 = vunpack.c.l.b16 %v2626
    %v3838 = vunpack.c.h.b16 %v2626
    %v3839 = vunpack.c.l.b16 %v2627
    %v3840 = vunpack.c.h.b16 %v2627
    %v3841 = vunpack.c.l.b16 %v2628
    %v3842 = vunpack.c.h.b16 %v2628
    %v3843 = vunpack.c.l.b16 %v2629
    %v3844 = vunpack.c.h.b16 %v2629
    %v3845 = vunpack.c.l.b16 %v2630
    %v3846 = vunpack.c.h.b16 %v2630
    %v3847 = vunpack.c.l.b16 %v2631
    %v3848 = vunpack.c.h.b16 %v2631
    %v3849 = vunpack.c.l.b16 %v2632
    %v3850 = vunpack.c.h.b16 %v2632
    %v3851 = vunpack.c.l.b16 %v2633
    %v3852 = vunpack.c.h.b16 %v2633
    %v3853 = vunpack.c.l.b16 %v2634
    %v3854 = vunpack.c.h.b16 %v2634
    %v3855 = vunpack.c.l.b16 %v2635
    %v3856 = vunpack.c.h.b16 %v2635
    %v3857 = vunpack.c.l.b16 %v2636
    %v3858 = vunpack.c.h.b16 %v2636
    %v3859 = vunpack.c.l.b16 %v2637
    %v3860 = vunpack.c.h.b16 %v2637
    %v3861 = vunpack.c.l.b16 %v2638
    %v3862 = vunpack.c.h.b16 %v2638
    %v3863 = vunpack.c.l.b16 %v2639
    %v3864 = vunpack.c.h.b16 %v2639
    %v3865 = vunpack.c.l.b16 %v2640
    %v3866 = vunpack.c.h.b16 %v2640
    %v3867 = vunpack.c.l.b16 %v2641
    %v3868 = vunpack.c.h.b16 %v2641
    %v3869 = vunpack.c.l.b16 %v2642
    %v3870 = vunpack.c.h.b16 %v2642
    %v3871 = vunpack.c.l.b16 %v2643
    %v3872 = vunpack.c.h.b16 %v2643
    %v3873 = vunpack.c.l.b16 %v2644
    %v3874 = vunpack.c.h.b16 %v2644
    %v3875 = vunpack.c.l.b16 %v2645
    %v3876 = vunpack.c.h.b16 %v2645
    %v3877 = vunpack.c.l.b16 %v2646
    %v3878 = vunpack.c.h.b16 %v2646
    %v3879 = vunpack.c.l.b16 %v2647
    %v3880 = vunpack.c.h.b16 %v2647
    %v3881 = vunpack.c.l.b16 %v2648
    %v3882 = vunpack.c.h.b16 %v2648
    %v3883 = vunpack.c.l.b16 %v2649
    %v3884 = vunpack.c.h.b16 %v2649
    %v3885 = vunpack.c.l.b16 %v2650
    %v3886 = vunpack.c.h.b16 %v2650
    %v3887 = vunpack.c.l.b16 %v2651
    %v3888 = vunpack.c.h.b16 %v2651
    %v3889 = vunpack.c.l.b16 %v2652
    %v3890 = vunpack.c.h.b16 %v2652
    %v3891 = vunpack.c.l.b16 %v2653
    %v3892 = vunpack.c.h.b16 %v2653
    %v3893 = vunpack.c.l.b16 %v2654
    %v3894 = vunpack.c.h.b16 %v2654
    %v3895 = vunpack.c.l.b16 %v2655
    %v3896 = vunpack.c.h.b16 %v2655
    %v3897 = vunpack.c.l.b16 %v2656
    %v3898 = vunpack.c.h.b16 %v2656
    %v3899 = vunpack.c.l.b16 %v2657
    %v3900 = vunpack.c.h.b16 %v2657
    %v3901 = vunpack.c.l.b16 %v2658
    %v3902 = vunpack.c.h.b16 %v2658
    %v3903 = vunpack.c.l.b16 %v2659
    %v3904 = vunpack.c.h.b16 %v2659
    %v3905 = vunpack.c.l.b16 %v2660
    %v3906 = vunpack.c.h.b16 %v2660
    %v3907 = vunpack.c.l.b16 %v2661
    %v3908 = vunpack.c.h.b16 %v2661
    %v3909 = vunpack.c.l.b16 %v2662
    %v3910 = vunpack.c.h.b16 %v2662
    %v3911 = vunpack.c.l.b16 %v2663
    %v3912 = vunpack.c.h.b16 %v2663
    %v3913 = vunpack.c.l.b16 %v2664
    %v3914 = vunpack.c.h.b16 %v2664
    %v3915 = vunpack.c.l.b16 %v2665
    %v3916 = vunpack.c.h.b16 %v2665
    %v3917 = vunpack.c.l.b16 %v2666
    %v3918 = vunpack.c.h.b16 %v2666
    %v3919 = vunpack.c.l.b16 %v2667
    %v3920 = vunpack.c.h.b16 %v2667
    %v3921 = vunpack.c.l.b16 %v2668
    %v3922 = vunpack.c.h.b16 %v2668
    %v3923 = vunpack.c.l.b16 %v2669
    %v3924 = vunpack.c.h.b16 %v2669
    %v3925 = vunpack.c.l.b16 %v2670
    %v3926 = vunpack.c.h.b16 %v2670
    %v3927 = vunpack.c.l.b16 %v2671
    %v3928 = vunpack.c.h.b16 %v2671
    %v3929 = vunpack.c.l.b16 %v2672
    %v3930 = vunpack.c.h.b16 %v2672
    %v3931 = vunpack.c.l.b16 %v2673
    %v3932 = vunpack.c.h.b16 %v2673
    %v3933 = vunpack.c.l.b16 %v2674
    %v3934 = vunpack.c.h.b16 %v2674
    %v3935 = vunpack.c.l.b16 %v2675
    %v3936 = vunpack.c.h.b16 %v2675
    %v3937 = vunpack.c.l.b16 %v2676
    %v3938 = vunpack.c.h.b16 %v2676
    %v3939 = vunpack.c.l.b16 %v2677
    %v3940 = vunpack.c.h.b16 %v2677
    %v3941 = vunpack.c.l.b16 %v2678
    %v3942 = vunpack.c.h.b16 %v2678
    %v3943 = vunpack.c.l.b16 %v2679
    %v3944 = vunpack.c.h.b16 %v2679
    %v3945 = vunpack.c.l.b16 %v2680
    %v3946 = vunpack.c.h.b16 %v2680
    %v3947 = vunpack.c.l.b16 %v2681
    %v3948 = vunpack.c.h.b16 %v2681
    %v3949 = vunpack.c.l.b16 %v2682
    %v3950 = vunpack.c.h.b16 %v2682
    %v3951 = vunpack.c.l.b16 %v2683
    %v3952 = vunpack.c.h.b16 %v2683
    %v3953 = vunpack.c.l.b16 %v2684
    %v3954 = vunpack.c.h.b16 %v2684
    %v3955 = vunpack.c.l.b16 %v2685
    %v3956 = vunpack.c.h.b16 %v2685
    %v3957 = vunpack.c.l.b16 %v2686
    %v3958 = vunpack.c.h.b16 %v2686
    %v3959 = vunpack.c.l.b16 %v2687
    %v3960 = vunpack.c.h.b16 %v2687
    %v3961 = vunpack.c.l.b16 %v2688
    %v3962 = vunpack.c.h.b16 %v2688
    %v3963 = vunpack.c.l.b16 %v2689
    %v3964 = vunpack.c.h.b16 %v2689
    %v3965 = vunpack.c.l.b16 %v2690
    %v3966 = vunpack.c.h.b16 %v2690
    %v3967 = vunpack.c.l.b16 %v2691
    %v3968 = vunpack.c.h.b16 %v2691
    %v3969 = vunpack.c.l.b16 %v2692
    %v3970 = vunpack.c.h.b16 %v2692
    %v3971 = vunpack.c.l.b16 %v2693
    %v3972 = vunpack.c.h.b16 %v2693
    %v3973 = vunpack.c.l.b16 %v2694
    %v3974 = vunpack.c.h.b16 %v2694
    %v3975 = vunpack.c.l.b16 %v2695
    %v3976 = vunpack.c.h.b16 %v2695
    %v3977 = vunpack.c.l.b16 %v2696
    %v3978 = vunpack.c.h.b16 %v2696
    %v3979 = vunpack.c.l.b16 %v2697
    %v3980 = vunpack.c.h.b16 %v2697
    %v3981 = vunpack.c.l.b16 %v2698
    %v3982 = vunpack.c.h.b16 %v2698
    %v3983 = vunpack.c.l.b16 %v2699
    %v3984 = vunpack.c.h.b16 %v2699
    %v3985 = vunpack.c.l.b16 %v2700
    %v3986 = vunpack.c.h.b16 %v2700
    %v3987 = vunpack.c.l.b16 %v2701
    %v3988 = vunpack.c.h.b16 %v2701
    %v3989 = vunpack.c.l.b16 %v2702
    %v3990 = vunpack.c.h.b16 %v2702
    %v3991 = vunpack.c.l.b16 %v2703
    %v3992 = vunpack.c.h.b16 %v2703
    %v3993 = vunpack.c.l.b16 %v2704
    %v3994 = vunpack.c.h.b16 %v2704
    %v3995 = vunpack.c.l.b16 %v2705
    %v3996 = vunpack.c.h.b16 %v2705
    %v3997 = vunpack.c.l.b16 %v2706
    %v3998 = vunpack.c.h.b16 %v2706
    %v3999 = vunpack.c.l.b16 %v2707
    %v4000 = vunpack.c.h.b16 %v2707
    %v4001 = vunpack.c.l.b16 %v2708
    %v4002 = vunpack.c.h.b16 %v2708
    %v4003 = vunpack.c.l.b16 %v2709
    %v4004 = vunpack.c.h.b16 %v2709
    %v4005 = vunpack.c.l.b16 %v2710
    %v4006 = vunpack.c.h.b16 %v2710
    %v4007 = vunpack.c.l.b16 %v2711
    %v4008 = vunpack.c.h.b16 %v2711
    %v4009 = vunpack.c.l.b16 %v2712
    %v4010 = vunpack.c.h.b16 %v2712
    %v4011 = vunpack.c.l.b16 %v2713
    %v4012 = vunpack.c.h.b16 %v2713
    %v4013 = vunpack.c.l.b16 %v2714
    %v4014 = vunpack.c.h.b16 %v2714
    %v4015 = vunpack.c.l.b16 %v2715
    %v4016 = vunpack.c.h.b16 %v2715
    %v4017 = vunpack.c.l.b16 %v2716
    %v4018 = vunpack.c.h.b16 %v2716
    %v4019 = vunpack.c.l.b16 %v2717
    %v4020 = vunpack.c.h.b16 %v2717
    %v4021 = vunpack.c.l.b16 %v2718
    %v4022 = vunpack.c.h.b16 %v2718
    %v4023 = vunpack.c.l.b16 %v2719
    %v4024 = vunpack.c.h.b16 %v2719
    %v4025 = vunpack.c.l.b16 %v2720
    %v4026 = vunpack.c.h.b16 %v2720
    %v4027 = vunpack.c.l.b16 %v2721
    %v4028 = vunpack.c.h.b16 %v2721
    %v4029 = vunpack.c.l.b16 %v2722
    %v4030 = vunpack.c.h.b16 %v2722
    %v4031 = vunpack.c.l.b16 %v2723
    %v4032 = vunpack.c.h.b16 %v2723
    %v4033 = vunpack.c.l.b16 %v2724
    %v4034 = vunpack.c.h.b16 %v2724
    %v4035 = vunpack.c.l.b16 %v2725
    %v4036 = vunpack.c.h.b16 %v2725
    %v4037 = vunpack.c.l.b16 %v2726
    %v4038 = vunpack.c.h.b16 %v2726
    %v4039 = vunpack.c.l.b16 %v2727
    %v4040 = vunpack.c.h.b16 %v2727
    %v4041 = vunpack.c.l.b16 %v2728
    %v4042 = vunpack.c.h.b16 %v2728
    %v4043 = vunpack.c.l.b16 %v2729
    %v4044 = vunpack.c.h.b16 %v2729
    %v4045 = vunpack.c.l.b16 %v2730
    %v4046 = vunpack.c.h.b16 %v2730
    %v4047 = vunpack.c.l.b16 %v2731
    %v4048 = vunpack.c.h.b16 %v2731
    %v4049 = vunpack.c.l.b16 %v2732
    %v4050 = vunpack.c.h.b16 %v2732
    %v4051 = vunpack.c.l.b16 %v2733
    %v4052 = vunpack.c.h.b16 %v2733
    %v4053 = vunpack.c.l.b16 %v2734
    %v4054 = vunpack.c.h.b16 %v2734
    %v4055 = vunpack.c.l.b16 %v2735
    %v4056 = vunpack.c.h.b16 %v2735
    %v4057 = vunpack.c.l.b16 %v2736
    %v4058 = vunpack.c.h.b16 %v2736
    %v4059 = vunpack.c.l.b16 %v2737
    %v4060 = vunpack.c.h.b16 %v2737
    %v4061 = vunpack.c.l.b16 %v2738
    %v4062 = vunpack.c.h.b16 %v2738
    %v4063 = vunpack.c.l.b16 %v2739
    %v4064 = vunpack.c.h.b16 %v2739
    %v4065 = vunpack.c.l.b16 %v2740
    %v4066 = vunpack.c.h.b16 %v2740
    %v4067 = vunpack.c.l.b16 %v2741
    %v4068 = vunpack.c.h.b16 %v2741
    %v4069 = vunpack.c.l.b16 %v2742
    %v4070 = vunpack.c.h.b16 %v2742
    %v4071 = vunpack.c.l.b16 %v2743
    %v4072 = vunpack.c.h.b16 %v2743
    %v4073 = vunpack.c.l.b16 %v2744
    %v4074 = vunpack.c.h.b16 %v2744
    %v4075 = vunpack.c.l.b16 %v2745
    %v4076 = vunpack.c.h.b16 %v2745
    %v4077 = vunpack.c.l.b16 %v2746
    %v4078 = vunpack.c.h.b16 %v2746
    %v4079 = vunpack.c.l.b16 %v2747
    %v4080 = vunpack.c.h.b16 %v2747
    %v4081 = vunpack.c.l.b16 %v2748
    %v4082 = vunpack.c.h.b16 %v2748
    %v4083 = vunpack.c.l.b16 %v2749
    %v4084 = vunpack.c.h.b16 %v2749
    %v4085 = vunpack.c.l.b16 %v2750
    %v4086 = vunpack.c.h.b16 %v2750
    %v4087 = vunpack.c.l.b16 %v2751
    %v4088 = vunpack.c.h.b16 %v2751
    %v4089 = vunpack.c.l.b16 %v2752
    %v4090 = vunpack.c.h.b16 %v2752
    %v4091 = vunpack.c.l.b16 %v2753
    %v4092 = vunpack.c.h.b16 %v2753
    %v4093 = vunpack.c.l.b16 %v2754
    %v4094 = vunpack.c.h.b16 %v2754
    %v4095 = vunpack.c.l.b16 %v2755
    %v4096 = vunpack.c.h.b16 %v2755
    %v4097 = vunpack.c.l.b16 %v2756
    %v4098 = vunpack.c.h.b16 %v2756
    %v4099 = vunpack.c.l.b16 %v2757
    %v4100 = vunpack.c.h.b16 %v2757
    %v4101 = vunpack.c.l.b16 %v2758
    %v4102 = vunpack.c.h.b16 %v2758
    %v4103 = vunpack.c.l.b16 %v2759
    %v4104 = vunpack.c.h.b16 %v2759
    %v4105 = vunpack.c.l.b16 %v2760
    %v4106 = vunpack.c.h.b16 %v2760
    %v4107 = vunpack.c.l.b16 %v2761
    %v4108 = vunpack.c.h.b16 %v2761
    %v4109 = vunpack.c.l.b16 %v2762
    %v4110 = vunpack.c.h.b16 %v2762
    %v4111 = vunpack.c.l.b16 %v2763
    %v4112 = vunpack.c.h.b16 %v2763
    %v4113 = vunpack.c.l.b16 %v2764
    %v4114 = vunpack.c.h.b16 %v2764
    %v4115 = vunpack.c.l.b16 %v2765
    %v4116 = vunpack.c.h.b16 %v2765
    %v4117 = vunpack.c.l.b16 %v2766
    %v4118 = vunpack.c.h.b16 %v2766
    %v4119 = vunpack.c.l.b16 %v2767
    %v4120 = vunpack.c.h.b16 %v2767
    %v4121 = vunpack.c.l.b16 %v2768
    %v4122 = vunpack.c.h.b16 %v2768
    %v4123 = vunpack.c.l.b16 %v2769
    %v4124 = vunpack.c.h.b16 %v2769
    %v4125 = vunpack.c.l.b16 %v2770
    %v4126 = vunpack.c.h.b16 %v2770
    %v4127 = vunpack.c.l.b16 %v2771
    %v4128 = vunpack.c.h.b16 %v2771
    %v4129 = vunpack.c.l.b16 %v2772
    %v4130 = vunpack.c.h.b16 %v2772
    %v4131 = vunpack.c.l.b16 %v2773
    %v4132 = vunpack.c.h.b16 %v2773
    %v4133 = vunpack.c.l.b16 %v2774
    %v4134 = vunpack.c.h.b16 %v2774
    %v4135 = vunpack.c.l.b16 %v2775
    %v4136 = vunpack.c.h.b16 %v2775
    %v4137 = vunpack.c.l.b16 %v2776
    %v4138 = vunpack.c.h.b16 %v2776
    %v4139 = vunpack.c.l.b16 %v2777
    %v4140 = vunpack.c.h.b16 %v2777
    %v4141 = vunpack.c.l.b16 %v2778
    %v4142 = vunpack.c.h.b16 %v2778
    %v4143 = vunpack.c.l.b16 %v2779
    %v4144 = vunpack.c.h.b16 %v2779
    %v4145 = vunpack.c.l.b16 %v2780
    %v4146 = vunpack.c.h.b16 %v2780
    %v4147 = vunpack.c.l.b16 %v2781
    %v4148 = vunpack.c.h.b16 %v2781
    %v4149 = vunpack.c.l.b16 %v2782
    %v4150 = vunpack.c.h.b16 %v2782
    %v4151 = vunpack.c.l.b16 %v2783
    %v4152 = vunpack.c.h.b16 %v2783
    %v4153 = vunpack.c.l.b16 %v2784
    %v4154 = vunpack.c.h.b16 %v2784
    %v4155 = vunpack.c.l.b16 %v2785
    %v4156 = vunpack.c.h.b16 %v2785
    %v4157 = vunpack.c.l.b16 %v2786
    %v4158 = vunpack.c.h.b16 %v2786
    %v4159 = vunpack.c.l.b16 %v2787
    %v4160 = vunpack.c.h.b16 %v2787
    %v4161 = vunpack.c.l.b16 %v2788
    %v4162 = vunpack.c.h.b16 %v2788
    %v4163 = vunpack.c.l.b16 %v2789
    %v4164 = vunpack.c.h.b16 %v2789
    %v4165 = vunpack.c.l.b16 %v2790
    %v4166 = vunpack.c.h.b16 %v2790
    %v4167 = vunpack.c.l.b16 %v2791
    %v4168 = vunpack.c.h.b16 %v2791
    %v4169 = vunpack.c.l.b16 %v2792
    %v4170 = vunpack.c.h.b16 %v2792
    %v4171 = vunpack.c.l.b16 %v2793
    %v4172 = vunpack.c.h.b16 %v2793
    %v4173 = vunpack.c.l.b16 %v2794
    %v4174 = vunpack.c.h.b16 %v2794
    %v4175 = vunpack.c.l.b16 %v2795
    %v4176 = vunpack.c.h.b16 %v2795
    %v4177 = vunpack.c.l.b16 %v2796
    %v4178 = vunpack.c.h.b16 %v2796
    %v4179 = vunpack.c.l.b16 %v2797
    %v4180 = vunpack.c.h.b16 %v2797
    %v4181 = vunpack.c.l.b16 %v2798
    %v4182 = vunpack.c.h.b16 %v2798
    %v4183 = vunpack.c.l.b16 %v2799
    %v4184 = vunpack.c.h.b16 %v2799
    %v4185 = vunpack.c.l.b16 %v2800
    %v4186 = vunpack.c.h.b16 %v2800
    %v4187 = vunpack.c.l.b16 %v2801
    %v4188 = vunpack.c.h.b16 %v2801
    %v4189 = vunpack.c.l.b16 %v2802
    %v4190 = vunpack.c.h.b16 %v2802
    %v4191 = vunpack.c.l.b16 %v2803
    %v4192 = vunpack.c.h.b16 %v2803
    %v4193 = vunpack.c.l.b16 %v2804
    %v4194 = vunpack.c.h.b16 %v2804
    %v4195 = vunpack.c.l.b16 %v2805
    %v4196 = vunpack.c.h.b16 %v2805
    %v4197 = vunpack.c.l.b16 %v2806
    %v4198 = vunpack.c.h.b16 %v2806
    %v4199 = vunpack.c.l.b16 %v2807
    %v4200 = vunpack.c.h.b16 %v2807
    %v4201 = vunpack.c.l.b16 %v2808
    %v4202 = vunpack.c.h.b16 %v2808
    %v4203 = vunpack.c.l.b16 %v2809
    %v4204 = vunpack.c.h.b16 %v2809
    %v4205 = vunpack.c.l.b16 %v2810
    %v4206 = vunpack.c.h.b16 %v2810
    %v4207 = vunpack.c.l.b16 %v2811
    %v4208 = vunpack.c.h.b16 %v2811
    %v4209 = vunpack.c.l.b16 %v2812
    %v4210 = vunpack.c.h.b16 %v2812
    %v4211 = vunpack.c.l.b16 %v2813
    %v4212 = vunpack.c.h.b16 %v2813
    %v4213 = vunpack.c.l.b16 %v2814
    %v4214 = vunpack.c.h.b16 %v2814
    %v4215 = vunpack.c.l.b16 %v2815
    %v4216 = vunpack.c.h.b16 %v2815
    %v4217 = vunpack.c.l.b16 %v2816
    %v4218 = vunpack.c.h.b16 %v2816
    %v4219 = vunpack.c.l.b16 %v2817
    %v4220 = vunpack.c.h.b16 %v2817
    %v4221 = vunpack.c.l.b16 %v2818
    %v4222 = vunpack.c.h.b16 %v2818
    %v4223 = vunpack.c.l.b16 %v2819
    %v4224 = vunpack.c.h.b16 %v2819
    %v4225 = vunpack.c.l.b16 %v2820
    %v4226 = vunpack.c.h.b16 %v2820
    %v4227 = vunpack.c.l.b16 %v2821
    %v4228 = vunpack.c.h.b16 %v2821
    %v4229 = vunpack.c.l.b16 %v2822
    %v4230 = vunpack.c.h.b16 %v2822
    %v4231 = vunpack.c.l.b16 %v2823
    %v4232 = vunpack.c.h.b16 %v2823
    %v4233 = vunpack.c.l.b16 %v2824
    %v4234 = vunpack.c.h.b16 %v2824
    %v4235 = vunpack.c.l.b16 %v2825
    %v4236 = vunpack.c.h.b16 %v2825
    %v4237 = vunpack.c.l.b16 %v2826
    %v4238 = vunpack.c.h.b16 %v2826
    %v4239 = vunpack.c.l.b16 %v2827
    %v4240 = vunpack.c.h.b16 %v2827
    %v4241 = vunpack.c.l.b16 %v2828
    %v4242 = vunpack.c.h.b16 %v2828
    %v4243 = vunpack.c.l.b16 %v2829
    %v4244 = vunpack.c.h.b16 %v2829
    %v4245 = vunpack.c.l.b16 %v2830
    %v4246 = vunpack.c.h.b16 %v2830
    %v4247 = vunpack.c.l.b16 %v2831
    %v4248 = vunpack.c.h.b16 %v2831
    %v4249 = vunpack.c.l.b16 %v2832
    %v4250 = vunpack.c.h.b16 %v2832
    %v4251 = vunpack.c.l.b16 %v2833
    %v4252 = vunpack.c.h.b16 %v2833
    %v4253 = vunpack.c.l.b16 %v2834
    %v4254 = vunpack.c.h.b16 %v2834
    %v4255 = vunpack.c.l.b16 %v2835
    %v4256 = vunpack.c.h.b16 %v2835
    %v4257 = vunpack.c.l.b16 %v2836
    %v4258 = vunpack.c.h.b16 %v2836
    %v4259 = vunpack.c.l.b16 %v2837
    %v4260 = vunpack.c.h.b16 %v2837
    %v4261 = vunpack.c.l.b16 %v2838
    %v4262 = vunpack.c.h.b16 %v2838
    %v4263 = vunpack.c.l.b16 %v2839
    %v4264 = vunpack.c.h.b16 %v2839
    %v4265 = vunpack.c.l.b16 %v2840
    %v4266 = vunpack.c.h.b16 %v2840
    %v4267 = vunpack.c.l.b16 %v2841
    %v4268 = vunpack.c.h.b16 %v2841
    %v4269 = vpack.c.b16 %v3839, %v3837
    %v4270 = vpack.c.b16 %v3840, %v3838
    %v4271 = vpack.c.b16 %v3843, %v3841
    %v4272 = vpack.c.b16 %v3844, %v3842
    %v4273 = vpack.c.b16 %v3847, %v3845
    %v4274 = vpack.c.b16 %v3848, %v3846
    %v4275 = vpack.c.b16 %v3851, %v3849
    %v4276 = vpack.c.b16 %v3852, %v3850
    %v4277 = vpack.c.b16 %v3855, %v3853
    %v4278 = vpack.c.b16 %v3856, %v3854
    %v4279 = vpack.c.b16 %v3859, %v3857
    %v4280 = vpack.c.b16 %v3860, %v3858
    %v4281 = vpack.c.b16 %v3863, %v3861
    %v4282 = vpack.c.b16 %v3864, %v3862
    %v4283 = vpack.c.b16 %v3867, %v3865
    %v4284 = vpack.c.b16 %v3868, %v3866
    %v4285 = vpack.c.b16 %v3871, %v3869
    %v4286 = vpack.c.b16 %v3872, %v3870
    %v4287 = vpack.c.b16 %v3875, %v3873
    %v4288 = vpack.c.b16 %v3876, %v3874
    %v4289 = vpack.c.b16 %v3879, %v3877
    %v4290 = vpack.c.b16 %v3880, %v3878
    %v4291 = vpack.c.b16 %v3883, %v3881
    %v4292 = vpack.c.b16 %v3884, %v3882
    %v4293 = vpack.c.b16 %v3887, %v3885
    %v4294 = vpack.c.b16 %v3888, %v3886
    %v4295 = vpack.c.b16 %v3891, %v3889
    %v4296 = vpack.c.b16 %v3892, %v3890
    %v4297 = vpack.c.b16 %v3895, %v3893
    %v4298 = vpack.c.b16 %v3896, %v3894
    %v4299 = vpack.c.b16 %v3899, %v3897
    %v4300 = vpack.c.b16 %v3900, %v3898
    %v4301 = vpack.c.b16 %v3903, %v3901
    %v4302 = vpack.c.b16 %v3904, %v3902
    %v4303 = vpack.c.b16 %v3907, %v3905
    %v4304 = vpack.c.b16 %v3908, %v3906
    %v4305 = vpack.c.b16 %v3911, %v3909
    %v4306 = vpack.c.b16 %v3912, %v3910
    %v4307 = vpack.c.b16 %v3915, %v3913
    %v4308 = vpack.c.b16 %v3916, %v3914
    %v4309 = vpack.c.b16 %v3919, %v3917
    %v4310 = vpack.c.b16 %v3920, %v3918
    %v4311 = vpack.c.b16 %v3923, %v3921
    %v4312 = vpack.c.b16 %v3924, %v3922
    %v4313 = vpack.c.b16 %v3927, %v3925
    %v4314 = vpack.c.b16 %v3928, %v3926
    %v4315 = vpack.c.b16 %v3931, %v3929
    %v4316 = vpack.c.b16 %v3932, %v3930
    %v4317 = vpack.c.b16 %v3935, %v3933
    %v4318 = vpack.c.b16 %v3936, %v3934
    %v4319 = vpack.c.b16 %v3939, %v3937
    %v4320 = vpack.c.b16 %v3940, %v3938
    %v4321 = vpack.c.b16 %v3943, %v3941
    %v4322 = vpack.c.b16 %v3944, %v3942
    %v4323 = vpack.c.b16 %v3947, %v3945
    %v4324 = vpack.c.b16 %v3948, %v3946
    %v4325 = vpack.c.b16 %v3951, %v3949
    %v4326 = vpack.c.b16 %v3952, %v3950
    %v4327 = vpack.c.b16 %v3955, %v3953
    %v4328 = vpack.c.b16 %v3956, %v3954
    %v4329 = vpack.c.b16 %v3959, %v3957
    %v4330 = vpack.c.b16 %v3960, %v3958
    %v4331 = vpack.c.b16 %v3963, %v3961
    %v4332 = vpack.c.b16 %v3964, %v3962
    %v4333 = vpack.c.b16 %v3967, %v3965
    %v4334 = vpack.c.b16 %v3968, %v3966
    %v4335 = vpack.c.b16 %v3971, %v3969
    %v4336 = vpack.c.b16 %v3972, %v3970
    %v4337 = vpack.c.b16 %v3975, %v3973
    %v4338 = vpack.c.b16 %v3976, %v3974
    %v4339 = vpack.c.b16 %v3979, %v3977
    %v4340 = vpack.c.b16 %v3980, %v3978
    %v4341 = vpack.c.b16 %v3983, %v3981
    %v4342 = vpack.c.b16 %v3984, %v3982
    %v4343 = vpack.c.b16 %v3987, %v3985
    %v4344 = vpack.c.b16 %v3988, %v3986
    %v4345 = vpack.c.b16 %v3991, %v3989
    %v4346 = vpack.c.b16 %v3992, %v3990
    %v4347 = vpack.c.b16 %v3995, %v3993
    %v4348 = vpack.c.b16 %v3996, %v3994
    %v4349 = vpack.c.b16 %v3999, %v3997
    %v4350 = vpack.c.b16 %v4000, %v3998
    %v4351 = vpack.c.b16 %v4003, %v4001
    %v4352 = vpack.c.b16 %v4004, %v4002
    %v4353 = vpack.c.b16 %v4007, %v4005
    %v4354 = vpack.c.b16 %v4008, %v4006
    %v4355 = vpack.c.b16 %v4011, %v4009
    %v4356 = vpack.c.b16 %v4012, %v4010
    %v4357 = vpack.c.b16 %v4015, %v4013
    %v4358 = vpack.c.b16 %v4016, %v4014
    %v4359 = vpack.c.b16 %v4019, %v4017
    %v4360 = vpack.c.b16 %v4020, %v4018
    %v4361 = vpack.c.b16 %v4023, %v4021
    %v4362 = vpack.c.b16 %v4024, %v4022
    %v4363 = vpack.c.b16 %v4027, %v4025
    %v4364 = vpack.c.b16 %v4028, %v4026
    %v4365 = vpack.c.b16 %v4031, %v4029
    %v4366 = vpack.c.b16 %v4032, %v4030
    %v4367 = vpack.c.b16 %v4035, %v4033
    %v4368 = vpack.c.b16 %v4036, %v4034
    %v4369 = vpack.c.b16 %v4039, %v4037
    %v4370 = vpack.c.b16 %v4040, %v4038
    %v4371 = vpack.c.b16 %v4043, %v4041
    %v4372 = vpack.c.b16 %v4044, %v4042
    %v4373 = vpack.c.b16 %v4047, %v4045
    %v4374 = vpack.c.b16 %v4048, %v4046
    %v4375 = vpack.c.b16 %v4051, %v4049
    %v4376 = vpack.c.b16 %v4052, %v4050
    %v4377 = vpack.c.b16 %v4055, %v4053
    %v4378 = vpack.c.b16 %v4056, %v4054
    %v4379 = vpack.c.b16 %v4059, %v4057
    %v4380 = vpack.c.b16 %v4060, %v4058
    %v4381 = vpack.c.b16 %v4063, %v4061
    %v4382 = vpack.c.b16 %v4064, %v4062
    %v4383 = vpack.c.b16 %v4067, %v4065
    %v4384 = vpack.c.b16 %v4068, %v4066
    %v4385 = vpack.c.b16 %v4071, %v4069
    %v4386 = vpack.c.b16 %v4072, %v4070
    %v4387 = vpack.c.b16 %v4075, %v4073
    %v4388 = vpack.c.b16 %v4076, %v4074
    %v4389 = vpack.c.b16 %v4079, %v4077
    %v4390 = vpack.c.b16 %v4080, %v4078
    %v4391 = vpack.c.b16 %v4083, %v4081
    %v4392 = vpack.c.b16 %v4084, %v4082
    %v4393 = vpack.c.b16 %v4087, %v4085
    %v4394 = vpack.c.b16 %v4088, %v4086
    %v4395 = vpack.c.b16 %v4091, %v4089
    %v4396 = vpack.c.b16 %v4092, %v4090
    %v4397 = vpack.c.b16 %v4095, %v4093
    %v4398 = vpack.c.b16 %v4096, %v4094
    %v4399 = vpack.c.b16 %v4099, %v4097
    %v4400 = vpack.c.b16 %v4100, %v4098
    %v4401 = vpack.c.b16 %v4103, %v4101
    %v4402 = vpack.c.b16 %v4104, %v4102
    %v4403 = vpack.c.b16 %v4107, %v4105
    %v4404 = vpack.c.b16 %v4108, %v4106
    %v4405 = vpack.c.b16 %v4111, %v4109
    %v4406 = vpack.c.b16 %v4112, %v4110
    %v4407 = vpack.c.b16 %v4115, %v4113
    %v4408 = vpack.c.b16 %v4116, %v4114
    %v4409 = vpack.c.b16 %v4119, %v4117
    %v4410 = vpack.c.b16 %v4120, %v4118
    %v4411 = vpack.c.b16 %v4123, %v4121
    %v4412 = vpack.c.b16 %v4124, %v4122
    %v4413 = vpack.c.b16 %v4127, %v4125
    %v4414 = vpack.c.b16 %v4128, %v4126
    %v4415 = vpack.c.b16 %v4131, %v4129
    %v4416 = vpack.c.b16 %v4132, %v4130
    %v4417 = vpack.c.b16 %v4135, %v4133
    %v4418 = vpack.c.b16 %v4136, %v4134
    %v4419 = vpack.c.b16 %v4139, %v4137
    %v4420 = vpack.c.b16 %v4140, %v4138
    %v4421 = vpack.c.b16 %v4143, %v4141
    %v4422 = vpack.c.b16 %v4144, %v4142
    %v4423 = vpack.c.b16 %v4147, %v4145
    %v4424 = vpack.c.b16 %v4148, %v4146
    %v4425 = vpack.c.b16 %v4151, %v4149
    %v4426 = vpack.c.b16 %v4152, %v4150
    %v4427 = vpack.c.b16 %v4155, %v4153
    %v4428 = vpack.c.b16 %v4156, %v4154
    %v4429 = vpack.c.b16 %v4159, %v4157
    %v4430 = vpack.c.b16 %v4160, %v4158
    %v4431 = vpack.c.b16 %v4163, %v4161
    %v4432 = vpack.c.b16 %v4164, %v4162
    %v4433 = vpack.c.b16 %v4167, %v4165
    %v4434 = vpack.c.b16 %v4168, %v4166
    %v4435 = vpack.c.b16 %v4171, %v4169
    %v4436 = vpack.c.b16 %v4172, %v4170
    %v4437 = vpack.c.b16 %v4175, %v4173
    %v4438 = vpack.c.b16 %v4176, %v4174
    %v4439 = vpack.c.b16 %v4179, %v4177
    %v4440 = vpack.c.b16 %v4180, %v4178
    %v4441 = vpack.c.b16 %v4183, %v4181
    %v4442 = vpack.c.b16 %v4184, %v4182
    %v4443 = vpack.c.b16 %v4187, %v4185
    %v4444 = vpack.c.b16 %v4188, %v4186
    %v4445 = vpack.c.b16 %v4191, %v4189
    %v4446 = vpack.c.b16 %v4192, %v4190
    %v4447 = vpack.c.b16 %v4195, %v4193
    %v4448 = vpack.c.b16 %v4196, %v4194
    %v4449 = vpack.c.b16 %v4199, %v4197
    %v4450 = vpack.c.b16 %v4200, %v4198
    %v4451 = vpack.c.b16 %v4203, %v4201
    %v4452 = vpack.c.b16 %v4204, %v4202
    %v4453 = vpack.c.b16 %v4207, %v4205
    %v4454 = vpack.c.b16 %v4208, %v4206
    %v4455 = vpack.c.b16 %v4211, %v4209
    %v4456 = vpack.c.b16 %v4212, %v4210
    %v4457 = vpack.c.b16 %v4215, %v4213
    %v4458 = vpack.c.b16 %v4216, %v4214
    %v4459 = vpack.c.b16 %v4219, %v4217
    %v4460 = vpack.c.b16 %v4220, %v4218
    %v4461 = vpack.c.b16 %v4223, %v4221
    %v4462 = vpack.c.b16 %v4224, %v4222
    %v4463 = vpack.c.b16 %v4227, %v4225
    %v4464 = vpack.c.b16 %v4228, %v4226
    %v4465 = vpack.c.b16 %v4231, %v4229
    %v4466 = vpack.c.b16 %v4232, %v4230
    %v4467 = vpack.c.b16 %v4235, %v4233
    %v4468 = vpack.c.b16 %v4236, %v4234
    %v4469 = vpack.c.b16 %v4239, %v4237
    %v4470 = vpack.c.b16 %v4240, %v4238
    %v4471 = vpack.c.b16 %v4243, %v4241
    %v4472 = vpack.c.b16 %v4244, %v4242
    %v4473 = vpack.c.b16 %v4247, %v4245
    %v4474 = vpack.c.b16 %v4248, %v4246
    %v4475 = vpack.c.b16 %v4251, %v4249
    %v4476 = vpack.c.b16 %v4252, %v4250
    %v4477 = vpack.c.b16 %v4255, %v4253
    %v4478 = vpack.c.b16 %v4256, %v4254
    %v4479 = vpack.c.b16 %v4259, %v4257
    %v4480 = vpack.c.b16 %v4260, %v4258
    %v4481 = vpack.c.b16 %v4263, %v4261
    %v4482 = vpack.c.b16 %v4264, %v4262
    %v4483 = vpack.c.b16 %v4267, %v4265
    %v4484 = vpack.c.b16 %v4268, %v4266
    %v4701 = vsel %vm2108, %v3607, 0
    %4703 = vmatpush.bf16.msra.mxu0 %v4283
    %4704 = vmatpush.bf16.msra.mxu0 %v4281
    %4705 = vmatpush.bf16.msra.mxu0 %v4279
    %4706 = vmatpush.bf16.msra.mxu0 %v4277
    %4707 = vmatpush.bf16.msra.mxu0 %v4275
    %4708 = vmatpush.bf16.msra.mxu0 %v4273
    %4709 = vmatpush.bf16.msra.mxu0 %v4271
    %4710 = vmatpush.bf16.msra.mxu0 %v4269
    %4711 = vmatmul.bf16.gmra.mxu0 %v3592
    %v4712 = vpop.f32.mrf.mxu0
    %v4713 = vadd.f32 %v3509, %v4712
    %v4714 = vpop.f32.mrf.mxu0
    %4715 = vdwg.mxu0
    %4716 = vmatpush.bf16.msra.mxu0 %v4299
    %4717 = vmatpush.bf16.msra.mxu0 %v4297
    %4718 = vmatpush.bf16.msra.mxu0 %v4295
    %4719 = vmatpush.bf16.msra.mxu0 %v4293
    %4720 = vmatpush.bf16.msra.mxu0 %v4291
    %4721 = vmatpush.bf16.msra.mxu0 %v4289
    %4722 = vmatpush.bf16.msra.mxu0 %v4287
    %4723 = vmatpush.bf16.msra.mxu0 %v4285
    %4724 = vmatmul.bf16.gmra.mxu0 %v3593
    %v4725 = vpop.f32.mrf.mxu0
    %v4726 = vadd.f32 %v4713, %v4725
    %v4727 = vpop.f32.mrf.mxu0
    %4728 = vdwg.mxu0
    %4729 = vmatpush.bf16.msra.mxu0 %v4315
    %4730 = vmatpush.bf16.msra.mxu0 %v4313
    %4731 = vmatpush.bf16.msra.mxu0 %v4311
    %4732 = vmatpush.bf16.msra.mxu0 %v4309
    %4733 = vmatpush.bf16.msra.mxu0 %v4307
    %4734 = vmatpush.bf16.msra.mxu0 %v4305
    %4735 = vmatpush.bf16.msra.mxu0 %v4303
    %4736 = vmatpush.bf16.msra.mxu0 %v4301
    %4737 = vmatmul.bf16.gmra.mxu0 %v3594
    %v4738 = vpop.f32.mrf.mxu0
    %v4739 = vadd.f32 %v4726, %v4738
    %v4740 = vpop.f32.mrf.mxu0
    %4741 = vdwg.mxu0
    %4742 = vmatpush.bf16.msra.mxu0 %v4331
    %4743 = vmatpush.bf16.msra.mxu0 %v4329
    %4744 = vmatpush.bf16.msra.mxu0 %v4327
    %4745 = vmatpush.bf16.msra.mxu0 %v4325
    %4746 = vmatpush.bf16.msra.mxu0 %v4323
    %4747 = vmatpush.bf16.msra.mxu0 %v4321
    %4748 = vmatpush.bf16.msra.mxu0 %v4319
    %4749 = vmatpush.bf16.msra.mxu0 %v4317
    %4750 = vmatmul.bf16.gmra.mxu0 %v3595
    %v4751 = vpop.f32.mrf.mxu0
    %v4752 = vadd.f32 %v4739, %v4751
    %v4753 = vpop.f32.mrf.mxu0
    %4754 = vdwg.mxu0
    %4755 = vmatpush.bf16.msra.mxu0 %v4347
    %4756 = vmatpush.bf16.msra.mxu0 %v4345
    %4757 = vmatpush.bf16.msra.mxu0 %v4343
    %4758 = vmatpush.bf16.msra.mxu0 %v4341
    %4759 = vmatpush.bf16.msra.mxu0 %v4339
    %4760 = vmatpush.bf16.msra.mxu0 %v4337
    %4761 = vmatpush.bf16.msra.mxu0 %v4335
    %4762 = vmatpush.bf16.msra.mxu0 %v4333
    %4763 = vmatmul.bf16.gmra.mxu0 %v3596
    %v4764 = vpop.f32.mrf.mxu0
    %v4765 = vadd.f32 %v4752, %v4764
    %v4766 = vpop.f32.mrf.mxu0
    %4767 = vdwg.mxu0
    %4768 = vmatpush.bf16.msra.mxu0 %v4363
    %4769 = vmatpush.bf16.msra.mxu0 %v4361
    %4770 = vmatpush.bf16.msra.mxu0 %v4359
    %4771 = vmatpush.bf16.msra.mxu0 %v4357
    %4772 = vmatpush.bf16.msra.mxu0 %v4355
    %4773 = vmatpush.bf16.msra.mxu0 %v4353
    %4774 = vmatpush.bf16.msra.mxu0 %v4351
    %4775 = vmatpush.bf16.msra.mxu0 %v4349
    %4776 = vmatmul.bf16.gmra.mxu0 %v3597
    %v4777 = vpop.f32.mrf.mxu0
    %v4778 = vadd.f32 %v4765, %v4777
    %v4779 = vpop.f32.mrf.mxu0
    %4780 = vdwg.mxu0
    %4781 = vmatpush.bf16.msra.mxu0 %v4379
    %4782 = vmatpush.bf16.msra.mxu0 %v4377
    %4783 = vmatpush.bf16.msra.mxu0 %v4375
    %4784 = vmatpush.bf16.msra.mxu0 %v4373
    %4785 = vmatpush.bf16.msra.mxu0 %v4371
    %4786 = vmatpush.bf16.msra.mxu0 %v4369
    %4787 = vmatpush.bf16.msra.mxu0 %v4367
    %4788 = vmatpush.bf16.msra.mxu0 %v4365
    %4789 = vmatmul.bf16.gmra.mxu0 %v3598
    %v4790 = vpop.f32.mrf.mxu0
    %v4791 = vadd.f32 %v4778, %v4790
    %v4792 = vpop.f32.mrf.mxu0
    %4793 = vdwg.mxu0
    %4794 = vmatpush.bf16.msra.mxu0 %v4395
    %4795 = vmatpush.bf16.msra.mxu0 %v4393
    %4796 = vmatpush.bf16.msra.mxu0 %v4391
    %4797 = vmatpush.bf16.msra.mxu0 %v4389
    %4798 = vmatpush.bf16.msra.mxu0 %v4387
    %4799 = vmatpush.bf16.msra.mxu0 %v4385
    %4800 = vmatpush.bf16.msra.mxu0 %v4383
    %4801 = vmatpush.bf16.msra.mxu0 %v4381
    %4802 = vmatmul.bf16.gmra.mxu0 %v3599
    %v4803 = vpop.f32.mrf.mxu0
    %v4804 = vadd.f32 %v4791, %v4803
    %v4805 = vpop.f32.mrf.mxu0
    %4806 = vdwg.mxu0
    %4807 = vmatpush.bf16.msra.mxu0 %v4411
    %4808 = vmatpush.bf16.msra.mxu0 %v4409
    %4809 = vmatpush.bf16.msra.mxu0 %v4407
    %4810 = vmatpush.bf16.msra.mxu0 %v4405
    %4811 = vmatpush.bf16.msra.mxu0 %v4403
    %4812 = vmatpush.bf16.msra.mxu0 %v4401
    %4813 = vmatpush.bf16.msra.mxu0 %v4399
    %4814 = vmatpush.bf16.msra.mxu0 %v4397
    %4815 = vmatmul.bf16.gmra.mxu0 %v3602
    %v4816 = vpop.f32.mrf.mxu0
    %v4817 = vadd.f32 %v4804, %v4816
    %v4818 = vpop.f32.mrf.mxu0
    %4819 = vdwg.mxu0
    %4820 = vmatpush.bf16.msra.mxu0 %v4427
    %4821 = vmatpush.bf16.msra.mxu0 %v4425
    %4822 = vmatpush.bf16.msra.mxu0 %v4423
    %4823 = vmatpush.bf16.msra.mxu0 %v4421
    %4824 = vmatpush.bf16.msra.mxu0 %v4419
    %4825 = vmatpush.bf16.msra.mxu0 %v4417
    %4826 = vmatpush.bf16.msra.mxu0 %v4415
    %4827 = vmatpush.bf16.msra.mxu0 %v4413
    %4828 = vmatmul.bf16.gmra.mxu0 %v3603
    %v4829 = vpop.f32.mrf.mxu0
    %v4830 = vadd.f32 %v4817, %v4829
    %v4831 = vpop.f32.mrf.mxu0
    %4832 = vdwg.mxu0
    %4833 = vmatpush.bf16.msra.mxu0 %v4443
    %4834 = vmatpush.bf16.msra.mxu0 %v4441
    %4835 = vmatpush.bf16.msra.mxu0 %v4439
    %4836 = vmatpush.bf16.msra.mxu0 %v4437
    %4837 = vmatpush.bf16.msra.mxu0 %v4435
    %4838 = vmatpush.bf16.msra.mxu0 %v4433
    %4839 = vmatpush.bf16.msra.mxu0 %v4431
    %4840 = vmatpush.bf16.msra.mxu0 %v4429
    %4841 = vmatmul.bf16.gmra.mxu0 %v3604
    %v4842 = vpop.f32.mrf.mxu0
    %v4843 = vadd.f32 %v4830, %v4842
    %v4844 = vpop.f32.mrf.mxu0
    %4845 = vdwg.mxu0
    %4846 = vmatpush.bf16.msra.mxu0 %v4459
    %4847 = vmatpush.bf16.msra.mxu0 %v4457
    %4848 = vmatpush.bf16.msra.mxu0 %v4455
    %4849 = vmatpush.bf16.msra.mxu0 %v4453
    %4850 = vmatpush.bf16.msra.mxu0 %v4451
    %4851 = vmatpush.bf16.msra.mxu0 %v4449
    %4852 = vmatpush.bf16.msra.mxu0 %v4447
    %4853 = vmatpush.bf16.msra.mxu0 %v4445
    %4854 = vmatmul.bf16.gmra.mxu0 %v3605
    %v4855 = vpop.f32.mrf.mxu0
    %v4856 = vadd.f32 %v4843, %v4855
    %v4857 = vpop.f32.mrf.mxu0
    %4858 = vdwg.mxu0
    %4859 = vmatpush.bf16.msra.mxu0 %v4475
    %4860 = vmatpush.bf16.msra.mxu0 %v4473
    %4861 = vmatpush.bf16.msra.mxu0 %v4471
    %4862 = vmatpush.bf16.msra.mxu0 %v4469
    %4863 = vmatpush.bf16.msra.mxu0 %v4467
    %4864 = vmatpush.bf16.msra.mxu0 %v4465
    %4865 = vmatpush.bf16.msra.mxu0 %v4463
    %4866 = vmatpush.bf16.msra.mxu0 %v4461
    %4867 = vmatmul.bf16.gmra.mxu0 %v3606
    %v4868 = vpop.f32.mrf.mxu0
    %v4869 = vadd.f32 %v4856, %v4868
    %v4870 = vpop.f32.mrf.mxu0
    %4871 = vdwg.mxu0
    %4872 = vmatpush.bf16.msra.mxu0 0
    %4873 = vmatpush.bf16.msra.mxu0 0
    %4874 = vmatpush.bf16.msra.mxu0 0
    %4875 = vmatpush.bf16.msra.mxu0 0
    %4876 = vmatpush.bf16.msra.mxu0 %v4483
    %4877 = vmatpush.bf16.msra.mxu0 %v4481
    %4878 = vmatpush.bf16.msra.mxu0 %v4479
    %4879 = vmatpush.bf16.msra.mxu0 %v4477
    %4880 = vmatmul.bf16.gmra.mxu0 %v4701
    %v4881 = vpop.f32.mrf.mxu0
    %v4882 = vadd.f32 %v4869, %v4881
    %v4883 = vpop.f32.mrf.mxu0
    %4884 = vdwg.mxu0
    %4885 = vmatpush.bf16.msra.mxu0 %v4284
    %4886 = vmatpush.bf16.msra.mxu0 %v4282
    %4887 = vmatpush.bf16.msra.mxu0 %v4280
    %4888 = vmatpush.bf16.msra.mxu0 %v4278
    %4889 = vmatpush.bf16.msra.mxu0 %v4276
    %4890 = vmatpush.bf16.msra.mxu0 %v4274
    %4891 = vmatpush.bf16.msra.mxu0 %v4272
    %4892 = vmatpush.bf16.msra.mxu0 %v4270
    %4893 = vmatmul.bf16.gmra.mxu0 %v3592
    %v4894 = vpop.f32.mrf.mxu0
    %v4895 = vadd.f32 %v3587, %v4894
    %v4896 = vpop.f32.mrf.mxu0
    %4897 = vdwg.mxu0
    %4898 = vmatpush.bf16.msra.mxu0 %v4300
    %4899 = vmatpush.bf16.msra.mxu0 %v4298
    %4900 = vmatpush.bf16.msra.mxu0 %v4296
    %4901 = vmatpush.bf16.msra.mxu0 %v4294
    %4902 = vmatpush.bf16.msra.mxu0 %v4292
    %4903 = vmatpush.bf16.msra.mxu0 %v4290
    %4904 = vmatpush.bf16.msra.mxu0 %v4288
    %4905 = vmatpush.bf16.msra.mxu0 %v4286
    %4906 = vmatmul.bf16.gmra.mxu0 %v3593
    %v4907 = vpop.f32.mrf.mxu0
    %v4908 = vadd.f32 %v4895, %v4907
    %v4909 = vpop.f32.mrf.mxu0
    %4910 = vdwg.mxu0
    %4911 = vmatpush.bf16.msra.mxu0 %v4316
    %4912 = vmatpush.bf16.msra.mxu0 %v4314
    %4913 = vmatpush.bf16.msra.mxu0 %v4312
    %4914 = vmatpush.bf16.msra.mxu0 %v4310
    %4915 = vmatpush.bf16.msra.mxu0 %v4308
    %4916 = vmatpush.bf16.msra.mxu0 %v4306
    %4917 = vmatpush.bf16.msra.mxu0 %v4304
    %4918 = vmatpush.bf16.msra.mxu0 %v4302
    %4919 = vmatmul.bf16.gmra.mxu0 %v3594
    %v4920 = vpop.f32.mrf.mxu0
    %v4921 = vadd.f32 %v4908, %v4920
    %v4922 = vpop.f32.mrf.mxu0
    %4923 = vdwg.mxu0
    %4924 = vmatpush.bf16.msra.mxu0 %v4332
    %4925 = vmatpush.bf16.msra.mxu0 %v4330
    %4926 = vmatpush.bf16.msra.mxu0 %v4328
    %4927 = vmatpush.bf16.msra.mxu0 %v4326
    %4928 = vmatpush.bf16.msra.mxu0 %v4324
    %4929 = vmatpush.bf16.msra.mxu0 %v4322
    %4930 = vmatpush.bf16.msra.mxu0 %v4320
    %4931 = vmatpush.bf16.msra.mxu0 %v4318
    %4932 = vmatmul.bf16.gmra.mxu0 %v3595
    %v4933 = vpop.f32.mrf.mxu0
    %v4934 = vadd.f32 %v4921, %v4933
    %v4935 = vpop.f32.mrf.mxu0
    %4936 = vdwg.mxu0
    %4937 = vmatpush.bf16.msra.mxu0 %v4348
    %4938 = vmatpush.bf16.msra.mxu0 %v4346
    %4939 = vmatpush.bf16.msra.mxu0 %v4344
    %4940 = vmatpush.bf16.msra.mxu0 %v4342
    %4941 = vmatpush.bf16.msra.mxu0 %v4340
    %4942 = vmatpush.bf16.msra.mxu0 %v4338
    %4943 = vmatpush.bf16.msra.mxu0 %v4336
    %4944 = vmatpush.bf16.msra.mxu0 %v4334
    %4945 = vmatmul.bf16.gmra.mxu0 %v3596
    %v4946 = vpop.f32.mrf.mxu0
    %v4947 = vadd.f32 %v4934, %v4946
    %v4948 = vpop.f32.mrf.mxu0
    %4949 = vdwg.mxu0
    %4950 = vmatpush.bf16.msra.mxu0 %v4364
    %4951 = vmatpush.bf16.msra.mxu0 %v4362
    %4952 = vmatpush.bf16.msra.mxu0 %v4360
    %4953 = vmatpush.bf16.msra.mxu0 %v4358
    %4954 = vmatpush.bf16.msra.mxu0 %v4356
    %4955 = vmatpush.bf16.msra.mxu0 %v4354
    %4956 = vmatpush.bf16.msra.mxu0 %v4352
    %4957 = vmatpush.bf16.msra.mxu0 %v4350
    %4958 = vmatmul.bf16.gmra.mxu0 %v3597
    %v4959 = vpop.f32.mrf.mxu0
    %v4960 = vadd.f32 %v4947, %v4959
    %v4961 = vpop.f32.mrf.mxu0
    %4962 = vdwg.mxu0
    %4963 = vmatpush.bf16.msra.mxu0 %v4380
    %4964 = vmatpush.bf16.msra.mxu0 %v4378
    %4965 = vmatpush.bf16.msra.mxu0 %v4376
    %4966 = vmatpush.bf16.msra.mxu0 %v4374
    %4967 = vmatpush.bf16.msra.mxu0 %v4372
    %4968 = vmatpush.bf16.msra.mxu0 %v4370
    %4969 = vmatpush.bf16.msra.mxu0 %v4368
    %4970 = vmatpush.bf16.msra.mxu0 %v4366
    %4971 = vmatmul.bf16.gmra.mxu0 %v3598
    %v4972 = vpop.f32.mrf.mxu0
    %v4973 = vadd.f32 %v4960, %v4972
    %v4974 = vpop.f32.mrf.mxu0
    %4975 = vdwg.mxu0
    %4976 = vmatpush.bf16.msra.mxu0 %v4396
    %4977 = vmatpush.bf16.msra.mxu0 %v4394
    %4978 = vmatpush.bf16.msra.mxu0 %v4392
    %4979 = vmatpush.bf16.msra.mxu0 %v4390
    %4980 = vmatpush.bf16.msra.mxu0 %v4388
    %4981 = vmatpush.bf16.msra.mxu0 %v4386
    %4982 = vmatpush.bf16.msra.mxu0 %v4384
    %4983 = vmatpush.bf16.msra.mxu0 %v4382
    %4984 = vmatmul.bf16.gmra.mxu0 %v3599
    %v4985 = vpop.f32.mrf.mxu0
    %v4986 = vadd.f32 %v4973, %v4985
    %v4987 = vpop.f32.mrf.mxu0
    %4988 = vdwg.mxu0
    %4989 = vmatpush.bf16.msra.mxu0 %v4412
    %4990 = vmatpush.bf16.msra.mxu0 %v4410
    %4991 = vmatpush.bf16.msra.mxu0 %v4408
    %4992 = vmatpush.bf16.msra.mxu0 %v4406
    %4993 = vmatpush.bf16.msra.mxu0 %v4404
    %4994 = vmatpush.bf16.msra.mxu0 %v4402
    %4995 = vmatpush.bf16.msra.mxu0 %v4400
    %4996 = vmatpush.bf16.msra.mxu0 %v4398
    %4997 = vmatmul.bf16.gmra.mxu0 %v3602
    %v4998 = vpop.f32.mrf.mxu0
    %v4999 = vadd.f32 %v4986, %v4998
    %v5000 = vpop.f32.mrf.mxu0
    %5001 = vdwg.mxu0
    %5002 = vmatpush.bf16.msra.mxu0 %v4428
    %5003 = vmatpush.bf16.msra.mxu0 %v4426
    %5004 = vmatpush.bf16.msra.mxu0 %v4424
    %5005 = vmatpush.bf16.msra.mxu0 %v4422
    %5006 = vmatpush.bf16.msra.mxu0 %v4420
    %5007 = vmatpush.bf16.msra.mxu0 %v4418
    %5008 = vmatpush.bf16.msra.mxu0 %v4416
    %5009 = vmatpush.bf16.msra.mxu0 %v4414
    %5010 = vmatmul.bf16.gmra.mxu0 %v3603
    %v5011 = vpop.f32.mrf.mxu0
    %v5012 = vadd.f32 %v4999, %v5011
    %v5013 = vpop.f32.mrf.mxu0
    %5014 = vdwg.mxu0
    %5015 = vmatpush.bf16.msra.mxu0 %v4444
    %5016 = vmatpush.bf16.msra.mxu0 %v4442
    %5017 = vmatpush.bf16.msra.mxu0 %v4440
    %5018 = vmatpush.bf16.msra.mxu0 %v4438
    %5019 = vmatpush.bf16.msra.mxu0 %v4436
    %5020 = vmatpush.bf16.msra.mxu0 %v4434
    %5021 = vmatpush.bf16.msra.mxu0 %v4432
    %5022 = vmatpush.bf16.msra.mxu0 %v4430
    %5023 = vmatmul.bf16.gmra.mxu0 %v3604
    %v5024 = vpop.f32.mrf.mxu0
    %v5025 = vadd.f32 %v5012, %v5024
    %v5026 = vpop.f32.mrf.mxu0
    %5027 = vdwg.mxu0
    %5028 = vmatpush.bf16.msra.mxu0 %v4460
    %5029 = vmatpush.bf16.msra.mxu0 %v4458
    %5030 = vmatpush.bf16.msra.mxu0 %v4456
    %5031 = vmatpush.bf16.msra.mxu0 %v4454
    %5032 = vmatpush.bf16.msra.mxu0 %v4452
    %5033 = vmatpush.bf16.msra.mxu0 %v4450
    %5034 = vmatpush.bf16.msra.mxu0 %v4448
    %5035 = vmatpush.bf16.msra.mxu0 %v4446
    %5036 = vmatmul.bf16.gmra.mxu0 %v3605
    %v5037 = vpop.f32.mrf.mxu0
    %v5038 = vadd.f32 %v5025, %v5037
    %v5039 = vpop.f32.mrf.mxu0
    %5040 = vdwg.mxu0
    %5041 = vmatpush.bf16.msra.mxu0 %v4476
    %5042 = vmatpush.bf16.msra.mxu0 %v4474
    %5043 = vmatpush.bf16.msra.mxu0 %v4472
    %5044 = vmatpush.bf16.msra.mxu0 %v4470
    %5045 = vmatpush.bf16.msra.mxu0 %v4468
    %5046 = vmatpush.bf16.msra.mxu0 %v4466
    %5047 = vmatpush.bf16.msra.mxu0 %v4464
    %5048 = vmatpush.bf16.msra.mxu0 %v4462
    %5049 = vmatmul.bf16.gmra.mxu0 %v3606
    %v5050 = vpop.f32.mrf.mxu0
    %v5051 = vadd.f32 %v5038, %v5050
    %v5052 = vpop.f32.mrf.mxu0
    %5053 = vdwg.mxu0
    %5054 = vmatpush.bf16.msra.mxu0 0
    %5055 = vmatpush.bf16.msra.mxu0 0
    %5056 = vmatpush.bf16.msra.mxu0 0
    %5057 = vmatpush.bf16.msra.mxu0 0
    %5058 = vmatpush.bf16.msra.mxu0 %v4484
    %5059 = vmatpush.bf16.msra.mxu0 %v4482
    %5060 = vmatpush.bf16.msra.mxu0 %v4480
    %5061 = vmatpush.bf16.msra.mxu0 %v4478
    %5062 = vmatmul.bf16.gmra.mxu0 %v4701
    %v5063 = vpop.f32.mrf.mxu0
    %v5064 = vadd.f32 %v5051, %v5063
    %v5065 = vpop.f32.mrf.mxu0
    %5066 = vdwg.mxu0
    %v5067 = vadd.f32 %v4882, %v2478
    %v5068 = vadd.f32 %v5064, %v2478
    %v5069 = vxor.u32 %v5067, 2147483648
    %v5070 = vxor.u32 %v5068, 2147483648
    %v5071 = vmul.f32 %v5069, 1.442695
    %v5072 = vpow.pop %v5071
    %v5073 = vmul.f32 %v5070, 1.442695
    %v5074 = vpow.pop %v5073
    %v5075 = vadd.f32 %v5072, 1.0
    %v5076 = vadd.f32 %v5074, 1.0
    %v5077 = vrcp.pop %v5075
    %v5078 = vmul.f32 %v5075, %v5077
    %v5079 = vsub.f32 1.0, %v5078
    %v5080 = vmul.f32 %v5077, %v5079
    %v5081 = vadd.f32 %v5077, %v5080
    %vm5082 = vweird.f32 %v5075
    %vm5083 = vweird.f32 %v5077
    %vm5084 = vmor %vm5082, %vm5083
    %v5085 = vsel %vm5084, %v5077, %v5081
    %v5086 = vand.u32 2147483647, %v5075
    %vm5087 = vcmp.eq.f32.partialorder %v5086, 8.507059e+37
    %v5088 = vand.u32 %v5075, 2147483648
    %v5089 = vor.u32 1.1754944e-38, %v5088
    %v5090 = vsel %vm5087, %v5089, %v5085
    %v5091 = vmul.f32 1.0, %v5090
    %v5092 = vrcp.pop %v5076
    %v5093 = vmul.f32 %v5076, %v5092
    %v5094 = vsub.f32 1.0, %v5093
    %v5095 = vmul.f32 %v5092, %v5094
    %v5096 = vadd.f32 %v5092, %v5095
    %vm5097 = vweird.f32 %v5076
    %vm5098 = vweird.f32 %v5092
    %vm5099 = vmor %vm5097, %vm5098
    %v5100 = vsel %vm5099, %v5092, %v5096
    %v5101 = vand.u32 2147483647, %v5076
    %vm5102 = vcmp.eq.f32.partialorder %v5101, 8.507059e+37
    %v5103 = vand.u32 %v5076, 2147483648
    %v5104 = vor.u32 1.1754944e-38, %v5103
    %v5105 = vsel %vm5102, %v5104, %v5100
    %v5106 = vmul.f32 1.0, %v5105
    %v5109 = vrot.slane %v5091, 1
    %v5110 = vrot.slane %v5106, 1
    %v5113 = vmul.f32 %v5067, %v5109
    %v5114 = vmul.f32 %v5068, %v5110
    %v5115 = vld [vmem:[%s6] sm:$0xff]
    %v5116 = vld [vmem:[%s6 + $0x8] sm:$0xff]
    %v5117 = vld [vmem:[%s6 + $0x10] sm:$0xff]
    %v5118 = vld [vmem:[%s6 + $0x18] sm:$0xff]
    %v5119 = vld [vmem:[%s6 + $0x20] sm:$0xff]
    %v5120 = vld [vmem:[%s6 + $0x28] sm:$0xff]
    %v5121 = vld [vmem:[%s6 + $0x30] sm:$0xff]
    %v5122 = vld [vmem:[%s6 + $0x38] sm:$0xff]
    %v5123 = vld [vmem:[%s6 + $0x40] sm:$0xff]
    %v5124 = vld [vmem:[%s6 + $0x48] sm:$0xff]
    %v5125 = vld [vmem:[%s6 + $0x50] sm:$0xff]
    %v5126 = vld [vmem:[%s6 + $0x58] sm:$0xff]
    %v5127 = vld [vmem:[%s6 + $0x60] sm:$0xff]
    %v5128 = vld [vmem:[%s6 + $0x68] sm:$0xff]
    %v5129 = vld [vmem:[%s6 + $0x70] sm:$0xff]
    %v5130 = vld [vmem:[%s6 + $0x78] sm:$0xff]
    %v5131 = vld [vmem:[%s6 + $0x80] sm:$0xff]
    %v5132 = vld [vmem:[%s6 + $0x88] sm:$0xff]
    %v5133 = vld [vmem:[%s6 + $0x90] sm:$0xff]
    %v5134 = vld [vmem:[%s6 + $0x98] sm:$0xff]
    %v5135 = vld [vmem:[%s6 + $0xa0] sm:$0xff]
    %v5136 = vld [vmem:[%s6 + $0xa8] sm:$0xff]
    %v5137 = vld [vmem:[%s6 + $0xb0] sm:$0xff]
    %v5138 = vld [vmem:[%s6 + $0xb8] sm:$0xff]
    %v5139 = vld [vmem:[%s6 + $0xc0] sm:$0xff]
    %v5140 = vld [vmem:[%s6 + $0xc8] sm:$0xff]
    %v5141 = vld [vmem:[%s6 + $0xd0] sm:$0xff]
    %v5142 = vld [vmem:[%s6 + $0xd8] sm:$0xff]
    %v5143 = vld [vmem:[%s6 + $0xe0] sm:$0xff]
    %v5144 = vld [vmem:[%s6 + $0xe8] sm:$0xff]
    %v5145 = vld [vmem:[%s6 + $0xf0] sm:$0xff]
    %v5146 = vld [vmem:[%s6 + $0xf8] sm:$0xff]
    %v5147 = vld [vmem:[%s7] sm:$0x1]
    %5148 = vmatpush.msra.mxu0 %v5130
    %5149 = vmatpush.msra.mxu0 %v5129
    %5150 = vmatpush.msra.mxu0 %v5128
    %5151 = vmatpush.msra.mxu0 %v5127
    %5152 = vmatpush.msra.mxu0 %v5126
    %5153 = vmatpush.msra.mxu0 %v5125
    %5154 = vmatpush.msra.mxu0 %v5124
    %5155 = vmatpush.msra.mxu0 %v5123
    %5156 = vmatpush.msra.mxu0 %v5122
    %5157 = vmatpush.msra.mxu0 %v5121
    %5158 = vmatpush.msra.mxu0 %v5120
    %5159 = vmatpush.msra.mxu0 %v5119
    %5160 = vmatpush.msra.mxu0 %v5118
    %5161 = vmatpush.msra.mxu0 %v5117
    %5162 = vmatpush.msra.mxu0 %v5116
    %5163 = vmatpush.msra.mxu0 %v5115
    %5164 = vmatmul.f32.gmra.mxu0 %v5113
    %v5165 = vpop.f32.mrf.mxu0
    %v5166 = vadd.f32 %v5147, %v5165
    %5167 = vdwg.mxu0
    %5168 = vmatpush.msra.mxu0 %v5146
    %5169 = vmatpush.msra.mxu0 %v5145
    %5170 = vmatpush.msra.mxu0 %v5144
    %5171 = vmatpush.msra.mxu0 %v5143
    %5172 = vmatpush.msra.mxu0 %v5142
    %5173 = vmatpush.msra.mxu0 %v5141
    %5174 = vmatpush.msra.mxu0 %v5140
    %5175 = vmatpush.msra.mxu0 %v5139
    %5176 = vmatpush.msra.mxu0 %v5138
    %5177 = vmatpush.msra.mxu0 %v5137
    %5178 = vmatpush.msra.mxu0 %v5136
    %5179 = vmatpush.msra.mxu0 %v5135
    %5180 = vmatpush.msra.mxu0 %v5134
    %5181 = vmatpush.msra.mxu0 %v5133
    %5182 = vmatpush.msra.mxu0 %v5132
    %5183 = vmatpush.msra.mxu0 %v5131
    %5184 = vmatmul.f32.gmra.mxu0 %v5114
    %v5185 = vpop.f32.mrf.mxu0
    %v5186 = vadd.f32 %v5166, %v5185
    %5187 = vdwg.mxu0
    %v5188 = vld [vmem:[%s2 + $0x1] sm:$0x1]
    %v5189 = vxor.u32 %v5186, 2147483648
    %v5190 = vmul.f32 %v5189, 1.442695
    %v5191 = vpow.pop %v5190
    %v5192 = vadd.f32 %v5191, 1.0
    %v5193 = vrcp.pop %v5192
    %v5194 = vmul.f32 %v5192, %v5193
    %v5195 = vsub.f32 1.0, %v5194
    %v5196 = vmul.f32 %v5193, %v5195
    %v5197 = vadd.f32 %v5193, %v5196
    %vm5198 = vweird.f32 %v5192
    %vm5199 = vweird.f32 %v5193
    %vm5200 = vmor %vm5198, %vm5199
    %v5201 = vsel %vm5200, %v5193, %v5197
    %v5202 = vand.u32 2147483647, %v5192
    %vm5203 = vcmp.eq.f32.partialorder %v5202, 8.507059e+37
    %v5204 = vand.u32 %v5192, 2147483648
    %v5205 = vor.u32 1.1754944e-38, %v5204
    %v5206 = vsel %vm5203, %v5205, %v5201
    %v5207 = vmul.f32 1.0, %v5206
    %v5208 = vmul.f32 %v5188, %v5207
    %5209 = vst [vmem:[#allocation2 + $0x1] sm:$0x1] %v5208
    // Predicated region
    $region34: #{vsa_forward.1} parent=1 // pred_check
      _
    $region35: #{vsa_forward.1} parent=1 // pred_check_branch
      %5211 = sbr.rel (0) target = $region37
    $region36: #{vsa_forward.1} parent=1 // pred_region
      %5213 = vsyncadd [#allocation3], 0
      %s5215 = sshll.u32 [#allocation2], 4
      %s5216 = int_to_ptr.vmem [resolvable:$true] %s5215
      %s5217 = sshll.u32 %s8, 4
      %s5218 = int_to_ptr.hbm [resolvable:$true] %s5217
      %5220 = dma.vmem_to_hbm [thread:$0]  %s5216, 32, %s5218, [#allocation3]
    $region37: #{vsa_forward.1} parent=1 // pred_fallthru
      _
    // Predicated region
    $region38: #{vsa_forward.1} parent=1 // pred_check
      _
    $region39: #{vsa_forward.1} parent=1 // pred_check_branch
      %5222 = sbr.rel (0) target = $region41
    $region40: #{vsa_forward.1} parent=1 // pred_region
      %5224 = dma.done [#allocation3], 32
    $region41: #{vsa_forward.1} parent=1 // pred_fallthru
      _
    %5225 = vsyncpa [#allocation3], 1

</llo_original>
